<compile_context>
chip_gen: v7x
topology: tpu7x:2x2x1
jax: 0.10.0
libtpu: 0.0.40
codegen_flags: <defaults>
</compile_context>

<pallas_src>
import functools

import numpy as np
import jax
import jax.numpy as jnp
from jax import lax
from jax.experimental import pallas as pl
from jax.experimental.pallas import tpu as pltpu

# Coarse-cell shift groups (sh, sw) for the 3x3 spatial-attention conv
# expressed in tap space.  Must be identical in make_params and the kernel.
SHIFTS = tuple((sh, sw) for sh in (-1, 0, 1) for sw in (-1, 0, 1))


def rfcbam_forward(x, params, *, kernel_size=3):
    """RFCBAMConv forward. x: (B, C, H, W) f32 -> (B, O, H, W) f32."""
    B, C, H, W = x.shape
    K = kernel_size
    K2 = K * K
    CK2 = C * K2
    pad = K // 2
    HW = H * W
    R = params["w_fc1_cr"].shape[1]              # SE hidden width
    O = params["w_conv_flat"].shape[0]           # out channels
    f32 = jnp.float32

    # lane padding of the stat slab: must cover +/-(W+1) shifts; round up to a
    # multiple of 128 so the in-kernel stores into the slab are lane-aligned.
    P = ((W + 1 + 127) // 128) * 128
    nshift = len(SHIFTS)

    # ---------------- wrapper-side (XLA) data staging: lane-dense im2col -----
    # xs[b, c*K2 + t, h*W + w] = x_pad[b, c, h + ty, w + tx],  t = ty*K + tx
    x_pad = jnp.pad(x, ((0, 0), (0, 0), (pad, pad), (pad, pad)))
    taps = []
    for ty in range(K):
        for tx in range(K):
            taps.append(x_pad[:, :, ty:ty + H, tx:tx + W].reshape(B, C, 1, HW))
    xs = jnp.concatenate(taps, axis=2).reshape(B, CK2, HW)
    x_flat = x.reshape(B, C, HW)

    # column-wrap masks for the sw = -1 / +1 shift groups (constants)
    col = np.arange(HW) % W
    cmask = jnp.asarray(np.stack([(col != 0), (col != W - 1)]).astype(np.float32))

    # ---------------- the fused kernel ---------------------------------------
    def kernel(xs_ref, x_ref, wgen_ref, bn1b_ref, fc1_ref, fc2e_ref,
               wsp_ref, cmask_ref, wconv_ref, bn2b_ref, out_ref,
               spad_ref, rfa_ref):
        hp = lax.Precision.HIGHEST

        # generate grouped conv as one block-diagonal matmul (BN1 scale folded)
        gen = jnp.dot(wgen_ref[...], xs_ref[0],
                      precision=hp, preferred_element_type=f32)          # (CK2, HW)
        gen = jnp.maximum(gen + bn1b_ref[...], 0.0)                      # BN bias + ReLU

        # SE channel attention (second FC pre-expanded to C*K2 rows)
        gap = jnp.mean(x_ref[0], axis=1, keepdims=True)                  # (C, 1)
        h1 = jnp.maximum(
            jnp.sum(fc1_ref[...] * gap, axis=0, keepdims=True), 0.0)     # (1, R)
        ca = jax.nn.sigmoid(
            jnp.sum(fc2e_ref[...] * h1, axis=1, keepdims=True))          # (CK2, 1)

        # cross-channel max / mean stats in tap space
        mx = gen[0:K2, :]
        sm = gen[0:K2, :]
        for c in range(1, C):
            g_c = gen[c * K2:(c + 1) * K2, :]
            mx = jnp.maximum(mx, g_c)
            sm = sm + g_c
        mn = sm * (1.0 / C)

        # 3x3 spatial-attention conv on the fine (H*K, W*K) grid, in tap space:
        # one dot with shift-grouped weights against a zero-padded stat slab,
        # then 9 static lane-shifted slices (+ column masks) are summed.
        spad_ref[...] = jnp.zeros_like(spad_ref)
        spad_ref[0:K2, P:P + HW] = mx
        spad_ref[K2:2 * K2, P:P + HW] = mn
        res = jnp.dot(wsp_ref[...], spad_ref[...],
                      precision=hp, preferred_element_type=f32)          # (9*K2, HW+2P)
        pre = jnp.zeros((K2, HW), f32)
        for g, (sh, sw) in enumerate(SHIFTS):
            d = sh * W + sw
            t = res[g * K2:(g + 1) * K2, P + d:P + d + HW]               # (K2, HW)
            if sw == -1:
                t = t * cmask_ref[0:1, :]
            elif sw == 1:
                t = t * cmask_ref[1:2, :]
            pre = pre + t
        rfa = jax.nn.sigmoid(pre)                                        # (K2, HW)
        for c in range(C):                                               # broadcast over channels
            rfa_ref[c * K2:(c + 1) * K2, :] = rfa

        # attentions + merged kxk/stride-k conv (single MXU dot, BN2 folded) + SiLU
        cd = gen * ca * rfa_ref[...]                                     # (CK2, HW)
        y = jnp.dot(wconv_ref[...], cd,
                    precision=hp, preferred_element_type=f32)            # (O, HW)
        y = y + bn2b_ref[...]
        out_ref[0] = y * jax.nn.sigmoid(y)

    # VMEM budget: double-buffered per-step blocks + params + scratch + headroom
    blk_bytes = 4 * (CK2 * HW + C * HW + O * HW)
    par_bytes = 4 * (CK2 * CK2 + CK2 + C * R + CK2 * R
                     + nshift * K2 * 2 * K2 + 2 * HW + O * CK2 + O)
    scr_bytes = 4 * (2 * K2 * (HW + 2 * P) + CK2 * HW)
    vmem_limit = int(2 * (blk_bytes + par_bytes) + scr_bytes + (8 << 20))

    out_flat = pl.pallas_call(
        kernel,
        out_shape=jax.ShapeDtypeStruct((B, O, HW), f32),
        grid=(B,),
        in_specs=[
            pl.BlockSpec((1, CK2, HW), lambda b: (b, 0, 0)),             # xs (im2col)
            pl.BlockSpec((1, C, HW), lambda b: (b, 0, 0)),               # x (for SE gap)
            pl.BlockSpec((CK2, CK2), lambda b: (0, 0)),                  # block-diag gen weights
            pl.BlockSpec((CK2, 1), lambda b: (0, 0)),                    # BN1 bias
            pl.BlockSpec((C, R), lambda b: (0, 0)),                      # SE fc1 (W1^T)
            pl.BlockSpec((CK2, R), lambda b: (0, 0)),                    # SE fc2 (row-expanded)
            pl.BlockSpec((nshift * K2, 2 * K2), lambda b: (0, 0)),       # spatial-attn tap weights
            pl.BlockSpec((2, HW), lambda b: (0, 0)),                     # column masks
            pl.BlockSpec((O, CK2), lambda b: (0, 0)),                    # merged conv weights
            pl.BlockSpec((O, 1), lambda b: (0, 0)),                      # BN2 bias
        ],
        out_specs=pl.BlockSpec((1, O, HW), lambda b: (b, 0, 0)),
        scratch_shapes=[
            pltpu.VMEM((2 * K2, HW + 2 * P), f32),                       # padded stat slab
            pltpu.VMEM((CK2, HW), f32),                                  # channel-tiled rfa
        ],
        compiler_params=pltpu.CompilerParams(
            # batch elements are independent; on v7x this shards across the 2 TCs
            dimension_semantics=(pltpu.PARALLEL,),
            vmem_limit_bytes=vmem_limit,
        ),
    )(xs, x_flat, params["w_gen_bd"], params["bn1_bias_k"], params["w_fc1_cr"],
      params["w_fc2_exp"], params["w_sp_taps"], cmask, params["w_conv_flat"],
      params["bn2_bias_k"])

    return out_flat.reshape(B, O, H, W)


def make_params(key, C, O, K, ratio=16):
    """Deterministic synthetic parameters matching RFCBAMConv's module shapes."""
    K2 = K * K
    CK2 = C * K2
    eps = 1e-5
    ks = jax.random.split(key, 10)
    w_gen_t = 0.3 * jax.random.normal(ks[0], (CK2, 1, K, K), jnp.float32)   # grouped conv (torch OIHW)
    w_fc1 = 0.3 * jax.random.normal(ks[1], (ratio, C), jnp.float32)         # Linear(C -> ratio)
    w_fc2 = 0.3 * jax.random.normal(ks[2], (C, ratio), jnp.float32)         # Linear(ratio -> C)
    w_sp_t = 0.3 * jax.random.normal(ks[3], (1, 2, 3, 3), jnp.float32)      # Conv2d(2 -> 1, 3x3)
    w_conv_t = 0.3 * jax.random.normal(ks[4], (O, C, K, K), jnp.float32)    # Conv(C -> O, kxk)
    g1 = 1.0 + 0.1 * jax.random.normal(ks[5], (CK2,), jnp.float32)
    b1 = 0.1 * jax.random.normal(ks[6], (CK2,), jnp.float32)
    m1 = 0.1 * jax.random.normal(ks[7], (CK2,), jnp.float32)
    v1 = 1.0 + 0.1 * jax.random.uniform(ks[8], (CK2,), jnp.float32)
    bn1_scale = g1 / jnp.sqrt(v1 + eps)
    bn1_bias = b1 - m1 * bn1_scale
    kk = jax.random.split(ks[9], 4)
    g2 = 1.0 + 0.1 * jax.random.normal(kk[0], (O,), jnp.float32)
    b2 = 0.1 * jax.random.normal(kk[1], (O,), jnp.float32)
    m2 = 0.1 * jax.random.normal(kk[2], (O,), jnp.float32)
    v2 = 1.0 + 0.1 * jax.random.uniform(kk[3], (O,), jnp.float32)
    bn2_scale = g2 / jnp.sqrt(v2 + eps)
    bn2_bias = b2 - m2 * bn2_scale

    # ---- kernel-friendly derived layouts (host-side numpy, computed once) ---
    wg = np.asarray(w_gen_t)
    s1 = np.asarray(bn1_scale)
    w_gen_bd = np.zeros((CK2, CK2), np.float32)          # block-diag, BN1 scale folded
    for c in range(C):
        for j in range(K2):
            row = c * K2 + j
            w_gen_bd[row, c * K2:(c + 1) * K2] = s1[row] * wg[row, 0].reshape(K2)

    # fine-grid 3x3 attention conv -> tap-space, grouped by coarse-cell shift
    wsp = np.asarray(w_sp_t)[0]                          # (2, 3, 3), ch 0 = max, 1 = mean
    w_sp_taps = np.zeros((len(SHIFTS) * K2, 2 * K2), np.float32)
    for n1 in range(K):
        for n2 in range(K):
            j_out = n1 * K + n2
            for dy in (-1, 0, 1):
                for dx in (-1, 0, 1):
                    v1_, v2_ = n1 + dy, n2 + dx
                    sh = -1 if v1_ < 0 else (1 if v1_ >= K else 0)
                    sw = -1 if v2_ < 0 else (1 if v2_ >= K else 0)
                    m1_, m2_ = v1_ - sh * K, v2_ - sw * K
                    g = SHIFTS.index((sh, sw))
                    for ch in range(2):
                        w_sp_taps[g * K2 + j_out, ch * K2 + m1_ * K + m2_] += wsp[ch, dy + 1, dx + 1]

    w_conv_flat = np.asarray(w_conv_t).reshape(O, CK2) * np.asarray(bn2_scale)[:, None]

    return {
        # Pallas-kernel layouts
        "w_gen_bd": jnp.asarray(w_gen_bd),
        "bn1_bias_k": jnp.asarray(np.asarray(bn1_bias).reshape(CK2, 1)),
        "w_fc1_cr": jnp.asarray(np.asarray(w_fc1).T),                          # (C, R)
        "w_fc2_exp": jnp.asarray(np.repeat(np.asarray(w_fc2), K2, axis=0)),    # (C*K2, R)
        "w_sp_taps": jnp.asarray(w_sp_taps),
        "w_conv_flat": jnp.asarray(w_conv_flat),
        "bn2_bias_k": jnp.asarray(np.asarray(bn2_bias).reshape(O, 1)),
        # torch-layout copies for the pure-JAX reference
        "w_gen_t": w_gen_t, "w_fc1": w_fc1, "w_fc2": w_fc2,
        "w_sp_t": w_sp_t, "w_conv_t": w_conv_t,
        "bn1_scale_f": bn1_scale, "bn1_bias_f": bn1_bias,
        "bn2_scale_f": bn2_scale, "bn2_bias_f": bn2_bias,
    }


def rfcbam_reference(x, p, kernel_size=3):
    """Pure-JAX (lax.conv) mirror of the PyTorch forward, for verification."""
    B, C, H, W = x.shape
    K = kernel_size
    hp = lax.Precision.HIGHEST
    # SE
    gap = jnp.mean(x, axis=(2, 3))
    h1 = jax.nn.relu(jnp.dot(gap, p["w_fc1"].T, precision=hp))
    ca = jax.nn.sigmoid(jnp.dot(h1, p["w_fc2"].T, precision=hp))[:, :, None, None]
    # generate (grouped conv) + BN + ReLU
    gen = lax.conv_general_dilated(
        x, p["w_gen_t"], (1, 1), ((K // 2, K // 2), (K // 2, K // 2)),
        feature_group_count=C, dimension_numbers=("NCHW", "OIHW", "NCHW"), precision=hp)
    gen = gen * p["bn1_scale_f"][None, :, None, None] + p["bn1_bias_f"][None, :, None, None]
    gen = jax.nn.relu(gen)
    # rearrange 'b c (n1 n2) h w -> b c (h n1) (w n2)'
    gen = gen.reshape(B, C, K, K, H, W).transpose(0, 1, 4, 2, 5, 3).reshape(B, C, H * K, W * K)
    unfold = gen * ca
    mx = jnp.max(gen, axis=1, keepdims=True)
    mn = jnp.mean(gen, axis=1, keepdims=True)
    rfa = jax.nn.sigmoid(lax.conv_general_dilated(
        jnp.concatenate([mx, mn], axis=1), p["w_sp_t"], (1, 1), ((1, 1), (1, 1)),
        dimension_numbers=("NCHW", "OIHW", "NCHW"), precision=hp))
    cd = unfold * rfa
    y = lax.conv_general_dilated(cd, p["w_conv_t"], (K, K), ((0, 0), (0, 0)),
                                 dimension_numbers=("NCHW", "OIHW", "NCHW"), precision=hp)
    y = y * p["bn2_scale_f"][None, :, None, None] + p["bn2_bias_f"][None, :, None, None]
    return y * jax.nn.sigmoid(y)


if __name__ == "__main__":
    B, C, O, H, W, K = 2, 4, 8, 16, 16, 3
    key = jax.random.PRNGKey(0)
    kx, kp = jax.random.split(key)
    x = jax.random.normal(kx, (B, C, H, W), jnp.float32)
    params = make_params(kp, C, O, K)

    fwd = jax.jit(functools.partial(rfcbam_forward, kernel_size=K))
    out = jax.block_until_ready(fwd(x, params))
    assert out.shape == (B, O, H, W), out.shape

    ref = jax.block_until_ready(rfcbam_reference(x, params, kernel_size=K))
    err = float(jnp.max(jnp.abs(out - ref)))
    assert err < 1e-2, f"max abs diff vs reference: {err}"

    print("KERNEL_OK")
</pallas_src>

<mosaic_0001>
module attributes {stable_mosaic.version = 11 : i64} {
  func.func @kernel(%arg0: i32, %arg1: memref<1x36x256xf32, #tpu.memory_space<vmem>>, %arg2: memref<1x4x256xf32, #tpu.memory_space<vmem>>, %arg3: memref<36x36xf32, #tpu.memory_space<vmem>>, %arg4: memref<36x1xf32, #tpu.memory_space<vmem>>, %arg5: memref<4x16xf32, #tpu.memory_space<vmem>>, %arg6: memref<36x16xf32, #tpu.memory_space<vmem>>, %arg7: memref<81x18xf32, #tpu.memory_space<vmem>>, %arg8: memref<2x256xf32, #tpu.memory_space<vmem>>, %arg9: memref<8x36xf32, #tpu.memory_space<vmem>>, %arg10: memref<8x1xf32, #tpu.memory_space<vmem>>, %arg11: memref<1x8x256xf32, #tpu.memory_space<vmem>>, %arg12: memref<18x512xf32, #tpu.memory_space<vmem>>, %arg13: memref<36x256xf32, #tpu.memory_space<vmem>>) attributes {dimension_semantics = [#tpu.dimension_semantics<parallel>], iteration_bounds = array<i64: 2>, scalar_prefetch = 0 : i64, scratch_operands = 2 : i64, tpu.core_type = #tpu.core_type<tc>, window_params = [{transform_indices = @transform_0, window_bounds = array<i64: 1, 36, 256>}, {transform_indices = @transform_1, window_bounds = array<i64: 1, 4, 256>}, {pipeline_mode = #tpu.pipeline_mode<synchronous>, transform_indices = @transform_2, window_bounds = array<i64: 36, 36>}, {pipeline_mode = #tpu.pipeline_mode<synchronous>, transform_indices = @transform_3, window_bounds = array<i64: 36, 1>}, {pipeline_mode = #tpu.pipeline_mode<synchronous>, transform_indices = @transform_4, window_bounds = array<i64: 4, 16>}, {pipeline_mode = #tpu.pipeline_mode<synchronous>, transform_indices = @transform_5, window_bounds = array<i64: 36, 16>}, {pipeline_mode = #tpu.pipeline_mode<synchronous>, transform_indices = @transform_6, window_bounds = array<i64: 81, 18>}, {pipeline_mode = #tpu.pipeline_mode<synchronous>, transform_indices = @transform_7, window_bounds = array<i64: 2, 256>}, {pipeline_mode = #tpu.pipeline_mode<synchronous>, transform_indices = @transform_8, window_bounds = array<i64: 8, 36>}, {pipeline_mode = #tpu.pipeline_mode<synchronous>, transform_indices = @transform_9, window_bounds = array<i64: 8, 1>}, {transform_indices = @transform_10, window_bounds = array<i64: 1, 8, 256>}]} {
    %c0 = arith.constant 0 : index
    %c0_0 = arith.constant 0 : index
    %0 = vector.load %arg3[%c0, %c0_0] : memref<36x36xf32, #tpu.memory_space<vmem>>, vector<36x36xf32>
    %c0_1 = arith.constant 0 : index
    %c0_2 = arith.constant 0 : index
    %c0_3 = arith.constant 0 : index
    %1 = vector.load %arg1[%c0_1, %c0_2, %c0_3] : memref<1x36x256xf32, #tpu.memory_space<vmem>>, vector<1x36x256xf32>
    %2 = vector.shape_cast %1 : vector<1x36x256xf32> to vector<36x256xf32>
    %cst = arith.constant dense<0.000000e+00> : vector<36x256xf32>
    %3 = tpu.matmul %0, %2, %cst {dimension_numbers = #tpu.dot_dimension_numbers<[1], [0], [0], [1], [0, 0, 1, 1], [], []>, precision = #tpu.contract_precision<fp32>} : vector<36x36xf32>, vector<36x256xf32>, vector<36x256xf32> -> vector<36x256xf32>
    %c0_4 = arith.constant 0 : index
    %c0_5 = arith.constant 0 : index
    %4 = vector.load %arg4[%c0_4, %c0_5] : memref<36x1xf32, #tpu.memory_space<vmem>>, vector<36x1xf32>
    %5 = vector.broadcast %4 : vector<36x1xf32> to vector<36x256xf32>
    %6 = arith.addf %3, %5 : vector<36x256xf32>
    %cst_6 = arith.constant 0.000000e+00 : f32
    %7 = vector.broadcast %cst_6 : f32 to vector<36x256xf32>
    %8 = arith.maximumf %6, %7 : vector<36x256xf32>
    %c0_7 = arith.constant 0 : index
    %c0_8 = arith.constant 0 : index
    %c0_9 = arith.constant 0 : index
    %9 = vector.load %arg2[%c0_7, %c0_8, %c0_9] : memref<1x4x256xf32, #tpu.memory_space<vmem>>, vector<1x4x256xf32>
    %10 = vector.shape_cast %9 : vector<1x4x256xf32> to vector<4x256xf32>
    %cst_10 = arith.constant dense<0.000000e+00> : vector<4xf32>
    %11 = vector.multi_reduction <add>, %10, %cst_10 [1] : vector<4x256xf32> to vector<4xf32>
    %12 = vector.shape_cast %11 : vector<4xf32> to vector<4x1xf32>
    %cst_11 = arith.constant 2.560000e+02 : f32
    %13 = vector.broadcast %cst_11 : f32 to vector<4x1xf32>
    %14 = arith.divf %12, %13 : vector<4x1xf32>
    %c0_12 = arith.constant 0 : index
    %c0_13 = arith.constant 0 : index
    %15 = vector.load %arg5[%c0_12, %c0_13] : memref<4x16xf32, #tpu.memory_space<vmem>>, vector<4x16xf32>
    %16 = vector.broadcast %14 : vector<4x1xf32> to vector<4x16xf32>
    %17 = arith.mulf %15, %16 : vector<4x16xf32>
    %cst_14 = arith.constant dense<0.000000e+00> : vector<16xf32>
    %18 = vector.multi_reduction <add>, %17, %cst_14 [0] : vector<4x16xf32> to vector<16xf32>
    %19 = vector.shape_cast %18 : vector<16xf32> to vector<1x16xf32>
    %cst_15 = arith.constant 0.000000e+00 : f32
    %20 = vector.broadcast %cst_15 : f32 to vector<1x16xf32>
    %21 = arith.maximumf %19, %20 : vector<1x16xf32>
    %c0_16 = arith.constant 0 : index
    %c0_17 = arith.constant 0 : index
    %22 = vector.load %arg6[%c0_16, %c0_17] : memref<36x16xf32, #tpu.memory_space<vmem>>, vector<36x16xf32>
    %23 = vector.broadcast %21 : vector<1x16xf32> to vector<36x16xf32>
    %24 = arith.mulf %22, %23 : vector<36x16xf32>
    %cst_18 = arith.constant dense<0.000000e+00> : vector<36xf32>
    %25 = vector.multi_reduction <add>, %24, %cst_18 [1] : vector<36x16xf32> to vector<36xf32>
    %26 = vector.shape_cast %25 : vector<36xf32> to vector<36x1xf32>
    %27 = arith.negf %26 : vector<36x1xf32>
    %28 = math.exp %27 : vector<36x1xf32>
    %cst_19 = arith.constant 1.000000e+00 : f32
    %29 = vector.broadcast %cst_19 : f32 to vector<36x1xf32>
    %30 = arith.addf %29, %28 : vector<36x1xf32>
    %31 = arith.divf %29, %30 : vector<36x1xf32>
    %32 = vector.extract_strided_slice %8 {offsets = [0, 0], sizes = [9, 256], strides = [1, 1]} : vector<36x256xf32> to vector<9x256xf32>
    %33 = vector.extract_strided_slice %8 {offsets = [0, 0], sizes = [9, 256], strides = [1, 1]} : vector<36x256xf32> to vector<9x256xf32>
    %34 = vector.extract_strided_slice %8 {offsets = [9, 0], sizes = [9, 256], strides = [1, 1]} : vector<36x256xf32> to vector<9x256xf32>
    %35 = arith.maximumf %32, %34 : vector<9x256xf32>
    %36 = arith.addf %33, %34 : vector<9x256xf32>
    %37 = vector.extract_strided_slice %8 {offsets = [18, 0], sizes = [9, 256], strides = [1, 1]} : vector<36x256xf32> to vector<9x256xf32>
    %38 = arith.maximumf %35, %37 : vector<9x256xf32>
    %39 = arith.addf %36, %37 : vector<9x256xf32>
    %40 = vector.extract_strided_slice %8 {offsets = [27, 0], sizes = [9, 256], strides = [1, 1]} : vector<36x256xf32> to vector<9x256xf32>
    %41 = arith.maximumf %38, %40 : vector<9x256xf32>
    %42 = arith.addf %39, %40 : vector<9x256xf32>
    %cst_20 = arith.constant 2.500000e-01 : f32
    %43 = vector.broadcast %cst_20 : f32 to vector<9x256xf32>
    %44 = arith.mulf %42, %43 : vector<9x256xf32>
    %cst_21 = arith.constant 0.000000e+00 : f32
    %45 = vector.broadcast %cst_21 : f32 to vector<18x512xf32>
    %c0_22 = arith.constant 0 : index
    %c0_23 = arith.constant 0 : index
    %46 = vector.load %arg12[%c0_22, %c0_23] : memref<18x512xf32, #tpu.memory_space<vmem>>, vector<18x512xf32>
    tpu.vector_store %arg12[%c0_22, %c0_23], %45 {strides = array<i32>} : memref<18x512xf32, #tpu.memory_space<vmem>>, vector<18x512xf32>,
    %c0_24 = arith.constant 0 : index
    %c128 = arith.constant 128 : index
    %47 = vector.load %arg12[%c0_24, %c128] : memref<18x512xf32, #tpu.memory_space<vmem>>, vector<9x256xf32>
    tpu.vector_store %arg12[%c0_24, %c128], %41 {strides = array<i32>} : memref<18x512xf32, #tpu.memory_space<vmem>>, vector<9x256xf32>,
    %c9 = arith.constant 9 : index
    %c128_25 = arith.constant 128 : index
    %48 = vector.load %arg12[%c9, %c128_25] : memref<18x512xf32, #tpu.memory_space<vmem>>, vector<9x256xf32>
    tpu.vector_store %arg12[%c9, %c128_25], %44 {strides = array<i32>} : memref<18x512xf32, #tpu.memory_space<vmem>>, vector<9x256xf32>,
    %c0_26 = arith.constant 0 : index
    %c0_27 = arith.constant 0 : index
    %49 = vector.load %arg7[%c0_26, %c0_27] : memref<81x18xf32, #tpu.memory_space<vmem>>, vector<81x18xf32>
    %c0_28 = arith.constant 0 : index
    %c0_29 = arith.constant 0 : index
    %50 = vector.load %arg12[%c0_28, %c0_29] : memref<18x512xf32, #tpu.memory_space<vmem>>, vector<18x512xf32>
    %cst_30 = arith.constant dense<0.000000e+00> : vector<81x512xf32>
    %51 = tpu.matmul %49, %50, %cst_30 {dimension_numbers = #tpu.dot_dimension_numbers<[1], [0], [0], [1], [0, 0, 1, 1], [], []>, precision = #tpu.contract_precision<fp32>} : vector<81x18xf32>, vector<18x512xf32>, vector<81x512xf32> -> vector<81x512xf32>
    %cst_31 = arith.constant 0.000000e+00 : f32
    %52 = vector.broadcast %cst_31 : f32 to vector<9x256xf32>
    %53 = vector.extract_strided_slice %51 {offsets = [0, 111], sizes = [9, 256], strides = [1, 1]} : vector<81x512xf32> to vector<9x256xf32>
    %c0_32 = arith.constant 0 : index
    %c0_33 = arith.constant 0 : index
    %54 = vector.load %arg8[%c0_32, %c0_33] : memref<2x256xf32, #tpu.memory_space<vmem>>, vector<1x256xf32>
    %55 = vector.broadcast %54 : vector<1x256xf32> to vector<9x256xf32>
    %56 = arith.mulf %53, %55 : vector<9x256xf32>
    %57 = arith.addf %52, %56 : vector<9x256xf32>
    %58 = vector.extract_strided_slice %51 {offsets = [9, 112], sizes = [9, 256], strides = [1, 1]} : vector<81x512xf32> to vector<9x256xf32>
    %59 = arith.addf %57, %58 : vector<9x256xf32>
    %60 = vector.extract_strided_slice %51 {offsets = [18, 113], sizes = [9, 256], strides = [1, 1]} : vector<81x512xf32> to vector<9x256xf32>
    %c1 = arith.constant 1 : index
    %c0_34 = arith.constant 0 : index
    %61 = vector.load %arg8[%c1, %c0_34] : memref<2x256xf32, #tpu.memory_space<vmem>>, vector<1x256xf32>
    %62 = vector.broadcast %61 : vector<1x256xf32> to vector<9x256xf32>
    %63 = arith.mulf %60, %62 : vector<9x256xf32>
    %64 = arith.addf %59, %63 : vector<9x256xf32>
    %65 = vector.extract_strided_slice %51 {offsets = [27, 127], sizes = [9, 256], strides = [1, 1]} : vector<81x512xf32> to vector<9x256xf32>
    %c0_35 = arith.constant 0 : index
    %c0_36 = arith.constant 0 : index
    %66 = vector.load %arg8[%c0_35, %c0_36] : memref<2x256xf32, #tpu.memory_space<vmem>>, vector<1x256xf32>
    %67 = vector.broadcast %66 : vector<1x256xf32> to vector<9x256xf32>
    %68 = arith.mulf %65, %67 : vector<9x256xf32>
    %69 = arith.addf %64, %68 : vector<9x256xf32>
    %70 = vector.extract_strided_slice %51 {offsets = [36, 128], sizes = [9, 256], strides = [1, 1]} : vector<81x512xf32> to vector<9x256xf32>
    %71 = arith.addf %69, %70 : vector<9x256xf32>
    %72 = vector.extract_strided_slice %51 {offsets = [45, 129], sizes = [9, 256], strides = [1, 1]} : vector<81x512xf32> to vector<9x256xf32>
    %c1_37 = arith.constant 1 : index
    %c0_38 = arith.constant 0 : index
    %73 = vector.load %arg8[%c1_37, %c0_38] : memref<2x256xf32, #tpu.memory_space<vmem>>, vector<1x256xf32>
    %74 = vector.broadcast %73 : vector<1x256xf32> to vector<9x256xf32>
    %75 = arith.mulf %72, %74 : vector<9x256xf32>
    %76 = arith.addf %71, %75 : vector<9x256xf32>
    %77 = vector.extract_strided_slice %51 {offsets = [54, 143], sizes = [9, 256], strides = [1, 1]} : vector<81x512xf32> to vector<9x256xf32>
    %c0_39 = arith.constant 0 : index
    %c0_40 = arith.constant 0 : index
    %78 = vector.load %arg8[%c0_39, %c0_40] : memref<2x256xf32, #tpu.memory_space<vmem>>, vector<1x256xf32>
    %79 = vector.broadcast %78 : vector<1x256xf32> to vector<9x256xf32>
    %80 = arith.mulf %77, %79 : vector<9x256xf32>
    %81 = arith.addf %76, %80 : vector<9x256xf32>
    %82 = vector.extract_strided_slice %51 {offsets = [63, 144], sizes = [9, 256], strides = [1, 1]} : vector<81x512xf32> to vector<9x256xf32>
    %83 = arith.addf %81, %82 : vector<9x256xf32>
    %84 = vector.extract_strided_slice %51 {offsets = [72, 145], sizes = [9, 256], strides = [1, 1]} : vector<81x512xf32> to vector<9x256xf32>
    %c1_41 = arith.constant 1 : index
    %c0_42 = arith.constant 0 : index
    %85 = vector.load %arg8[%c1_41, %c0_42] : memref<2x256xf32, #tpu.memory_space<vmem>>, vector<1x256xf32>
    %86 = vector.broadcast %85 : vector<1x256xf32> to vector<9x256xf32>
    %87 = arith.mulf %84, %86 : vector<9x256xf32>
    %88 = arith.addf %83, %87 : vector<9x256xf32>
    %89 = arith.negf %88 : vector<9x256xf32>
    %90 = math.exp %89 : vector<9x256xf32>
    %cst_43 = arith.constant 1.000000e+00 : f32
    %91 = vector.broadcast %cst_43 : f32 to vector<9x256xf32>
    %92 = arith.addf %91, %90 : vector<9x256xf32>
    %93 = arith.divf %91, %92 : vector<9x256xf32>
    %c0_44 = arith.constant 0 : index
    %c0_45 = arith.constant 0 : index
    %94 = vector.load %arg13[%c0_44, %c0_45] : memref<36x256xf32, #tpu.memory_space<vmem>>, vector<9x256xf32>
    tpu.vector_store %arg13[%c0_44, %c0_45], %93 {strides = array<i32>} : memref<36x256xf32, #tpu.memory_space<vmem>>, vector<9x256xf32>,
    %c9_46 = arith.constant 9 : index
    %c0_47 = arith.constant 0 : index
    %95 = vector.load %arg13[%c9_46, %c0_47] : memref<36x256xf32, #tpu.memory_space<vmem>>, vector<9x256xf32>
    tpu.vector_store %arg13[%c9_46, %c0_47], %93 {strides = array<i32>} : memref<36x256xf32, #tpu.memory_space<vmem>>, vector<9x256xf32>,
    %c18 = arith.constant 18 : index
    %c0_48 = arith.constant 0 : index
    %96 = vector.load %arg13[%c18, %c0_48] : memref<36x256xf32, #tpu.memory_space<vmem>>, vector<9x256xf32>
    tpu.vector_store %arg13[%c18, %c0_48], %93 {strides = array<i32>} : memref<36x256xf32, #tpu.memory_space<vmem>>, vector<9x256xf32>,
    %c27 = arith.constant 27 : index
    %c0_49 = arith.constant 0 : index
    %97 = vector.load %arg13[%c27, %c0_49] : memref<36x256xf32, #tpu.memory_space<vmem>>, vector<9x256xf32>
    tpu.vector_store %arg13[%c27, %c0_49], %93 {strides = array<i32>} : memref<36x256xf32, #tpu.memory_space<vmem>>, vector<9x256xf32>,
    %98 = vector.broadcast %31 : vector<36x1xf32> to vector<36x256xf32>
    %99 = arith.mulf %8, %98 : vector<36x256xf32>
    %c0_50 = arith.constant 0 : index
    %c0_51 = arith.constant 0 : index
    %100 = vector.load %arg13[%c0_50, %c0_51] : memref<36x256xf32, #tpu.memory_space<vmem>>, vector<36x256xf32>
    %101 = arith.mulf %99, %100 : vector<36x256xf32>
    %c0_52 = arith.constant 0 : index
    %c0_53 = arith.constant 0 : index
    %102 = vector.load %arg9[%c0_52, %c0_53] : memref<8x36xf32, #tpu.memory_space<vmem>>, vector<8x36xf32>
    %cst_54 = arith.constant dense<0.000000e+00> : vector<8x256xf32>
    %103 = tpu.matmul %102, %101, %cst_54 {dimension_numbers = #tpu.dot_dimension_numbers<[1], [0], [0], [1], [0, 0, 1, 1], [], []>, precision = #tpu.contract_precision<fp32>} : vector<8x36xf32>, vector<36x256xf32>, vector<8x256xf32> -> vector<8x256xf32>
    %c0_55 = arith.constant 0 : index
    %c0_56 = arith.constant 0 : index
    %104 = vector.load %arg10[%c0_55, %c0_56] : memref<8x1xf32, #tpu.memory_space<vmem>>, vector<8x1xf32>
    %105 = vector.broadcast %104 : vector<8x1xf32> to vector<8x256xf32>
    %106 = arith.addf %103, %105 : vector<8x256xf32>
    %107 = arith.negf %106 : vector<8x256xf32>
    %108 = math.exp %107 : vector<8x256xf32>
    %cst_57 = arith.constant 1.000000e+00 : f32
    %109 = vector.broadcast %cst_57 : f32 to vector<8x256xf32>
    %110 = arith.addf %109, %108 : vector<8x256xf32>
    %111 = arith.divf %109, %110 : vector<8x256xf32>
    %112 = arith.mulf %106, %111 : vector<8x256xf32>
    %c0_58 = arith.constant 0 : index
    %c0_59 = arith.constant 0 : index
    %c0_60 = arith.constant 0 : index
    %113 = vector.load %arg11[%c0_58, %c0_59, %c0_60] : memref<1x8x256xf32, #tpu.memory_space<vmem>>, vector<1x8x256xf32>
    %114 = vector.shape_cast %113 : vector<1x8x256xf32> to vector<8x256xf32>
    %115 = vector.shape_cast %112 : vector<8x256xf32> to vector<1x8x256xf32>
    tpu.vector_store %arg11[%c0_58, %c0_59, %c0_60], %115 {strides = array<i32>} : memref<1x8x256xf32, #tpu.memory_space<vmem>>, vector<1x8x256xf32>,
    return
  }
  func.func @transform_0(%arg0: i32) -> (i32, i32, i32) {
    %c0_i32 = arith.constant 0 : i32
    %c0_i32_0 = arith.constant 0 : i32
    %c0_i32_1 = arith.constant 0 : i32
    return %arg0, %c0_i32, %c0_i32_0 : i32, i32, i32
  }
  func.func @transform_1(%arg0: i32) -> (i32, i32, i32) {
    %c0_i32 = arith.constant 0 : i32
    %c0_i32_0 = arith.constant 0 : i32
    %c0_i32_1 = arith.constant 0 : i32
    return %arg0, %c0_i32, %c0_i32_0 : i32, i32, i32
  }
  func.func @transform_2(%arg0: i32) -> (i32, i32) {
    %c0_i32 = arith.constant 0 : i32
    %c0_i32_0 = arith.constant 0 : i32
    %c0_i32_1 = arith.constant 0 : i32
    return %c0_i32, %c0_i32_0 : i32, i32
  }
  func.func @transform_3(%arg0: i32) -> (i32, i32) {
    %c0_i32 = arith.constant 0 : i32
    %c0_i32_0 = arith.constant 0 : i32
    %c0_i32_1 = arith.constant 0 : i32
    return %c0_i32, %c0_i32_0 : i32, i32
  }
  func.func @transform_4(%arg0: i32) -> (i32, i32) {
    %c0_i32 = arith.constant 0 : i32
    %c0_i32_0 = arith.constant 0 : i32
    %c0_i32_1 = arith.constant 0 : i32
    return %c0_i32, %c0_i32_0 : i32, i32
  }
  func.func @transform_5(%arg0: i32) -> (i32, i32) {
    %c0_i32 = arith.constant 0 : i32
    %c0_i32_0 = arith.constant 0 : i32
    %c0_i32_1 = arith.constant 0 : i32
    return %c0_i32, %c0_i32_0 : i32, i32
  }
  func.func @transform_6(%arg0: i32) -> (i32, i32) {
    %c0_i32 = arith.constant 0 : i32
    %c0_i32_0 = arith.constant 0 : i32
    %c0_i32_1 = arith.constant 0 : i32
    return %c0_i32, %c0_i32_0 : i32, i32
  }
  func.func @transform_7(%arg0: i32) -> (i32, i32) {
    %c0_i32 = arith.constant 0 : i32
    %c0_i32_0 = arith.constant 0 : i32
    %c0_i32_1 = arith.constant 0 : i32
    return %c0_i32, %c0_i32_0 : i32, i32
  }
  func.func @transform_8(%arg0: i32) -> (i32, i32) {
    %c0_i32 = arith.constant 0 : i32
    %c0_i32_0 = arith.constant 0 : i32
    %c0_i32_1 = arith.constant 0 : i32
    return %c0_i32, %c0_i32_0 : i32, i32
  }
  func.func @transform_9(%arg0: i32) -> (i32, i32) {
    %c0_i32 = arith.constant 0 : i32
    %c0_i32_0 = arith.constant 0 : i32
    %c0_i32_1 = arith.constant 0 : i32
    return %c0_i32, %c0_i32_0 : i32, i32
  }
  func.func @transform_10(%arg0: i32) -> (i32, i32, i32) {
    %c0_i32 = arith.constant 0 : i32
    %c0_i32_0 = arith.constant 0 : i32
    %c0_i32_1 = arith.constant 0 : i32
    return %arg0, %c0_i32, %c0_i32_0 : i32, i32, i32
  }
}

</mosaic_0001>

<llo_original>
// kernel: rfcbam_forward.1
$region0: #{rfcbam_forward.1}
  #allocation0 [shape = 'u32[]', space=smem, size = 0x4, offset = 0x4, fixed_abs, tag = 'smem constant byte address 0x4 - core index']
  #allocation1 [shape = 'u32[144,128]{1,0:T(1,128)}', space=vmem, size = 0x12000, scoped, tag = 'internal scratch']
  #allocation2 [shape = 'f32[18,512]{1,0:T(8,128)}', space=vmem, size = 0xc000, scoped, tag = 'scratch operand']
  #allocation3 [shape = 'f32[36,256]{1,0:T(8,128)}', space=vmem, size = 0xa000, scoped, tag = 'scratch operand']
  %s0 = inlined_call_operand.vmem [shape: f32[2,36,256], index: 0, kind: input, shape index: {}]
  %s1 = inlined_call_operand.vmem [shape: f32[2,4,256], index: 1, kind: input, shape index: {}]
  %s2 = inlined_call_operand.vmem [shape: f32[36,36], index: 2, kind: input, shape index: {}]
  %s3 = inlined_call_operand.vmem [shape: f32[36,1], index: 3, kind: input, shape index: {}]
  %s4 = inlined_call_operand.vmem [shape: f32[4,16], index: 4, kind: input, shape index: {}]
  %s5 = inlined_call_operand.vmem [shape: f32[36,16], index: 5, kind: input, shape index: {}]
  %s6 = inlined_call_operand.vmem [shape: f32[81,18], index: 6, kind: input, shape index: {}]
  %s7 = inlined_call_operand.vmem [shape: f32[2,256], index: 7, kind: input, shape index: {}]
  %s8 = inlined_call_operand.vmem [shape: f32[8,36], index: 8, kind: input, shape index: {}]
  %s9 = inlined_call_operand.vmem [shape: f32[8,1], index: 9, kind: input, shape index: {}]
  %s10 = inlined_call_operand.vmem [shape: f32[2,8,256], index: 10, kind: output, shape index: {}]
  %s11 = sld [smem:[#allocation0]]
  $region73: #{rfcbam_forward.1} parent=0
    _
  %s13 = ssub.s32 1, %s11
  %s14 = scalar_select 0, %s13, %s11
  loop: start=0, step=1, limit=4
  $region2: #{rfcbam_forward.1} parent=0 // loop_pre_header
    _
  $region3: #{rfcbam_forward.1} parent=0 // loop_header
    %s16 = sphi 0, %s20
    %p17 = scmp.ge.s32.totalorder %s16, 4
    %s26 = sphi 0, %s28
    %s29 = sphi 0, %s26
    %s30 = sphi 0, %s29
    %s46 = sphi 0, %s30
    %s52 = sphi 0, %s54
    %s55 = sphi 0, %s52
    %s56 = sphi 0, %s55
    %s72 = sphi 0, %s56
    %s76 = sphi 0, %s76
    %s78 = sphi 0, %s76
    %s79 = sphi 0, %s78
    %s93 = sphi 0, %s79
    %s97 = sphi 0, %s97
    %s99 = sphi 0, %s97
    %s100 = sphi 0, %s99
    %s114 = sphi 0, %s100
    %s118 = sphi 0, %s118
    %s120 = sphi 0, %s118
    %s121 = sphi 0, %s120
    %s135 = sphi 0, %s121
    %s139 = sphi 0, %s139
    %s141 = sphi 0, %s139
    %s142 = sphi 0, %s141
    %s156 = sphi 0, %s142
    %s160 = sphi 0, %s160
    %s162 = sphi 0, %s160
    %s163 = sphi 0, %s162
    %s177 = sphi 0, %s163
    %s181 = sphi 0, %s181
    %s183 = sphi 0, %s181
    %s184 = sphi 0, %s183
    %s198 = sphi 0, %s184
    %s202 = sphi 0, %s202
    %s204 = sphi 0, %s202
    %s205 = sphi 0, %s204
    %s219 = sphi 0, %s205
    %s223 = sphi 0, %s223
    %s225 = sphi 0, %s223
    %s226 = sphi 0, %s225
    %s240 = sphi 0, %s226
    %s246 = sphi 0, %s248
    %s249 = sphi 0, %s246
    %s250 = sphi 0, %s249
    %s266 = sphi 0, %s250
  $region4: #{rfcbam_forward.1} parent=0 // loop_header_branch
    %19 = sbr.rel (%p17) target = $region8
  $region5: #{rfcbam_forward.1} parent=0 // loop_body
    %s21 = ssub.s32 %s16, 1
    %s22 = ssub.s32 %s16, 2
    %s23 = sadd.s32 %s16, 1
    %s24 = ssub.s32 %s16, %s23
    %p25 = scmp.eq.s32.totalorder %s24, 0
    %s27 = sadd.s32 %s26, 1
    %s28 = scalar_select %p25, %s26, %s27
    %p31 = pneg %p25
    %p32 = scmp.eq.s32.totalorder %s16, 1
    %p33 = por %p31, %p32
    %p34 = scmp.ne.s32.totalorder %s26, %s29
    %p35 = scmp.eq.s32.totalorder %s16, 0
    %p36 = por %p34, %p35
    %p37 = scmp.ne.s32.totalorder %s26, %s29
    %p38 = scmp.eq.s32.totalorder %s21, 1
    %p39 = por %p37, %p38
    %p40 = scmp.ne.s32.totalorder %s29, %s30
    %p41 = scmp.eq.s32.totalorder %s21, 0
    %p42 = por %p40, %p41
    %p43 = scmp.ne.s32.totalorder %s29, %s30
    %p44 = scmp.eq.s32.totalorder %s22, 1
    %p45 = por %p43, %p44
    %p47 = scmp.ne.s32.totalorder %s30, %s46
    %p48 = scmp.eq.s32.totalorder %s22, 0
    %p49 = por %p47, %p48
    %s50 = ssub.s32 %s16, %s23
    %p51 = scmp.eq.s32.totalorder %s50, 0
    %s53 = sadd.s32 %s52, 1
    %s54 = scalar_select %p51, %s52, %s53
    %p57 = pneg %p51
    %p58 = scmp.eq.s32.totalorder %s16, 1
    %p59 = por %p57, %p58
    %p60 = scmp.ne.s32.totalorder %s52, %s55
    %p61 = scmp.eq.s32.totalorder %s16, 0
    %p62 = por %p60, %p61
    %p63 = scmp.ne.s32.totalorder %s52, %s55
    %p64 = scmp.eq.s32.totalorder %s21, 1
    %p65 = por %p63, %p64
    %p66 = scmp.ne.s32.totalorder %s55, %s56
    %p67 = scmp.eq.s32.totalorder %s21, 0
    %p68 = por %p66, %p67
    %p69 = scmp.ne.s32.totalorder %s55, %s56
    %p70 = scmp.eq.s32.totalorder %s22, 1
    %p71 = por %p69, %p70
    %p73 = scmp.ne.s32.totalorder %s56, %s72
    %p74 = scmp.eq.s32.totalorder %s22, 0
    %p75 = por %p73, %p74
    %s77 = sadd.s32 %s76, 1
    %p80 = scmp.eq.s32.totalorder %s16, 1
    %p81 = scmp.ne.s32.totalorder %s76, %s78
    %p82 = scmp.eq.s32.totalorder %s16, 0
    %p83 = por %p81, %p82
    %p84 = scmp.ne.s32.totalorder %s76, %s78
    %p85 = scmp.eq.s32.totalorder %s21, 1
    %p86 = por %p84, %p85
    %p87 = scmp.ne.s32.totalorder %s78, %s79
    %p88 = scmp.eq.s32.totalorder %s21, 0
    %p89 = por %p87, %p88
    %p90 = scmp.ne.s32.totalorder %s78, %s79
    %p91 = scmp.eq.s32.totalorder %s22, 1
    %p92 = por %p90, %p91
    %p94 = scmp.ne.s32.totalorder %s79, %s93
    %p95 = scmp.eq.s32.totalorder %s22, 0
    %p96 = por %p94, %p95
    %s98 = sadd.s32 %s97, 1
    %p101 = scmp.eq.s32.totalorder %s16, 1
    %p102 = scmp.ne.s32.totalorder %s97, %s99
    %p103 = scmp.eq.s32.totalorder %s16, 0
    %p104 = por %p102, %p103
    %p105 = scmp.ne.s32.totalorder %s97, %s99
    %p106 = scmp.eq.s32.totalorder %s21, 1
    %p107 = por %p105, %p106
    %p108 = scmp.ne.s32.totalorder %s99, %s100
    %p109 = scmp.eq.s32.totalorder %s21, 0
    %p110 = por %p108, %p109
    %p111 = scmp.ne.s32.totalorder %s99, %s100
    %p112 = scmp.eq.s32.totalorder %s22, 1
    %p113 = por %p111, %p112
    %p115 = scmp.ne.s32.totalorder %s100, %s114
    %p116 = scmp.eq.s32.totalorder %s22, 0
    %p117 = por %p115, %p116
    %s119 = sadd.s32 %s118, 1
    %p122 = scmp.eq.s32.totalorder %s16, 1
    %p123 = scmp.ne.s32.totalorder %s118, %s120
    %p124 = scmp.eq.s32.totalorder %s16, 0
    %p125 = por %p123, %p124
    %p126 = scmp.ne.s32.totalorder %s118, %s120
    %p127 = scmp.eq.s32.totalorder %s21, 1
    %p128 = por %p126, %p127
    %p129 = scmp.ne.s32.totalorder %s120, %s121
    %p130 = scmp.eq.s32.totalorder %s21, 0
    %p131 = por %p129, %p130
    %p132 = scmp.ne.s32.totalorder %s120, %s121
    %p133 = scmp.eq.s32.totalorder %s22, 1
    %p134 = por %p132, %p133
    %p136 = scmp.ne.s32.totalorder %s121, %s135
    %p137 = scmp.eq.s32.totalorder %s22, 0
    %p138 = por %p136, %p137
    %s140 = sadd.s32 %s139, 1
    %p143 = scmp.eq.s32.totalorder %s16, 1
    %p144 = scmp.ne.s32.totalorder %s139, %s141
    %p145 = scmp.eq.s32.totalorder %s16, 0
    %p146 = por %p144, %p145
    %p147 = scmp.ne.s32.totalorder %s139, %s141
    %p148 = scmp.eq.s32.totalorder %s21, 1
    %p149 = por %p147, %p148
    %p150 = scmp.ne.s32.totalorder %s141, %s142
    %p151 = scmp.eq.s32.totalorder %s21, 0
    %p152 = por %p150, %p151
    %p153 = scmp.ne.s32.totalorder %s141, %s142
    %p154 = scmp.eq.s32.totalorder %s22, 1
    %p155 = por %p153, %p154
    %p157 = scmp.ne.s32.totalorder %s142, %s156
    %p158 = scmp.eq.s32.totalorder %s22, 0
    %p159 = por %p157, %p158
    %s161 = sadd.s32 %s160, 1
    %p164 = scmp.eq.s32.totalorder %s16, 1
    %p165 = scmp.ne.s32.totalorder %s160, %s162
    %p166 = scmp.eq.s32.totalorder %s16, 0
    %p167 = por %p165, %p166
    %p168 = scmp.ne.s32.totalorder %s160, %s162
    %p169 = scmp.eq.s32.totalorder %s21, 1
    %p170 = por %p168, %p169
    %p171 = scmp.ne.s32.totalorder %s162, %s163
    %p172 = scmp.eq.s32.totalorder %s21, 0
    %p173 = por %p171, %p172
    %p174 = scmp.ne.s32.totalorder %s162, %s163
    %p175 = scmp.eq.s32.totalorder %s22, 1
    %p176 = por %p174, %p175
    %p178 = scmp.ne.s32.totalorder %s163, %s177
    %p179 = scmp.eq.s32.totalorder %s22, 0
    %p180 = por %p178, %p179
    %s182 = sadd.s32 %s181, 1
    %p185 = scmp.eq.s32.totalorder %s16, 1
    %p186 = scmp.ne.s32.totalorder %s181, %s183
    %p187 = scmp.eq.s32.totalorder %s16, 0
    %p188 = por %p186, %p187
    %p189 = scmp.ne.s32.totalorder %s181, %s183
    %p190 = scmp.eq.s32.totalorder %s21, 1
    %p191 = por %p189, %p190
    %p192 = scmp.ne.s32.totalorder %s183, %s184
    %p193 = scmp.eq.s32.totalorder %s21, 0
    %p194 = por %p192, %p193
    %p195 = scmp.ne.s32.totalorder %s183, %s184
    %p196 = scmp.eq.s32.totalorder %s22, 1
    %p197 = por %p195, %p196
    %p199 = scmp.ne.s32.totalorder %s184, %s198
    %p200 = scmp.eq.s32.totalorder %s22, 0
    %p201 = por %p199, %p200
    %s203 = sadd.s32 %s202, 1
    %p206 = scmp.eq.s32.totalorder %s16, 1
    %p207 = scmp.ne.s32.totalorder %s202, %s204
    %p208 = scmp.eq.s32.totalorder %s16, 0
    %p209 = por %p207, %p208
    %p210 = scmp.ne.s32.totalorder %s202, %s204
    %p211 = scmp.eq.s32.totalorder %s21, 1
    %p212 = por %p210, %p211
    %p213 = scmp.ne.s32.totalorder %s204, %s205
    %p214 = scmp.eq.s32.totalorder %s21, 0
    %p215 = por %p213, %p214
    %p216 = scmp.ne.s32.totalorder %s204, %s205
    %p217 = scmp.eq.s32.totalorder %s22, 1
    %p218 = por %p216, %p217
    %p220 = scmp.ne.s32.totalorder %s205, %s219
    %p221 = scmp.eq.s32.totalorder %s22, 0
    %p222 = por %p220, %p221
    %s224 = sadd.s32 %s223, 1
    %p227 = scmp.eq.s32.totalorder %s16, 1
    %p228 = scmp.ne.s32.totalorder %s223, %s225
    %p229 = scmp.eq.s32.totalorder %s16, 0
    %p230 = por %p228, %p229
    %p231 = scmp.ne.s32.totalorder %s223, %s225
    %p232 = scmp.eq.s32.totalorder %s21, 1
    %p233 = por %p231, %p232
    %p234 = scmp.ne.s32.totalorder %s225, %s226
    %p235 = scmp.eq.s32.totalorder %s21, 0
    %p236 = por %p234, %p235
    %p237 = scmp.ne.s32.totalorder %s225, %s226
    %p238 = scmp.eq.s32.totalorder %s22, 1
    %p239 = por %p237, %p238
    %p241 = scmp.ne.s32.totalorder %s226, %s240
    %p242 = scmp.eq.s32.totalorder %s22, 0
    %p243 = por %p241, %p242
    %s244 = ssub.s32 %s16, %s23
    %p245 = scmp.eq.s32.totalorder %s244, 0
    %s247 = sadd.s32 %s246, 1
    %s248 = scalar_select %p245, %s246, %s247
    %p251 = pneg %p245
    %p252 = scmp.eq.s32.totalorder %s16, 1
    %p253 = por %p251, %p252
    %p254 = scmp.ne.s32.totalorder %s246, %s249
    %p255 = scmp.eq.s32.totalorder %s16, 0
    %p256 = por %p254, %p255
    %p257 = scmp.ne.s32.totalorder %s246, %s249
    %p258 = scmp.eq.s32.totalorder %s21, 1
    %p259 = por %p257, %p258
    %p260 = scmp.ne.s32.totalorder %s249, %s250
    %p261 = scmp.eq.s32.totalorder %s21, 0
    %p262 = por %p260, %p261
    %p263 = scmp.ne.s32.totalorder %s249, %s250
    %p264 = scmp.eq.s32.totalorder %s22, 1
    %p265 = por %p263, %p264
    %p267 = scmp.ne.s32.totalorder %s250, %s266
    %p268 = scmp.eq.s32.totalorder %s22, 0
    %p269 = por %p267, %p268
    %p270 = scmp.le.s32.totalorder 1, %s16
    %p271 = scmp.lt.s32.totalorder %s16, 3
    %p272 = pnand %p270, %p271
    %p273 = pneg %p272
    // Predicated region
    $region9: #{rfcbam_forward.1} parent=5 // pred_check
      _
    $region10: #{rfcbam_forward.1} parent=5 // pred_check_branch
      %275 = sbr.rel (%p272) target = $region12
    $region11: #{rfcbam_forward.1} parent=5 // pred_region
      %s276 = ssub.s32 %s16, 1
      // Predicated region
      $region13: #{rfcbam_forward.1} parent=11 // pred_check
        %p277 = pneg %p89
      $region14: #{rfcbam_forward.1} parent=11 // pred_check_branch
        %279 = sbr.rel (%p277) target = $region16
      $region15: #{rfcbam_forward.1} parent=11 // pred_region
        _
      $region16: #{rfcbam_forward.1} parent=11 // pred_fallthru
        _
      // Predicated region
      $region17: #{rfcbam_forward.1} parent=11 // pred_check
        %p280 = pneg %p110
      $region18: #{rfcbam_forward.1} parent=11 // pred_check_branch
        %282 = sbr.rel (%p280) target = $region20
      $region19: #{rfcbam_forward.1} parent=11 // pred_region
        _
      $region20: #{rfcbam_forward.1} parent=11 // pred_fallthru
        _
      // Predicated region
      $region21: #{rfcbam_forward.1} parent=11 // pred_check
        %p283 = pneg %p131
      $region22: #{rfcbam_forward.1} parent=11 // pred_check_branch
        %285 = sbr.rel (%p283) target = $region24
      $region23: #{rfcbam_forward.1} parent=11 // pred_region
        _
      $region24: #{rfcbam_forward.1} parent=11 // pred_fallthru
        _
      // Predicated region
      $region25: #{rfcbam_forward.1} parent=11 // pred_check
        %p286 = pneg %p152
      $region26: #{rfcbam_forward.1} parent=11 // pred_check_branch
        %288 = sbr.rel (%p286) target = $region28
      $region27: #{rfcbam_forward.1} parent=11 // pred_region
        _
      $region28: #{rfcbam_forward.1} parent=11 // pred_fallthru
        _
      // Predicated region
      $region29: #{rfcbam_forward.1} parent=11 // pred_check
        %p289 = pneg %p173
      $region30: #{rfcbam_forward.1} parent=11 // pred_check_branch
        %291 = sbr.rel (%p289) target = $region32
      $region31: #{rfcbam_forward.1} parent=11 // pred_region
        _
      $region32: #{rfcbam_forward.1} parent=11 // pred_fallthru
        _
      // Predicated region
      $region33: #{rfcbam_forward.1} parent=11 // pred_check
        %p292 = pneg %p194
      $region34: #{rfcbam_forward.1} parent=11 // pred_check_branch
        %294 = sbr.rel (%p292) target = $region36
      $region35: #{rfcbam_forward.1} parent=11 // pred_region
        _
      $region36: #{rfcbam_forward.1} parent=11 // pred_fallthru
        _
      // Predicated region
      $region37: #{rfcbam_forward.1} parent=11 // pred_check
        %p295 = pneg %p215
      $region38: #{rfcbam_forward.1} parent=11 // pred_check_branch
        %297 = sbr.rel (%p295) target = $region40
      $region39: #{rfcbam_forward.1} parent=11 // pred_region
        _
      $region40: #{rfcbam_forward.1} parent=11 // pred_fallthru
        _
      // Predicated region
      $region41: #{rfcbam_forward.1} parent=11 // pred_check
        %p298 = pneg %p236
      $region42: #{rfcbam_forward.1} parent=11 // pred_check_branch
        %300 = sbr.rel (%p298) target = $region44
      $region43: #{rfcbam_forward.1} parent=11 // pred_region
        _
      $region44: #{rfcbam_forward.1} parent=11 // pred_fallthru
        _
    $region12: #{rfcbam_forward.1} parent=5 // pred_fallthru
      _
    %p301 = scmp.lt.s32.totalorder %s16, 2
    // Predicated region
    $region45: #{rfcbam_forward.1} parent=5 // pred_check
      %p302 = pneg %p301
    $region46: #{rfcbam_forward.1} parent=5 // pred_check_branch
      %304 = sbr.rel (%p302) target = $region48
    $region47: #{rfcbam_forward.1} parent=5 // pred_region
      // Predicated region
      $region49: #{rfcbam_forward.1} parent=47 // pred_check
        %p305 = pneg %p36
      $region50: #{rfcbam_forward.1} parent=47 // pred_check_branch
        %307 = sbr.rel (%p305) target = $region52
      $region51: #{rfcbam_forward.1} parent=47 // pred_region
        %p308 = scmp.lt.s32.totalorder %s16, 1
        %s309 = scalar_select %p308, %s16, 1
        %s310 = smul.addr %s309, 10
        %s311 = smul.addr %s310, 8
        %s312 = scalar_lea.vmem %s0, %s311
      $region52: #{rfcbam_forward.1} parent=47 // pred_fallthru
        _
      // Predicated region
      $region53: #{rfcbam_forward.1} parent=47 // pred_check
        %p313 = pneg %p62
      $region54: #{rfcbam_forward.1} parent=47 // pred_check_branch
        %315 = sbr.rel (%p313) target = $region56
      $region55: #{rfcbam_forward.1} parent=47 // pred_region
        %p316 = scmp.lt.s32.totalorder %s16, 1
        %s317 = scalar_select %p316, %s16, 1
        %s318 = smul.addr %s317, 2
        %s319 = smul.addr %s318, 4
        %s320 = scalar_lea.vmem %s1, %s319
      $region56: #{rfcbam_forward.1} parent=47 // pred_fallthru
        _
    $region48: #{rfcbam_forward.1} parent=5 // pred_fallthru
      _
    %p321 = scmp.le.s32.totalorder 1, %s16
    %p322 = scmp.lt.s32.totalorder %s16, 3
    %p323 = pnand %p321, %p322
    %p324 = pneg %p323
    // Predicated region
    $region57: #{rfcbam_forward.1} parent=5 // pred_check
      _
    $region58: #{rfcbam_forward.1} parent=5 // pred_check_branch
      %326 = sbr.rel (%p323) target = $region60
    $region59: #{rfcbam_forward.1} parent=5 // pred_region
      %s327 = ssub.s32 %s16, 1
      %p328 = scmp.lt.s32.totalorder %s21, 1
      %s329 = scalar_select %p328, %s21, 1
      %s330 = smul.addr %s329, 10
      %s331 = smul.addr %s330, 8
      %s332 = scalar_lea.vmem %s0, %s331
      %p333 = pneg %p42
      %p334 = pneg %p39
      %p335 = scmp.lt.s32.totalorder %s21, 1
      %s336 = scalar_select %p335, %s21, 1
      %s337 = smul.addr %s336, 2
      %s338 = smul.addr %s337, 4
      %s339 = scalar_lea.vmem %s1, %s338
      %p340 = pneg %p68
      %p341 = pneg %p65
      %p342 = pneg %p89
      %p343 = pneg %p86
      %p344 = pneg %p110
      %p345 = pneg %p107
      %p346 = pneg %p131
      %p347 = pneg %p128
      %p348 = pneg %p152
      %p349 = pneg %p149
      %p350 = pneg %p173
      %p351 = pneg %p170
      %p352 = pneg %p194
      %p353 = pneg %p191
      %p354 = pneg %p215
      %p355 = pneg %p212
      %p356 = pneg %p236
      %p357 = pneg %p233
      %p358 = pneg %p262
      %p359 = pneg %p259
      %p360 = scmp.lt.s32.totalorder %s21, 1
      %s361 = scalar_select %p360, %s21, 1
      %s362 = smul.addr %s361, 2
      %s363 = smul.addr %s362, 8
      %s364 = scalar_lea.vmem %s10, %s363
      %p365 = scmp.lt.s32.totalorder %s21, 1
      %s366 = scalar_select %p365, %s21, 1
      %s367 = smul.addr %s366, 10
      %s368 = smul.addr %s367, 8
      %s369 = scalar_lea.vmem %s0, %s368
      %p370 = scmp.lt.s32.totalorder %s21, 1
      %s371 = scalar_select %p370, %s21, 1
      %s372 = smul.addr %s371, 2
      %s373 = smul.addr %s372, 4
      %s374 = scalar_lea.vmem %s1, %s373
      %p375 = scmp.lt.s32.totalorder %s21, 1
      %s376 = scalar_select %p375, %s21, 1
      %s377 = smul.addr %s376, 2
      %s378 = smul.addr %s377, 8
      %s379 = scalar_lea.vmem %s10, %s378
      %v380 = vld [vmem:[%s2] sm:$0xff]
      %v381 = vld [vmem:[%s2 + $0x8] sm:$0xff]
      %v382 = vld [vmem:[%s2 + $0x10] sm:$0xff]
      %v383 = vld [vmem:[%s2 + $0x18] sm:$0xff]
      %v384 = vld [vmem:[%s2 + $0x20] sm:$0xf]
      %v385 = vld [vmem:[%s369] sm:$0xff]
      %v386 = vld [vmem:[%s369 + $0x8] sm:$0xff]
      %v387 = vld [vmem:[%s369 + $0x10] sm:$0xff]
      %v388 = vld [vmem:[%s369 + $0x18] sm:$0xff]
      %v389 = vld [vmem:[%s369 + $0x20] sm:$0xff]
      %v390 = vld [vmem:[%s369 + $0x28] sm:$0xff]
      %v391 = vld [vmem:[%s369 + $0x30] sm:$0xff]
      %v392 = vld [vmem:[%s369 + $0x38] sm:$0xff]
      %v393 = vld [vmem:[%s369 + $0x40] sm:$0xf]
      %v394 = vld [vmem:[%s369 + $0x48] sm:$0xf]
      %v395 = vld [vmem:[%s3] sm:$0xff]
      %v396 = vld [vmem:[%s3 + $0x8] sm:$0xff]
      %v397 = vld [vmem:[%s3 + $0x10] sm:$0xff]
      %v398 = vld [vmem:[%s3 + $0x18] sm:$0xff]
      %v399 = vld [vmem:[%s3 + $0x20] sm:$0xf]
      %401 = vset.pattern.permute.xlu0 0
      %402 = vperm.xlu0 %401, %v395
      %v403 = vpop.permute.xlu0 %402
      %406 = vset.pattern.permute.xlu0 0
      %407 = vperm.xlu0 %406, %v396
      %v408 = vpop.permute.xlu0 %407
      %411 = vset.pattern.permute.xlu0 0
      %412 = vperm.xlu0 %411, %v397
      %v413 = vpop.permute.xlu0 %412
      %416 = vset.pattern.permute.xlu0 0
      %417 = vperm.xlu0 %416, %v398
      %v418 = vpop.permute.xlu0 %417
      %421 = vset.pattern.permute.xlu0 0
      %422 = vperm.xlu0 %421, %v399
      %v423 = vpop.permute.xlu0 %422
      %vm425 = vcmask 293888
      %v427 = vsel %vm425, %v380, 0
      %v430 = vsel %vm425, %v381, 0
      %v433 = vsel %vm425, %v382, 0
      %v436 = vsel %vm425, %v383, 0
      %v439 = vsel %vm425, %v384, 0
      %vm441 = vcmask 1043456
      %v443 = vsel %vm441, %v393, 0
      %v446 = vsel %vm441, %v394, 0
      %v448 = vand.u32 %v386, 4294901760
      %449 = vmatprep.subr.mxu0 %v448
      %v450 = vand.u32 %v385, 4294901760
      %451 = vmatpush1.msra.mxu0 %v450
      %v452 = vand.u32 %v388, 4294901760
      %453 = vmatprep.subr.mxu0 %v452
      %v454 = vand.u32 %v387, 4294901760
      %455 = vmatpush1.msra.mxu0 %v454
      %v456 = vand.u32 %v390, 4294901760
      %457 = vmatprep.subr.mxu0 %v456
      %v458 = vand.u32 %v389, 4294901760
      %459 = vmatpush1.msra.mxu0 %v458
      %v460 = vand.u32 %v392, 4294901760
      %461 = vmatprep.subr.mxu0 %v460
      %v462 = vand.u32 %v391, 4294901760
      %463 = vmatpush1.msra.mxu0 %v462
      %v464 = vand.u32 %v446, 4294901760
      %465 = vmatprep.subr.mxu0 %v464
      %v466 = vand.u32 %v443, 4294901760
      %467 = vmatpush1.msra.mxu0 %v466
      %468 = vmatprep.subr.mxu0 0.0
      %469 = vmatpush1.msra.mxu0 0.0
      %470 = vmatprep.subr.mxu0 0.0
      %471 = vmatpush1.msra.mxu0 0.0
      %472 = vmatprep.subr.mxu0 0.0
      %473 = vmatpush1.msra.mxu0 0.0
      %474 = vmatprep.subr.mxu0 0.0
      %475 = vmatpush1.msra.mxu0 0.0
      %476 = vmatprep.subr.mxu0 0.0
      %477 = vmatpush1.msra.mxu0 0.0
      %478 = vmatprep.subr.mxu0 0.0
      %479 = vmatpush1.msra.mxu0 0.0
      %480 = vmatprep.subr.mxu0 0.0
      %481 = vmatpush1.msra.mxu0 0.0
      %482 = vmatprep.subr.mxu0 0.0
      %483 = vmatpush1.msra.mxu0 0.0
      %484 = vmatprep.subr.mxu0 0.0
      %485 = vmatpush1.msra.mxu0 0.0
      %486 = vmatprep.subr.mxu0 0.0
      %487 = vmatpush1.msra.mxu0 0.0
      %488 = vmatprep.subr.mxu0 0.0
      %489 = vmatpush1.msra.mxu0 0.0
      %490 = vmatprep.subr.mxu0 0.0
      %491 = vmatpush1.msra.mxu0 0.0
      %492 = vmatprep.subr.mxu0 0.0
      %493 = vmatpush1.msra.mxu0 0.0
      %494 = vmatprep.subr.mxu0 0.0
      %495 = vmatpush1.msra.mxu0 0.0
      %496 = vmatprep.subr.mxu0 0.0
      %497 = vmatpush1.msra.mxu0 0.0
      %498 = vmatprep.subr.mxu0 0.0
      %499 = vmatpush1.msra.mxu0 0.0
      %500 = vmatprep.subr.mxu0 0.0
      %501 = vmatpush1.msra.mxu0 0.0
      %502 = vmatprep.subr.mxu0 0.0
      %503 = vmatpush1.msra.mxu0 0.0
      %504 = vmatprep.subr.mxu0 0.0
      %505 = vmatpush1.msra.mxu0 0.0
      %506 = vmatprep.subr.mxu0 0.0
      %507 = vmatpush1.msra.mxu0 0.0
      %508 = vmatprep.subr.mxu0 0.0
      %509 = vmatpush1.msra.mxu0 0.0
      %510 = vmatprep.subr.mxu0 0.0
      %511 = vmatpush1.msra.mxu0 0.0
      %512 = vmatprep.subr.mxu0 0.0
      %513 = vmatpush1.msra.mxu0 0.0
      %514 = vmatprep.subr.mxu0 0.0
      %515 = vmatpush1.msra.mxu0 0.0
      %516 = vmatprep.subr.mxu0 0.0
      %517 = vmatpush1.msra.mxu0 0.0
      %518 = vmatprep.subr.mxu0 0.0
      %519 = vmatpush1.msra.mxu0 0.0
      %520 = vmatprep.subr.mxu0 0.0
      %521 = vmatpush1.msra.mxu0 0.0
      %522 = vmatprep.mubr.f32.mxu0 0.0
      %v523 = vand.u32 %v427, 4294901760
      %v524 = vsub.f32 %v427, %v523
      %v525 = vand.u32 %v524, 4294901760
      %v526 = vsub.f32 %v524, %v525
      %v527 = vand.u32 %v526, 4294901760
      %528 = vmatmul.mubr.f32.gmra.mrb[0].mxu0 %v527
      %v529 = vpop.f32.mrb[0].mxu0
      %v530 = vadd.f32 %v403, %v529
      %v531 = vpop.f32.mrb[0].mxu0
      %v532 = vadd.f32 %v403, %v531
      %533 = vmatprep.mubr.f32.mxu0 0.0
      %v534 = vand.u32 %v430, 4294901760
      %v535 = vsub.f32 %v430, %v534
      %v536 = vand.u32 %v535, 4294901760
      %v537 = vsub.f32 %v535, %v536
      %v538 = vand.u32 %v537, 4294901760
      %539 = vmatmul.mubr.f32.gmra.mrb[0].mxu0 %v538
      %v540 = vpop.f32.mrb[0].mxu0
      %v541 = vadd.f32 %v408, %v540
      %v542 = vpop.f32.mrb[0].mxu0
      %v543 = vadd.f32 %v408, %v542
      %544 = vmatprep.mubr.f32.mxu0 0.0
      %v545 = vand.u32 %v433, 4294901760
      %v546 = vsub.f32 %v433, %v545
      %v547 = vand.u32 %v546, 4294901760
      %v548 = vsub.f32 %v546, %v547
      %v549 = vand.u32 %v548, 4294901760
      %550 = vmatmul.mubr.f32.gmra.mrb[0].mxu0 %v549
      %v551 = vpop.f32.mrb[0].mxu0
      %v552 = vadd.f32 %v413, %v551
      %v553 = vpop.f32.mrb[0].mxu0
      %v554 = vadd.f32 %v413, %v553
      %555 = vmatprep.mubr.f32.mxu0 0.0
      %v556 = vand.u32 %v436, 4294901760
      %v557 = vsub.f32 %v436, %v556
      %v558 = vand.u32 %v557, 4294901760
      %v559 = vsub.f32 %v557, %v558
      %v560 = vand.u32 %v559, 4294901760
      %561 = vmatmul.mubr.f32.gmra.mrb[0].mxu0 %v560
      %v562 = vpop.f32.mrb[0].mxu0
      %v563 = vadd.f32 %v418, %v562
      %v564 = vpop.f32.mrb[0].mxu0
      %v565 = vadd.f32 %v418, %v564
      %566 = vmatprep.mubr.f32.mxu0 0.0
      %v567 = vand.u32 %v439, 4294901760
      %v568 = vsub.f32 %v439, %v567
      %v569 = vand.u32 %v568, 4294901760
      %v570 = vsub.f32 %v568, %v569
      %v571 = vand.u32 %v570, 4294901760
      %572 = vmatmul.mubr.f32.gmra.mrb[0].mxu0 %v571
      %v573 = vpop.f32.mrb[0].mxu0
      %v574 = vadd.f32 %v423, %v573
      %v575 = vpop.f32.mrb[0].mxu0
      %v576 = vadd.f32 %v423, %v575
      %577 = vdwg.mxu0
      %v578 = vand.u32 %v386, 4294901760
      %v579 = vsub.f32 %v386, %v578
      %v580 = vand.u32 %v579, 4294901760
      %v581 = vsub.f32 %v579, %v580
      %v582 = vand.u32 %v581, 4294901760
      %583 = vmatprep.subr.mxu0 %v582
      %v584 = vand.u32 %v385, 4294901760
      %v585 = vsub.f32 %v385, %v584
      %v586 = vand.u32 %v585, 4294901760
      %v587 = vsub.f32 %v585, %v586
      %v588 = vand.u32 %v587, 4294901760
      %589 = vmatpush1.msra.mxu0 %v588
      %v590 = vand.u32 %v388, 4294901760
      %v591 = vsub.f32 %v388, %v590
      %v592 = vand.u32 %v591, 4294901760
      %v593 = vsub.f32 %v591, %v592
      %v594 = vand.u32 %v593, 4294901760
      %595 = vmatprep.subr.mxu0 %v594
      %v596 = vand.u32 %v387, 4294901760
      %v597 = vsub.f32 %v387, %v596
      %v598 = vand.u32 %v597, 4294901760
      %v599 = vsub.f32 %v597, %v598
      %v600 = vand.u32 %v599, 4294901760
      %601 = vmatpush1.msra.mxu0 %v600
      %v602 = vand.u32 %v390, 4294901760
      %v603 = vsub.f32 %v390, %v602
      %v604 = vand.u32 %v603, 4294901760
      %v605 = vsub.f32 %v603, %v604
      %v606 = vand.u32 %v605, 4294901760
      %607 = vmatprep.subr.mxu0 %v606
      %v608 = vand.u32 %v389, 4294901760
      %v609 = vsub.f32 %v389, %v608
      %v610 = vand.u32 %v609, 4294901760
      %v611 = vsub.f32 %v609, %v610
      %v612 = vand.u32 %v611, 4294901760
      %613 = vmatpush1.msra.mxu0 %v612
      %v614 = vand.u32 %v392, 4294901760
      %v615 = vsub.f32 %v392, %v614
      %v616 = vand.u32 %v615, 4294901760
      %v617 = vsub.f32 %v615, %v616
      %v618 = vand.u32 %v617, 4294901760
      %619 = vmatprep.subr.mxu0 %v618
      %v620 = vand.u32 %v391, 4294901760
      %v621 = vsub.f32 %v391, %v620
      %v622 = vand.u32 %v621, 4294901760
      %v623 = vsub.f32 %v621, %v622
      %v624 = vand.u32 %v623, 4294901760
      %625 = vmatpush1.msra.mxu0 %v624
      %v626 = vand.u32 %v446, 4294901760
      %v627 = vsub.f32 %v446, %v626
      %v628 = vand.u32 %v627, 4294901760
      %v629 = vsub.f32 %v627, %v628
      %v630 = vand.u32 %v629, 4294901760
      %631 = vmatprep.subr.mxu0 %v630
      %v632 = vand.u32 %v443, 4294901760
      %v633 = vsub.f32 %v443, %v632
      %v634 = vand.u32 %v633, 4294901760
      %v635 = vsub.f32 %v633, %v634
      %v636 = vand.u32 %v635, 4294901760
      %637 = vmatpush1.msra.mxu0 %v636
      %638 = vmatprep.subr.mxu0 0.0
      %639 = vmatpush1.msra.mxu0 0.0
      %640 = vmatprep.subr.mxu0 0.0
      %641 = vmatpush1.msra.mxu0 0.0
      %642 = vmatprep.subr.mxu0 0.0
      %643 = vmatpush1.msra.mxu0 0.0
      %644 = vmatprep.subr.mxu0 0.0
      %645 = vmatpush1.msra.mxu0 0.0
      %646 = vmatprep.subr.mxu0 0.0
      %647 = vmatpush1.msra.mxu0 0.0
      %648 = vmatprep.subr.mxu0 0.0
      %649 = vmatpush1.msra.mxu0 0.0
      %650 = vmatprep.subr.mxu0 0.0
      %651 = vmatpush1.msra.mxu0 0.0
      %652 = vmatprep.subr.mxu0 0.0
      %653 = vmatpush1.msra.mxu0 0.0
      %654 = vmatprep.subr.mxu0 0.0
      %655 = vmatpush1.msra.mxu0 0.0
      %656 = vmatprep.subr.mxu0 0.0
      %657 = vmatpush1.msra.mxu0 0.0
      %658 = vmatprep.subr.mxu0 0.0
      %659 = vmatpush1.msra.mxu0 0.0
      %660 = vmatprep.subr.mxu0 0.0
      %661 = vmatpush1.msra.mxu0 0.0
      %662 = vmatprep.subr.mxu0 0.0
      %663 = vmatpush1.msra.mxu0 0.0
      %664 = vmatprep.subr.mxu0 0.0
      %665 = vmatpush1.msra.mxu0 0.0
      %666 = vmatprep.subr.mxu0 0.0
      %667 = vmatpush1.msra.mxu0 0.0
      %668 = vmatprep.subr.mxu0 0.0
      %669 = vmatpush1.msra.mxu0 0.0
      %670 = vmatprep.subr.mxu0 0.0
      %671 = vmatpush1.msra.mxu0 0.0
      %672 = vmatprep.subr.mxu0 0.0
      %673 = vmatpush1.msra.mxu0 0.0
      %674 = vmatprep.subr.mxu0 0.0
      %675 = vmatpush1.msra.mxu0 0.0
      %676 = vmatprep.subr.mxu0 0.0
      %677 = vmatpush1.msra.mxu0 0.0
      %678 = vmatprep.subr.mxu0 0.0
      %679 = vmatpush1.msra.mxu0 0.0
      %680 = vmatprep.subr.mxu0 0.0
      %681 = vmatpush1.msra.mxu0 0.0
      %682 = vmatprep.subr.mxu0 0.0
      %683 = vmatpush1.msra.mxu0 0.0
      %684 = vmatprep.subr.mxu0 0.0
      %685 = vmatpush1.msra.mxu0 0.0
      %686 = vmatprep.subr.mxu0 0.0
      %687 = vmatpush1.msra.mxu0 0.0
      %688 = vmatprep.subr.mxu0 0.0
      %689 = vmatpush1.msra.mxu0 0.0
      %690 = vmatprep.subr.mxu0 0.0
      %691 = vmatpush1.msra.mxu0 0.0
      %692 = vmatprep.mubr.f32.mxu0 0.0
      %v693 = vand.u32 %v427, 4294901760
      %694 = vmatmul.mubr.f32.gmra.mrb[0].mxu0 %v693
      %v695 = vpop.f32.mrb[0].mxu0
      %v696 = vadd.f32 %v530, %v695
      %v697 = vpop.f32.mrb[0].mxu0
      %v698 = vadd.f32 %v532, %v697
      %699 = vmatprep.mubr.f32.mxu0 0.0
      %v700 = vand.u32 %v430, 4294901760
      %701 = vmatmul.mubr.f32.gmra.mrb[0].mxu0 %v700
      %v702 = vpop.f32.mrb[0].mxu0
      %v703 = vadd.f32 %v541, %v702
      %v704 = vpop.f32.mrb[0].mxu0
      %v705 = vadd.f32 %v543, %v704
      %706 = vmatprep.mubr.f32.mxu0 0.0
      %v707 = vand.u32 %v433, 4294901760
      %708 = vmatmul.mubr.f32.gmra.mrb[0].mxu0 %v707
      %v709 = vpop.f32.mrb[0].mxu0
      %v710 = vadd.f32 %v552, %v709
      %v711 = vpop.f32.mrb[0].mxu0
      %v712 = vadd.f32 %v554, %v711
      %713 = vmatprep.mubr.f32.mxu0 0.0
      %v714 = vand.u32 %v436, 4294901760
      %715 = vmatmul.mubr.f32.gmra.mrb[0].mxu0 %v714
      %v716 = vpop.f32.mrb[0].mxu0
      %v717 = vadd.f32 %v563, %v716
      %v718 = vpop.f32.mrb[0].mxu0
      %v719 = vadd.f32 %v565, %v718
      %720 = vmatprep.mubr.f32.mxu0 0.0
      %v721 = vand.u32 %v439, 4294901760
      %722 = vmatmul.mubr.f32.gmra.mrb[0].mxu0 %v721
      %v723 = vpop.f32.mrb[0].mxu0
      %v724 = vadd.f32 %v574, %v723
      %v725 = vpop.f32.mrb[0].mxu0
      %v726 = vadd.f32 %v576, %v725
      %727 = vdwg.mxu0
      %v728 = vand.u32 %v386, 4294901760
      %v729 = vsub.f32 %v386, %v728
      %730 = vmatprep.subr.mxu0 %v729
      %v731 = vand.u32 %v385, 4294901760
      %v732 = vsub.f32 %v385, %v731
      %733 = vmatpush1.msra.mxu0 %v732
      %v734 = vand.u32 %v388, 4294901760
      %v735 = vsub.f32 %v388, %v734
      %736 = vmatprep.subr.mxu0 %v735
      %v737 = vand.u32 %v387, 4294901760
      %v738 = vsub.f32 %v387, %v737
      %739 = vmatpush1.msra.mxu0 %v738
      %v740 = vand.u32 %v390, 4294901760
      %v741 = vsub.f32 %v390, %v740
      %742 = vmatprep.subr.mxu0 %v741
      %v743 = vand.u32 %v389, 4294901760
      %v744 = vsub.f32 %v389, %v743
      %745 = vmatpush1.msra.mxu0 %v744
      %v746 = vand.u32 %v392, 4294901760
      %v747 = vsub.f32 %v392, %v746
      %748 = vmatprep.subr.mxu0 %v747
      %v749 = vand.u32 %v391, 4294901760
      %v750 = vsub.f32 %v391, %v749
      %751 = vmatpush1.msra.mxu0 %v750
      %v752 = vand.u32 %v446, 4294901760
      %v753 = vsub.f32 %v446, %v752
      %754 = vmatprep.subr.mxu0 %v753
      %v755 = vand.u32 %v443, 4294901760
      %v756 = vsub.f32 %v443, %v755
      %757 = vmatpush1.msra.mxu0 %v756
      %758 = vmatprep.subr.mxu0 0.0
      %759 = vmatpush1.msra.mxu0 0.0
      %760 = vmatprep.subr.mxu0 0.0
      %761 = vmatpush1.msra.mxu0 0.0
      %762 = vmatprep.subr.mxu0 0.0
      %763 = vmatpush1.msra.mxu0 0.0
      %764 = vmatprep.subr.mxu0 0.0
      %765 = vmatpush1.msra.mxu0 0.0
      %766 = vmatprep.subr.mxu0 0.0
      %767 = vmatpush1.msra.mxu0 0.0
      %768 = vmatprep.subr.mxu0 0.0
      %769 = vmatpush1.msra.mxu0 0.0
      %770 = vmatprep.subr.mxu0 0.0
      %771 = vmatpush1.msra.mxu0 0.0
      %772 = vmatprep.subr.mxu0 0.0
      %773 = vmatpush1.msra.mxu0 0.0
      %774 = vmatprep.subr.mxu0 0.0
      %775 = vmatpush1.msra.mxu0 0.0
      %776 = vmatprep.subr.mxu0 0.0
      %777 = vmatpush1.msra.mxu0 0.0
      %778 = vmatprep.subr.mxu0 0.0
      %779 = vmatpush1.msra.mxu0 0.0
      %780 = vmatprep.subr.mxu0 0.0
      %781 = vmatpush1.msra.mxu0 0.0
      %782 = vmatprep.subr.mxu0 0.0
      %783 = vmatpush1.msra.mxu0 0.0
      %784 = vmatprep.subr.mxu0 0.0
      %785 = vmatpush1.msra.mxu0 0.0
      %786 = vmatprep.subr.mxu0 0.0
      %787 = vmatpush1.msra.mxu0 0.0
      %788 = vmatprep.subr.mxu0 0.0
      %789 = vmatpush1.msra.mxu0 0.0
      %790 = vmatprep.subr.mxu0 0.0
      %791 = vmatpush1.msra.mxu0 0.0
      %792 = vmatprep.subr.mxu0 0.0
      %793 = vmatpush1.msra.mxu0 0.0
      %794 = vmatprep.subr.mxu0 0.0
      %795 = vmatpush1.msra.mxu0 0.0
      %796 = vmatprep.subr.mxu0 0.0
      %797 = vmatpush1.msra.mxu0 0.0
      %798 = vmatprep.subr.mxu0 0.0
      %799 = vmatpush1.msra.mxu0 0.0
      %800 = vmatprep.subr.mxu0 0.0
      %801 = vmatpush1.msra.mxu0 0.0
      %802 = vmatprep.subr.mxu0 0.0
      %803 = vmatpush1.msra.mxu0 0.0
      %804 = vmatprep.subr.mxu0 0.0
      %805 = vmatpush1.msra.mxu0 0.0
      %806 = vmatprep.subr.mxu0 0.0
      %807 = vmatpush1.msra.mxu0 0.0
      %808 = vmatprep.subr.mxu0 0.0
      %809 = vmatpush1.msra.mxu0 0.0
      %810 = vmatprep.subr.mxu0 0.0
      %811 = vmatpush1.msra.mxu0 0.0
      %812 = vmatprep.mubr.f32.mxu0 0.0
      %v813 = vand.u32 %v427, 4294901760
      %v814 = vsub.f32 %v427, %v813
      %815 = vmatmul.mubr.f32.gmra.mrb[0].mxu0 %v814
      %v816 = vpop.f32.mrb[0].mxu0
      %v817 = vadd.f32 %v696, %v816
      %v818 = vpop.f32.mrb[0].mxu0
      %v819 = vadd.f32 %v698, %v818
      %820 = vmatprep.mubr.f32.mxu0 0.0
      %v821 = vand.u32 %v430, 4294901760
      %v822 = vsub.f32 %v430, %v821
      %823 = vmatmul.mubr.f32.gmra.mrb[0].mxu0 %v822
      %v824 = vpop.f32.mrb[0].mxu0
      %v825 = vadd.f32 %v703, %v824
      %v826 = vpop.f32.mrb[0].mxu0
      %v827 = vadd.f32 %v705, %v826
      %828 = vmatprep.mubr.f32.mxu0 0.0
      %v829 = vand.u32 %v433, 4294901760
      %v830 = vsub.f32 %v433, %v829
      %831 = vmatmul.mubr.f32.gmra.mrb[0].mxu0 %v830
      %v832 = vpop.f32.mrb[0].mxu0
      %v833 = vadd.f32 %v710, %v832
      %v834 = vpop.f32.mrb[0].mxu0
      %v835 = vadd.f32 %v712, %v834
      %836 = vmatprep.mubr.f32.mxu0 0.0
      %v837 = vand.u32 %v436, 4294901760
      %v838 = vsub.f32 %v436, %v837
      %839 = vmatmul.mubr.f32.gmra.mrb[0].mxu0 %v838
      %v840 = vpop.f32.mrb[0].mxu0
      %v841 = vadd.f32 %v717, %v840
      %v842 = vpop.f32.mrb[0].mxu0
      %v843 = vadd.f32 %v719, %v842
      %844 = vmatprep.mubr.f32.mxu0 0.0
      %v845 = vand.u32 %v439, 4294901760
      %v846 = vsub.f32 %v439, %v845
      %847 = vmatmul.mubr.f32.gmra.mrb[0].mxu0 %v846
      %v848 = vpop.f32.mrb[0].mxu0
      %v849 = vadd.f32 %v724, %v848
      %v850 = vpop.f32.mrb[0].mxu0
      %v851 = vadd.f32 %v726, %v850
      %852 = vdwg.mxu0
      %v853 = vand.u32 %v386, 4294901760
      %854 = vmatprep.subr.mxu0 %v853
      %v855 = vand.u32 %v385, 4294901760
      %856 = vmatpush1.msra.mxu0 %v855
      %v857 = vand.u32 %v388, 4294901760
      %858 = vmatprep.subr.mxu0 %v857
      %v859 = vand.u32 %v387, 4294901760
      %860 = vmatpush1.msra.mxu0 %v859
      %v861 = vand.u32 %v390, 4294901760
      %862 = vmatprep.subr.mxu0 %v861
      %v863 = vand.u32 %v389, 4294901760
      %864 = vmatpush1.msra.mxu0 %v863
      %v865 = vand.u32 %v392, 4294901760
      %866 = vmatprep.subr.mxu0 %v865
      %v867 = vand.u32 %v391, 4294901760
      %868 = vmatpush1.msra.mxu0 %v867
      %v869 = vand.u32 %v446, 4294901760
      %870 = vmatprep.subr.mxu0 %v869
      %v871 = vand.u32 %v443, 4294901760
      %872 = vmatpush1.msra.mxu0 %v871
      %873 = vmatprep.subr.mxu0 0.0
      %874 = vmatpush1.msra.mxu0 0.0
      %875 = vmatprep.subr.mxu0 0.0
      %876 = vmatpush1.msra.mxu0 0.0
      %877 = vmatprep.subr.mxu0 0.0
      %878 = vmatpush1.msra.mxu0 0.0
      %879 = vmatprep.subr.mxu0 0.0
      %880 = vmatpush1.msra.mxu0 0.0
      %881 = vmatprep.subr.mxu0 0.0
      %882 = vmatpush1.msra.mxu0 0.0
      %883 = vmatprep.subr.mxu0 0.0
      %884 = vmatpush1.msra.mxu0 0.0
      %885 = vmatprep.subr.mxu0 0.0
      %886 = vmatpush1.msra.mxu0 0.0
      %887 = vmatprep.subr.mxu0 0.0
      %888 = vmatpush1.msra.mxu0 0.0
      %889 = vmatprep.subr.mxu0 0.0
      %890 = vmatpush1.msra.mxu0 0.0
      %891 = vmatprep.subr.mxu0 0.0
      %892 = vmatpush1.msra.mxu0 0.0
      %893 = vmatprep.subr.mxu0 0.0
      %894 = vmatpush1.msra.mxu0 0.0
      %895 = vmatprep.subr.mxu0 0.0
      %896 = vmatpush1.msra.mxu0 0.0
      %897 = vmatprep.subr.mxu0 0.0
      %898 = vmatpush1.msra.mxu0 0.0
      %899 = vmatprep.subr.mxu0 0.0
      %900 = vmatpush1.msra.mxu0 0.0
      %901 = vmatprep.subr.mxu0 0.0
      %902 = vmatpush1.msra.mxu0 0.0
      %903 = vmatprep.subr.mxu0 0.0
      %904 = vmatpush1.msra.mxu0 0.0
      %905 = vmatprep.subr.mxu0 0.0
      %906 = vmatpush1.msra.mxu0 0.0
      %907 = vmatprep.subr.mxu0 0.0
      %908 = vmatpush1.msra.mxu0 0.0
      %909 = vmatprep.subr.mxu0 0.0
      %910 = vmatpush1.msra.mxu0 0.0
      %911 = vmatprep.subr.mxu0 0.0
      %912 = vmatpush1.msra.mxu0 0.0
      %913 = vmatprep.subr.mxu0 0.0
      %914 = vmatpush1.msra.mxu0 0.0
      %915 = vmatprep.subr.mxu0 0.0
      %916 = vmatpush1.msra.mxu0 0.0
      %917 = vmatprep.subr.mxu0 0.0
      %918 = vmatpush1.msra.mxu0 0.0
      %919 = vmatprep.subr.mxu0 0.0
      %920 = vmatpush1.msra.mxu0 0.0
      %921 = vmatprep.subr.mxu0 0.0
      %922 = vmatpush1.msra.mxu0 0.0
      %923 = vmatprep.subr.mxu0 0.0
      %924 = vmatpush1.msra.mxu0 0.0
      %925 = vmatprep.subr.mxu0 0.0
      %926 = vmatpush1.msra.mxu0 0.0
      %927 = vmatprep.mubr.f32.mxu0 0.0
      %v928 = vand.u32 %v427, 4294901760
      %v929 = vsub.f32 %v427, %v928
      %v930 = vand.u32 %v929, 4294901760
      %931 = vmatmul.mubr.f32.gmra.mrb[0].mxu0 %v930
      %v932 = vpop.f32.mrb[0].mxu0
      %v933 = vadd.f32 %v817, %v932
      %v934 = vpop.f32.mrb[0].mxu0
      %v935 = vadd.f32 %v819, %v934
      %936 = vmatprep.mubr.f32.mxu0 0.0
      %v937 = vand.u32 %v430, 4294901760
      %v938 = vsub.f32 %v430, %v937
      %v939 = vand.u32 %v938, 4294901760
      %940 = vmatmul.mubr.f32.gmra.mrb[0].mxu0 %v939
      %v941 = vpop.f32.mrb[0].mxu0
      %v942 = vadd.f32 %v825, %v941
      %v943 = vpop.f32.mrb[0].mxu0
      %v944 = vadd.f32 %v827, %v943
      %945 = vmatprep.mubr.f32.mxu0 0.0
      %v946 = vand.u32 %v433, 4294901760
      %v947 = vsub.f32 %v433, %v946
      %v948 = vand.u32 %v947, 4294901760
      %949 = vmatmul.mubr.f32.gmra.mrb[0].mxu0 %v948
      %v950 = vpop.f32.mrb[0].mxu0
      %v951 = vadd.f32 %v833, %v950
      %v952 = vpop.f32.mrb[0].mxu0
      %v953 = vadd.f32 %v835, %v952
      %954 = vmatprep.mubr.f32.mxu0 0.0
      %v955 = vand.u32 %v436, 4294901760
      %v956 = vsub.f32 %v436, %v955
      %v957 = vand.u32 %v956, 4294901760
      %958 = vmatmul.mubr.f32.gmra.mrb[0].mxu0 %v957
      %v959 = vpop.f32.mrb[0].mxu0
      %v960 = vadd.f32 %v841, %v959
      %v961 = vpop.f32.mrb[0].mxu0
      %v962 = vadd.f32 %v843, %v961
      %963 = vmatprep.mubr.f32.mxu0 0.0
      %v964 = vand.u32 %v439, 4294901760
      %v965 = vsub.f32 %v439, %v964
      %v966 = vand.u32 %v965, 4294901760
      %967 = vmatmul.mubr.f32.gmra.mrb[0].mxu0 %v966
      %v968 = vpop.f32.mrb[0].mxu0
      %v969 = vadd.f32 %v849, %v968
      %v970 = vpop.f32.mrb[0].mxu0
      %v971 = vadd.f32 %v851, %v970
      %972 = vdwg.mxu0
      %v973 = vand.u32 %v386, 4294901760
      %v974 = vsub.f32 %v386, %v973
      %v975 = vand.u32 %v974, 4294901760
      %976 = vmatprep.subr.mxu0 %v975
      %v977 = vand.u32 %v385, 4294901760
      %v978 = vsub.f32 %v385, %v977
      %v979 = vand.u32 %v978, 4294901760
      %980 = vmatpush1.msra.mxu0 %v979
      %v981 = vand.u32 %v388, 4294901760
      %v982 = vsub.f32 %v388, %v981
      %v983 = vand.u32 %v982, 4294901760
      %984 = vmatprep.subr.mxu0 %v983
      %v985 = vand.u32 %v387, 4294901760
      %v986 = vsub.f32 %v387, %v985
      %v987 = vand.u32 %v986, 4294901760
      %988 = vmatpush1.msra.mxu0 %v987
      %v989 = vand.u32 %v390, 4294901760
      %v990 = vsub.f32 %v390, %v989
      %v991 = vand.u32 %v990, 4294901760
      %992 = vmatprep.subr.mxu0 %v991
      %v993 = vand.u32 %v389, 4294901760
      %v994 = vsub.f32 %v389, %v993
      %v995 = vand.u32 %v994, 4294901760
      %996 = vmatpush1.msra.mxu0 %v995
      %v997 = vand.u32 %v392, 4294901760
      %v998 = vsub.f32 %v392, %v997
      %v999 = vand.u32 %v998, 4294901760
      %1000 = vmatprep.subr.mxu0 %v999
      %v1001 = vand.u32 %v391, 4294901760
      %v1002 = vsub.f32 %v391, %v1001
      %v1003 = vand.u32 %v1002, 4294901760
      %1004 = vmatpush1.msra.mxu0 %v1003
      %v1005 = vand.u32 %v446, 4294901760
      %v1006 = vsub.f32 %v446, %v1005
      %v1007 = vand.u32 %v1006, 4294901760
      %1008 = vmatprep.subr.mxu0 %v1007
      %v1009 = vand.u32 %v443, 4294901760
      %v1010 = vsub.f32 %v443, %v1009
      %v1011 = vand.u32 %v1010, 4294901760
      %1012 = vmatpush1.msra.mxu0 %v1011
      %1013 = vmatprep.subr.mxu0 0.0
      %1014 = vmatpush1.msra.mxu0 0.0
      %1015 = vmatprep.subr.mxu0 0.0
      %1016 = vmatpush1.msra.mxu0 0.0
      %1017 = vmatprep.subr.mxu0 0.0
      %1018 = vmatpush1.msra.mxu0 0.0
      %1019 = vmatprep.subr.mxu0 0.0
      %1020 = vmatpush1.msra.mxu0 0.0
      %1021 = vmatprep.subr.mxu0 0.0
      %1022 = vmatpush1.msra.mxu0 0.0
      %1023 = vmatprep.subr.mxu0 0.0
      %1024 = vmatpush1.msra.mxu0 0.0
      %1025 = vmatprep.subr.mxu0 0.0
      %1026 = vmatpush1.msra.mxu0 0.0
      %1027 = vmatprep.subr.mxu0 0.0
      %1028 = vmatpush1.msra.mxu0 0.0
      %1029 = vmatprep.subr.mxu0 0.0
      %1030 = vmatpush1.msra.mxu0 0.0
      %1031 = vmatprep.subr.mxu0 0.0
      %1032 = vmatpush1.msra.mxu0 0.0
      %1033 = vmatprep.subr.mxu0 0.0
      %1034 = vmatpush1.msra.mxu0 0.0
      %1035 = vmatprep.subr.mxu0 0.0
      %1036 = vmatpush1.msra.mxu0 0.0
      %1037 = vmatprep.subr.mxu0 0.0
      %1038 = vmatpush1.msra.mxu0 0.0
      %1039 = vmatprep.subr.mxu0 0.0
      %1040 = vmatpush1.msra.mxu0 0.0
      %1041 = vmatprep.subr.mxu0 0.0
      %1042 = vmatpush1.msra.mxu0 0.0
      %1043 = vmatprep.subr.mxu0 0.0
      %1044 = vmatpush1.msra.mxu0 0.0
      %1045 = vmatprep.subr.mxu0 0.0
      %1046 = vmatpush1.msra.mxu0 0.0
      %1047 = vmatprep.subr.mxu0 0.0
      %1048 = vmatpush1.msra.mxu0 0.0
      %1049 = vmatprep.subr.mxu0 0.0
      %1050 = vmatpush1.msra.mxu0 0.0
      %1051 = vmatprep.subr.mxu0 0.0
      %1052 = vmatpush1.msra.mxu0 0.0
      %1053 = vmatprep.subr.mxu0 0.0
      %1054 = vmatpush1.msra.mxu0 0.0
      %1055 = vmatprep.subr.mxu0 0.0
      %1056 = vmatpush1.msra.mxu0 0.0
      %1057 = vmatprep.subr.mxu0 0.0
      %1058 = vmatpush1.msra.mxu0 0.0
      %1059 = vmatprep.subr.mxu0 0.0
      %1060 = vmatpush1.msra.mxu0 0.0
      %1061 = vmatprep.subr.mxu0 0.0
      %1062 = vmatpush1.msra.mxu0 0.0
      %1063 = vmatprep.subr.mxu0 0.0
      %1064 = vmatpush1.msra.mxu0 0.0
      %1065 = vmatprep.subr.mxu0 0.0
      %1066 = vmatpush1.msra.mxu0 0.0
      %1067 = vmatprep.mubr.f32.mxu0 0.0
      %v1068 = vand.u32 %v427, 4294901760
      %1069 = vmatmul.mubr.f32.gmra.mrb[0].mxu0 %v1068
      %v1070 = vpop.f32.mrb[0].mxu0
      %v1071 = vadd.f32 %v933, %v1070
      %v1072 = vpop.f32.mrb[0].mxu0
      %v1073 = vadd.f32 %v935, %v1072
      %1074 = vmatprep.mubr.f32.mxu0 0.0
      %v1075 = vand.u32 %v430, 4294901760
      %1076 = vmatmul.mubr.f32.gmra.mrb[0].mxu0 %v1075
      %v1077 = vpop.f32.mrb[0].mxu0
      %v1078 = vadd.f32 %v942, %v1077
      %v1079 = vpop.f32.mrb[0].mxu0
      %v1080 = vadd.f32 %v944, %v1079
      %1081 = vmatprep.mubr.f32.mxu0 0.0
      %v1082 = vand.u32 %v433, 4294901760
      %1083 = vmatmul.mubr.f32.gmra.mrb[0].mxu0 %v1082
      %v1084 = vpop.f32.mrb[0].mxu0
      %v1085 = vadd.f32 %v951, %v1084
      %v1086 = vpop.f32.mrb[0].mxu0
      %v1087 = vadd.f32 %v953, %v1086
      %1088 = vmatprep.mubr.f32.mxu0 0.0
      %v1089 = vand.u32 %v436, 4294901760
      %1090 = vmatmul.mubr.f32.gmra.mrb[0].mxu0 %v1089
      %v1091 = vpop.f32.mrb[0].mxu0
      %v1092 = vadd.f32 %v960, %v1091
      %v1093 = vpop.f32.mrb[0].mxu0
      %v1094 = vadd.f32 %v962, %v1093
      %1095 = vmatprep.mubr.f32.mxu0 0.0
      %v1096 = vand.u32 %v439, 4294901760
      %1097 = vmatmul.mubr.f32.gmra.mrb[0].mxu0 %v1096
      %v1098 = vpop.f32.mrb[0].mxu0
      %v1099 = vadd.f32 %v969, %v1098
      %v1100 = vpop.f32.mrb[0].mxu0
      %v1101 = vadd.f32 %v971, %v1100
      %1102 = vdwg.mxu0
      %v1103 = vand.u32 %v386, 4294901760
      %1104 = vmatprep.subr.mxu0 %v1103
      %v1105 = vand.u32 %v385, 4294901760
      %1106 = vmatpush1.msra.mxu0 %v1105
      %v1107 = vand.u32 %v388, 4294901760
      %1108 = vmatprep.subr.mxu0 %v1107
      %v1109 = vand.u32 %v387, 4294901760
      %1110 = vmatpush1.msra.mxu0 %v1109
      %v1111 = vand.u32 %v390, 4294901760
      %1112 = vmatprep.subr.mxu0 %v1111
      %v1113 = vand.u32 %v389, 4294901760
      %1114 = vmatpush1.msra.mxu0 %v1113
      %v1115 = vand.u32 %v392, 4294901760
      %1116 = vmatprep.subr.mxu0 %v1115
      %v1117 = vand.u32 %v391, 4294901760
      %1118 = vmatpush1.msra.mxu0 %v1117
      %v1119 = vand.u32 %v446, 4294901760
      %1120 = vmatprep.subr.mxu0 %v1119
      %v1121 = vand.u32 %v443, 4294901760
      %1122 = vmatpush1.msra.mxu0 %v1121
      %1123 = vmatprep.subr.mxu0 0.0
      %1124 = vmatpush1.msra.mxu0 0.0
      %1125 = vmatprep.subr.mxu0 0.0
      %1126 = vmatpush1.msra.mxu0 0.0
      %1127 = vmatprep.subr.mxu0 0.0
      %1128 = vmatpush1.msra.mxu0 0.0
      %1129 = vmatprep.subr.mxu0 0.0
      %1130 = vmatpush1.msra.mxu0 0.0
      %1131 = vmatprep.subr.mxu0 0.0
      %1132 = vmatpush1.msra.mxu0 0.0
      %1133 = vmatprep.subr.mxu0 0.0
      %1134 = vmatpush1.msra.mxu0 0.0
      %1135 = vmatprep.subr.mxu0 0.0
      %1136 = vmatpush1.msra.mxu0 0.0
      %1137 = vmatprep.subr.mxu0 0.0
      %1138 = vmatpush1.msra.mxu0 0.0
      %1139 = vmatprep.subr.mxu0 0.0
      %1140 = vmatpush1.msra.mxu0 0.0
      %1141 = vmatprep.subr.mxu0 0.0
      %1142 = vmatpush1.msra.mxu0 0.0
      %1143 = vmatprep.subr.mxu0 0.0
      %1144 = vmatpush1.msra.mxu0 0.0
      %1145 = vmatprep.subr.mxu0 0.0
      %1146 = vmatpush1.msra.mxu0 0.0
      %1147 = vmatprep.subr.mxu0 0.0
      %1148 = vmatpush1.msra.mxu0 0.0
      %1149 = vmatprep.subr.mxu0 0.0
      %1150 = vmatpush1.msra.mxu0 0.0
      %1151 = vmatprep.subr.mxu0 0.0
      %1152 = vmatpush1.msra.mxu0 0.0
      %1153 = vmatprep.subr.mxu0 0.0
      %1154 = vmatpush1.msra.mxu0 0.0
      %1155 = vmatprep.subr.mxu0 0.0
      %1156 = vmatpush1.msra.mxu0 0.0
      %1157 = vmatprep.subr.mxu0 0.0
      %1158 = vmatpush1.msra.mxu0 0.0
      %1159 = vmatprep.subr.mxu0 0.0
      %1160 = vmatpush1.msra.mxu0 0.0
      %1161 = vmatprep.subr.mxu0 0.0
      %1162 = vmatpush1.msra.mxu0 0.0
      %1163 = vmatprep.subr.mxu0 0.0
      %1164 = vmatpush1.msra.mxu0 0.0
      %1165 = vmatprep.subr.mxu0 0.0
      %1166 = vmatpush1.msra.mxu0 0.0
      %1167 = vmatprep.subr.mxu0 0.0
      %1168 = vmatpush1.msra.mxu0 0.0
      %1169 = vmatprep.subr.mxu0 0.0
      %1170 = vmatpush1.msra.mxu0 0.0
      %1171 = vmatprep.subr.mxu0 0.0
      %1172 = vmatpush1.msra.mxu0 0.0
      %1173 = vmatprep.subr.mxu0 0.0
      %1174 = vmatpush1.msra.mxu0 0.0
      %1175 = vmatprep.subr.mxu0 0.0
      %1176 = vmatpush1.msra.mxu0 0.0
      %1177 = vmatprep.mubr.f32.mxu0 0.0
      %v1178 = vand.u32 %v427, 4294901760
      %1179 = vmatmul.mubr.f32.gmra.mrb[0].mxu0 %v1178
      %v1180 = vpop.f32.mrb[0].mxu0
      %v1181 = vadd.f32 %v1071, %v1180
      %v1182 = vpop.f32.mrb[0].mxu0
      %v1183 = vadd.f32 %v1073, %v1182
      %1184 = vmatprep.mubr.f32.mxu0 0.0
      %v1185 = vand.u32 %v430, 4294901760
      %1186 = vmatmul.mubr.f32.gmra.mrb[0].mxu0 %v1185
      %v1187 = vpop.f32.mrb[0].mxu0
      %v1188 = vadd.f32 %v1078, %v1187
      %v1189 = vpop.f32.mrb[0].mxu0
      %v1190 = vadd.f32 %v1080, %v1189
      %1191 = vmatprep.mubr.f32.mxu0 0.0
      %v1192 = vand.u32 %v433, 4294901760
      %1193 = vmatmul.mubr.f32.gmra.mrb[0].mxu0 %v1192
      %v1194 = vpop.f32.mrb[0].mxu0
      %v1195 = vadd.f32 %v1085, %v1194
      %v1196 = vpop.f32.mrb[0].mxu0
      %v1197 = vadd.f32 %v1087, %v1196
      %1198 = vmatprep.mubr.f32.mxu0 0.0
      %v1199 = vand.u32 %v436, 4294901760
      %1200 = vmatmul.mubr.f32.gmra.mrb[0].mxu0 %v1199
      %v1201 = vpop.f32.mrb[0].mxu0
      %v1202 = vadd.f32 %v1092, %v1201
      %v1203 = vpop.f32.mrb[0].mxu0
      %v1204 = vadd.f32 %v1094, %v1203
      %1205 = vmatprep.mubr.f32.mxu0 0.0
      %v1206 = vand.u32 %v439, 4294901760
      %1207 = vmatmul.mubr.f32.gmra.mrb[0].mxu0 %v1206
      %v1208 = vpop.f32.mrb[0].mxu0
      %v1209 = vadd.f32 %v1099, %v1208
      %v1210 = vpop.f32.mrb[0].mxu0
      %v1211 = vadd.f32 %v1101, %v1210
      %1212 = vdwg.mxu0
      %v1213 = vmax.f32 %v1181, 0.0
      %v1214 = vmax.f32 %v1183, 0.0
      %v1215 = vmax.f32 %v1188, 0.0
      %v1216 = vmax.f32 %v1190, 0.0
      %v1217 = vmax.f32 %v1195, 0.0
      %v1218 = vmax.f32 %v1197, 0.0
      %v1219 = vmax.f32 %v1202, 0.0
      %v1220 = vmax.f32 %v1204, 0.0
      %v1221 = vmax.f32 %v1209, 0.0
      %v1222 = vmax.f32 %v1211, 0.0
      %v1223 = vld [vmem:[%s374] sm:$0xff]
      %v1225 = vcombine.high %v1223, %v1223
      %v1227 = vsel %vm441, %v1223, 0.0
      %v1228 = vsel %vm441, %v1225, 0.0
      %v1229 = vadd.f32 %v1227, %v1228
      %1230 = vadd.xlane.f32.xlu0 %v1229
      %v1231 = vpop.xlane.xlu0 %1230
      %v1232 = vrcp.pop 256.0
      %v1233 = vmul.f32 %v1231, %v1232
      %v1234 = vld [vmem:[%s4] sm:$0xf]
      %v1235 = vmul.f32 %v1234, %v1233
      %vm1236 = vcmask 125952
      %v1237 = vsel %vm1236, %v1235, 0.0
      %v1238 = vrot.slane %v1237, 4
      %v1239 = vadd.f32 %v1237, %v1238
      %v1240 = vrot.slane %v1239, 2
      %v1241 = vadd.f32 %v1239, %v1240
      %v1242 = vrot.slane %v1241, 1
      %v1243 = vadd.f32 %v1241, %v1242
      %v1244 = vmax.f32 %v1243, 0.0
      %v1245 = vld [vmem:[%s5] sm:$0xff]
      %v1246 = vld [vmem:[%s5 + $0x8] sm:$0xff]
      %v1247 = vld [vmem:[%s5 + $0x10] sm:$0xff]
      %v1248 = vld [vmem:[%s5 + $0x18] sm:$0xff]
      %v1249 = vld [vmem:[%s5 + $0x20] sm:$0xf]
      %v1250 = vmul.f32 %v1245, %v1244
      %v1251 = vmul.f32 %v1246, %v1244
      %v1252 = vmul.f32 %v1247, %v1244
      %v1253 = vmul.f32 %v1248, %v1244
      %v1254 = vmul.f32 %v1249, %v1244
      %vm1255 = vcmask 130048
      %v1256 = vsel %vm1255, %v1250, 0.0
      %1257 = vadd.xlane.f32.xlu0 %v1256
      %v1258 = vpop.xlane.xlu0 %1257
      %v1259 = vsel %vm1255, %v1251, 0.0
      %1260 = vadd.xlane.f32.xlu0 %v1259
      %v1261 = vpop.xlane.xlu0 %1260
      %v1262 = vsel %vm1255, %v1252, 0.0
      %1263 = vadd.xlane.f32.xlu0 %v1262
      %v1264 = vpop.xlane.xlu0 %1263
      %v1265 = vsel %vm1255, %v1253, 0.0
      %1266 = vadd.xlane.f32.xlu0 %v1265
      %v1267 = vpop.xlane.xlu0 %1266
      %v1268 = vsel %vm1236, %v1254, 0.0
      %1269 = vadd.xlane.f32.xlu0 %v1268
      %v1270 = vpop.xlane.xlu0 %1269
      %v1271 = vxor.u32 %v1258, 2147483648
      %v1272 = vxor.u32 %v1261, 2147483648
      %v1273 = vxor.u32 %v1264, 2147483648
      %v1274 = vxor.u32 %v1267, 2147483648
      %v1275 = vxor.u32 %v1270, 2147483648
      %v1276 = vmul.f32 %v1271, 1.442695
      %v1277 = vpow.pop %v1276
      %v1278 = vmul.f32 %v1272, 1.442695
      %v1279 = vpow.pop %v1278
      %v1280 = vmul.f32 %v1273, 1.442695
      %v1281 = vpow.pop %v1280
      %v1282 = vmul.f32 %v1274, 1.442695
      %v1283 = vpow.pop %v1282
      %v1284 = vmul.f32 %v1275, 1.442695
      %v1285 = vpow.pop %v1284
      %v1286 = vadd.f32 %v1277, 1.0
      %v1287 = vadd.f32 %v1279, 1.0
      %v1288 = vadd.f32 %v1281, 1.0
      %v1289 = vadd.f32 %v1283, 1.0
      %v1290 = vadd.f32 %v1285, 1.0
      %v1291 = vrcp.pop %v1286
      %v1292 = vmul.f32 1.0, %v1291
      %v1293 = vrcp.pop %v1287
      %v1294 = vmul.f32 1.0, %v1293
      %v1295 = vrcp.pop %v1288
      %v1296 = vmul.f32 1.0, %v1295
      %v1297 = vrcp.pop %v1289
      %v1298 = vmul.f32 1.0, %v1297
      %v1299 = vrcp.pop %v1290
      %v1300 = vmul.f32 1.0, %v1299
      %vm1305 = vcmask 1046528
      %v1306 = vrot.slane %v1215, 1
      %v1307 = vrot.slane %v1217, 1
      %v1308 = vsel %vm1305, %v1306, %v1307
      %v1309 = vrot.slane %v1216, 1
      %v1310 = vrot.slane %v1218, 1
      %v1311 = vsel %vm1305, %v1309, %v1310
      %v1316 = vmax.f32 %v1213, %v1308
      %v1317 = vmax.f32 %v1214, %v1311
      %v1318 = vmax.f32 %v1215, %v1307
      %v1319 = vmax.f32 %v1216, %v1310
      %v1320 = vadd.f32 %v1213, %v1308
      %v1321 = vadd.f32 %v1214, %v1311
      %v1322 = vadd.f32 %v1215, %v1307
      %v1323 = vadd.f32 %v1216, %v1310
      %vm1326 = vcmask 1045504
      %v1327 = vrot.slane %v1217, 2
      %v1328 = vrot.slane %v1219, 2
      %v1329 = vsel %vm1326, %v1327, %v1328
      %v1330 = vrot.slane %v1218, 2
      %v1331 = vrot.slane %v1220, 2
      %v1332 = vsel %vm1326, %v1330, %v1331
      %v1337 = vmax.f32 %v1316, %v1329
      %v1338 = vmax.f32 %v1317, %v1332
      %v1339 = vmax.f32 %v1318, %v1328
      %v1340 = vmax.f32 %v1319, %v1331
      %v1341 = vadd.f32 %v1320, %v1329
      %v1342 = vadd.f32 %v1321, %v1332
      %v1343 = vadd.f32 %v1322, %v1328
      %v1344 = vadd.f32 %v1323, %v1331
      %vm1347 = vcmask 1044480
      %v1348 = vrot.slane %v1219, 3
      %v1349 = vrot.slane %v1221, 3
      %v1350 = vsel %vm1347, %v1348, %v1349
      %v1351 = vrot.slane %v1220, 3
      %v1352 = vrot.slane %v1222, 3
      %v1353 = vsel %vm1347, %v1351, %v1352
      %v1358 = vmax.f32 %v1337, %v1350
      %v1359 = vmax.f32 %v1338, %v1353
      %v1360 = vmax.f32 %v1339, %v1349
      %v1361 = vmax.f32 %v1340, %v1352
      %v1362 = vadd.f32 %v1341, %v1350
      %v1363 = vadd.f32 %v1342, %v1353
      %v1364 = vadd.f32 %v1343, %v1349
      %v1365 = vadd.f32 %v1344, %v1352
      %v1366 = vmul.f32 %v1362, 0.25
      %v1367 = vmul.f32 %v1363, 0.25
      %v1368 = vmul.f32 %v1364, 0.25
      %v1369 = vmul.f32 %v1365, 0.25
      %1370 = vst [vmem:[#allocation2] sm:$0xff] 0.0
      %1371 = vst [vmem:[#allocation2 + $0x8] sm:$0xff] 0.0
      %1372 = vst [vmem:[#allocation2 + $0x10] sm:$0xff] 0.0
      %1373 = vst [vmem:[#allocation2 + $0x18] sm:$0xff] 0.0
      %1374 = vst [vmem:[#allocation2 + $0x20] sm:$0xff] 0.0
      %1375 = vst [vmem:[#allocation2 + $0x28] sm:$0xff] 0.0
      %1376 = vst [vmem:[#allocation2 + $0x30] sm:$0xff] 0.0
      %1377 = vst [vmem:[#allocation2 + $0x38] sm:$0xff] 0.0
      %1378 = vst [vmem:[#allocation2 + $0x40] sm:$0x3] 0.0
      %1379 = vst [vmem:[#allocation2 + $0x48] sm:$0x3] 0.0
      %1380 = vst [vmem:[#allocation2 + $0x50] sm:$0x3] 0.0
      %1381 = vst [vmem:[#allocation2 + $0x58] sm:$0x3] 0.0
      %1382 = vst [vmem:[#allocation2 + $0x8] sm:$0xff] %v1358
      %1383 = vst [vmem:[#allocation2 + $0x10] sm:$0xff] %v1359
      %1384 = vst [vmem:[#allocation2 + $0x28] sm:$0x1] %v1360
      %1385 = vst [vmem:[#allocation2 + $0x30] sm:$0x1] %v1361
      %vm1390 = vcmask 1040384
      %v1391 = vrot.slane %v1366, 7
      %v1392 = vrot.slane %v1367, 7
      %v1393 = vrot.slane %v1368, 7
      %v1394 = vsel %vm1390, %v1391, %v1393
      %v1395 = vrot.slane %v1369, 7
      %v1396 = vsel %vm1390, %v1392, %v1395
      %1401 = vst [vmem:[#allocation2 + $0x28] sm:$0xfe] %v1391
      %1402 = vst [vmem:[#allocation2 + $0x30] sm:$0xfe] %v1392
      %1403 = vst [vmem:[#allocation2 + $0x48] sm:$0x3] %v1394
      %1404 = vst [vmem:[#allocation2 + $0x50] sm:$0x3] %v1396
      %v1405 = vld [vmem:[%s6] sm:$0xff]
      %v1406 = vld [vmem:[%s6 + $0x8] sm:$0xff]
      %v1407 = vld [vmem:[%s6 + $0x10] sm:$0xff]
      %v1408 = vld [vmem:[%s6 + $0x18] sm:$0xff]
      %v1409 = vld [vmem:[%s6 + $0x20] sm:$0xff]
      %v1410 = vld [vmem:[%s6 + $0x28] sm:$0xff]
      %v1411 = vld [vmem:[%s6 + $0x30] sm:$0xff]
      %v1412 = vld [vmem:[%s6 + $0x38] sm:$0xff]
      %v1413 = vld [vmem:[%s6 + $0x40] sm:$0xff]
      %v1414 = vld [vmem:[%s6 + $0x48] sm:$0xff]
      %v1415 = vld [vmem:[%s6 + $0x50] sm:$0x1]
      %v1416 = vld [vmem:[#allocation2] sm:$0xff]
      %v1417 = vld [vmem:[#allocation2 + $0x8] sm:$0xff]
      %v1418 = vld [vmem:[#allocation2 + $0x10] sm:$0xff]
      %v1419 = vld [vmem:[#allocation2 + $0x18] sm:$0xff]
      %v1420 = vld [vmem:[#allocation2 + $0x20] sm:$0xff]
      %v1421 = vld [vmem:[#allocation2 + $0x28] sm:$0xff]
      %v1422 = vld [vmem:[#allocation2 + $0x30] sm:$0xff]
      %v1423 = vld [vmem:[#allocation2 + $0x38] sm:$0xff]
      %v1424 = vld [vmem:[#allocation2 + $0x40] sm:$0x3]
      %v1425 = vld [vmem:[#allocation2 + $0x48] sm:$0x3]
      %v1426 = vld [vmem:[#allocation2 + $0x50] sm:$0x3]
      %v1427 = vld [vmem:[#allocation2 + $0x58] sm:$0x3]
      %vm1428 = vcmask 146432
      %v1430 = vsel %vm1428, %v1405, 0
      %v1433 = vsel %vm1428, %v1406, 0
      %v1436 = vsel %vm1428, %v1407, 0
      %v1439 = vsel %vm1428, %v1408, 0
      %v1442 = vsel %vm1428, %v1409, 0
      %v1445 = vsel %vm1428, %v1410, 0
      %v1448 = vsel %vm1428, %v1411, 0
      %v1451 = vsel %vm1428, %v1412, 0
      %v1454 = vsel %vm1428, %v1413, 0
      %v1457 = vsel %vm1428, %v1414, 0
      %v1460 = vsel %vm1428, %v1415, 0
      %vm1462 = vcmask 1041408
      %v1464 = vsel %vm1462, %v1424, 0
      %v1467 = vsel %vm1462, %v1425, 0
      %v1470 = vsel %vm1462, %v1426, 0
      %v1473 = vsel %vm1462, %v1427, 0
      %v1475 = vand.u32 %v1417, 4294901760
      %1476 = vmatprep.subr.mxu0 %v1475
      %v1477 = vand.u32 %v1416, 4294901760
      %1478 = vmatpush1.msra.mxu0 %v1477
      %v1479 = vand.u32 %v1421, 4294901760
      %1480 = vmatprep.subr.mxu0 %v1479
      %v1481 = vand.u32 %v1420, 4294901760
      %1482 = vmatpush1.msra.mxu0 %v1481
      %v1483 = vand.u32 %v1467, 4294901760
      %1484 = vmatprep.subr.mxu0 %v1483
      %v1485 = vand.u32 %v1464, 4294901760
      %1486 = vmatpush1.msra.mxu0 %v1485
      %1487 = vmatprep.subr.mxu0 0.0
      %1488 = vmatpush1.msra.mxu0 0.0
      %1489 = vmatprep.subr.mxu0 0.0
      %1490 = vmatpush1.msra.mxu0 0.0
      %1491 = vmatprep.subr.mxu0 0.0
      %1492 = vmatpush1.msra.mxu0 0.0
      %1493 = vmatprep.subr.mxu0 0.0
      %1494 = vmatpush1.msra.mxu0 0.0
      %1495 = vmatprep.subr.mxu0 0.0
      %1496 = vmatpush1.msra.mxu0 0.0
      %1497 = vmatprep.subr.mxu0 0.0
      %1498 = vmatpush1.msra.mxu0 0.0
      %1499 = vmatprep.subr.mxu0 0.0
      %1500 = vmatpush1.msra.mxu0 0.0
      %1501 = vmatprep.subr.mxu0 0.0
      %1502 = vmatpush1.msra.mxu0 0.0
      %1503 = vmatprep.subr.mxu0 0.0
      %1504 = vmatpush1.msra.mxu0 0.0
      %1505 = vmatprep.subr.mxu0 0.0
      %1506 = vmatpush1.msra.mxu0 0.0
      %1507 = vmatprep.subr.mxu0 0.0
      %1508 = vmatpush1.msra.mxu0 0.0
      %1509 = vmatprep.subr.mxu0 0.0
      %1510 = vmatpush1.msra.mxu0 0.0
      %1511 = vmatprep.subr.mxu0 0.0
      %1512 = vmatpush1.msra.mxu0 0.0
      %1513 = vmatprep.subr.mxu0 0.0
      %1514 = vmatpush1.msra.mxu0 0.0
      %1515 = vmatprep.subr.mxu0 0.0
      %1516 = vmatpush1.msra.mxu0 0.0
      %1517 = vmatprep.subr.mxu0 0.0
      %1518 = vmatpush1.msra.mxu0 0.0
      %1519 = vmatprep.subr.mxu0 0.0
      %1520 = vmatpush1.msra.mxu0 0.0
      %1521 = vmatprep.subr.mxu0 0.0
      %1522 = vmatpush1.msra.mxu0 0.0
      %1523 = vmatprep.subr.mxu0 0.0
      %1524 = vmatpush1.msra.mxu0 0.0
      %1525 = vmatprep.subr.mxu0 0.0
      %1526 = vmatpush1.msra.mxu0 0.0
      %1527 = vmatprep.subr.mxu0 0.0
      %1528 = vmatpush1.msra.mxu0 0.0
      %1529 = vmatprep.subr.mxu0 0.0
      %1530 = vmatpush1.msra.mxu0 0.0
      %1531 = vmatprep.subr.mxu0 0.0
      %1532 = vmatpush1.msra.mxu0 0.0
      %1533 = vmatprep.subr.mxu0 0.0
      %1534 = vmatpush1.msra.mxu0 0.0
      %1535 = vmatprep.subr.mxu0 0.0
      %1536 = vmatpush1.msra.mxu0 0.0
      %1537 = vmatprep.subr.mxu0 0.0
      %1538 = vmatpush1.msra.mxu0 0.0
      %1539 = vmatprep.subr.mxu0 0.0
      %1540 = vmatpush1.msra.mxu0 0.0
      %1541 = vmatprep.subr.mxu0 0.0
      %1542 = vmatpush1.msra.mxu0 0.0
      %1543 = vmatprep.subr.mxu0 0.0
      %1544 = vmatpush1.msra.mxu0 0.0
      %1545 = vmatprep.mubr.f32.mxu0 0.0
      %v1546 = vand.u32 %v1430, 4294901760
      %v1547 = vsub.f32 %v1430, %v1546
      %v1548 = vand.u32 %v1547, 4294901760
      %v1549 = vsub.f32 %v1547, %v1548
      %v1550 = vand.u32 %v1549, 4294901760
      %1551 = vmatmul.mubr.f32.gmra.mrb[0].mxu0 %v1550
      %v1552 = vpop.f32.mrb[0].mxu0
      %v1553 = vadd.f32 0.0, %v1552
      %v1554 = vpop.f32.mrb[0].mxu0
      %v1555 = vadd.f32 0.0, %v1554
      %1556 = vmatprep.mubr.f32.mxu0 0.0
      %v1557 = vand.u32 %v1433, 4294901760
      %v1558 = vsub.f32 %v1433, %v1557
      %v1559 = vand.u32 %v1558, 4294901760
      %v1560 = vsub.f32 %v1558, %v1559
      %v1561 = vand.u32 %v1560, 4294901760
      %1562 = vmatmul.mubr.f32.gmra.mrb[0].mxu0 %v1561
      %v1563 = vpop.f32.mrb[0].mxu0
      %v1564 = vadd.f32 0.0, %v1563
      %v1565 = vpop.f32.mrb[0].mxu0
      %v1566 = vadd.f32 0.0, %v1565
      %1567 = vmatprep.mubr.f32.mxu0 0.0
      %v1568 = vand.u32 %v1436, 4294901760
      %v1569 = vsub.f32 %v1436, %v1568
      %v1570 = vand.u32 %v1569, 4294901760
      %v1571 = vsub.f32 %v1569, %v1570
      %v1572 = vand.u32 %v1571, 4294901760
      %1573 = vmatmul.mubr.f32.gmra.mrb[0].mxu0 %v1572
      %v1574 = vpop.f32.mrb[0].mxu0
      %v1575 = vadd.f32 0.0, %v1574
      %v1576 = vpop.f32.mrb[0].mxu0
      %v1577 = vadd.f32 0.0, %v1576
      %1578 = vmatprep.mubr.f32.mxu0 0.0
      %v1579 = vand.u32 %v1439, 4294901760
      %v1580 = vsub.f32 %v1439, %v1579
      %v1581 = vand.u32 %v1580, 4294901760
      %v1582 = vsub.f32 %v1580, %v1581
      %v1583 = vand.u32 %v1582, 4294901760
      %1584 = vmatmul.mubr.f32.gmra.mrb[0].mxu0 %v1583
      %v1585 = vpop.f32.mrb[0].mxu0
      %v1586 = vadd.f32 0.0, %v1585
      %v1587 = vpop.f32.mrb[0].mxu0
      %v1588 = vadd.f32 0.0, %v1587
      %1589 = vmatprep.mubr.f32.mxu0 0.0
      %v1590 = vand.u32 %v1442, 4294901760
      %v1591 = vsub.f32 %v1442, %v1590
      %v1592 = vand.u32 %v1591, 4294901760
      %v1593 = vsub.f32 %v1591, %v1592
      %v1594 = vand.u32 %v1593, 4294901760
      %1595 = vmatmul.mubr.f32.gmra.mrb[0].mxu0 %v1594
      %v1596 = vpop.f32.mrb[0].mxu0
      %v1597 = vadd.f32 0.0, %v1596
      %v1598 = vpop.f32.mrb[0].mxu0
      %v1599 = vadd.f32 0.0, %v1598
      %1600 = vmatprep.mubr.f32.mxu0 0.0
      %v1601 = vand.u32 %v1445, 4294901760
      %v1602 = vsub.f32 %v1445, %v1601
      %v1603 = vand.u32 %v1602, 4294901760
      %v1604 = vsub.f32 %v1602, %v1603
      %v1605 = vand.u32 %v1604, 4294901760
      %1606 = vmatmul.mubr.f32.gmra.mrb[0].mxu0 %v1605
      %v1607 = vpop.f32.mrb[0].mxu0
      %v1608 = vpop.f32.mrb[0].mxu0
      %v1609 = vadd.f32 0.0, %v1608
      %1610 = vmatprep.mubr.f32.mxu0 0.0
      %v1611 = vand.u32 %v1448, 4294901760
      %v1612 = vsub.f32 %v1448, %v1611
      %v1613 = vand.u32 %v1612, 4294901760
      %v1614 = vsub.f32 %v1612, %v1613
      %v1615 = vand.u32 %v1614, 4294901760
      %1616 = vmatmul.mubr.f32.gmra.mrb[0].mxu0 %v1615
      %v1617 = vpop.f32.mrb[0].mxu0
      %v1618 = vpop.f32.mrb[0].mxu0
      %v1619 = vadd.f32 0.0, %v1618
      %1620 = vmatprep.mubr.f32.mxu0 0.0
      %v1621 = vand.u32 %v1451, 4294901760
      %v1622 = vsub.f32 %v1451, %v1621
      %v1623 = vand.u32 %v1622, 4294901760
      %v1624 = vsub.f32 %v1622, %v1623
      %v1625 = vand.u32 %v1624, 4294901760
      %1626 = vmatmul.mubr.f32.gmra.mrb[0].mxu0 %v1625
      %v1627 = vpop.f32.mrb[0].mxu0
      %v1628 = vpop.f32.mrb[0].mxu0
      %v1629 = vadd.f32 0.0, %v1628
      %1630 = vmatprep.mubr.f32.mxu0 0.0
      %v1631 = vand.u32 %v1454, 4294901760
      %v1632 = vsub.f32 %v1454, %v1631
      %v1633 = vand.u32 %v1632, 4294901760
      %v1634 = vsub.f32 %v1632, %v1633
      %v1635 = vand.u32 %v1634, 4294901760
      %1636 = vmatmul.mubr.f32.gmra.mrb[0].mxu0 %v1635
      %v1637 = vpop.f32.mrb[0].mxu0
      %v1638 = vpop.f32.mrb[0].mxu0
      %v1639 = vadd.f32 0.0, %v1638
      %1640 = vmatprep.mubr.f32.mxu0 0.0
      %v1641 = vand.u32 %v1457, 4294901760
      %v1642 = vsub.f32 %v1457, %v1641
      %v1643 = vand.u32 %v1642, 4294901760
      %v1644 = vsub.f32 %v1642, %v1643
      %v1645 = vand.u32 %v1644, 4294901760
      %1646 = vmatmul.mubr.f32.gmra.mrb[0].mxu0 %v1645
      %v1647 = vpop.f32.mrb[0].mxu0
      %v1648 = vpop.f32.mrb[0].mxu0
      %v1649 = vadd.f32 0.0, %v1648
      %1650 = vmatprep.mubr.f32.mxu0 0.0
      %v1651 = vand.u32 %v1460, 4294901760
      %v1652 = vsub.f32 %v1460, %v1651
      %v1653 = vand.u32 %v1652, 4294901760
      %v1654 = vsub.f32 %v1652, %v1653
      %v1655 = vand.u32 %v1654, 4294901760
      %1656 = vmatmul.mubr.f32.gmra.mrb[0].mxu0 %v1655
      %v1657 = vpop.f32.mrb[0].mxu0
      %v1658 = vpop.f32.mrb[0].mxu0
      %v1659 = vadd.f32 0.0, %v1658
      %1660 = vdwg.mxu0
      %v1661 = vand.u32 %v1417, 4294901760
      %v1662 = vsub.f32 %v1417, %v1661
      %v1663 = vand.u32 %v1662, 4294901760
      %v1664 = vsub.f32 %v1662, %v1663
      %v1665 = vand.u32 %v1664, 4294901760
      %1666 = vmatprep.subr.mxu0 %v1665
      %v1667 = vand.u32 %v1416, 4294901760
      %v1668 = vsub.f32 %v1416, %v1667
      %v1669 = vand.u32 %v1668, 4294901760
      %v1670 = vsub.f32 %v1668, %v1669
      %v1671 = vand.u32 %v1670, 4294901760
      %1672 = vmatpush1.msra.mxu0 %v1671
      %v1673 = vand.u32 %v1421, 4294901760
      %v1674 = vsub.f32 %v1421, %v1673
      %v1675 = vand.u32 %v1674, 4294901760
      %v1676 = vsub.f32 %v1674, %v1675
      %v1677 = vand.u32 %v1676, 4294901760
      %1678 = vmatprep.subr.mxu0 %v1677
      %v1679 = vand.u32 %v1420, 4294901760
      %v1680 = vsub.f32 %v1420, %v1679
      %v1681 = vand.u32 %v1680, 4294901760
      %v1682 = vsub.f32 %v1680, %v1681
      %v1683 = vand.u32 %v1682, 4294901760
      %1684 = vmatpush1.msra.mxu0 %v1683
      %v1685 = vand.u32 %v1467, 4294901760
      %v1686 = vsub.f32 %v1467, %v1685
      %v1687 = vand.u32 %v1686, 4294901760
      %v1688 = vsub.f32 %v1686, %v1687
      %v1689 = vand.u32 %v1688, 4294901760
      %1690 = vmatprep.subr.mxu0 %v1689
      %v1691 = vand.u32 %v1464, 4294901760
      %v1692 = vsub.f32 %v1464, %v1691
      %v1693 = vand.u32 %v1692, 4294901760
      %v1694 = vsub.f32 %v1692, %v1693
      %v1695 = vand.u32 %v1694, 4294901760
      %1696 = vmatpush1.msra.mxu0 %v1695
      %1697 = vmatprep.subr.mxu0 0.0
      %1698 = vmatpush1.msra.mxu0 0.0
      %1699 = vmatprep.subr.mxu0 0.0
      %1700 = vmatpush1.msra.mxu0 0.0
      %1701 = vmatprep.subr.mxu0 0.0
      %1702 = vmatpush1.msra.mxu0 0.0
      %1703 = vmatprep.subr.mxu0 0.0
      %1704 = vmatpush1.msra.mxu0 0.0
      %1705 = vmatprep.subr.mxu0 0.0
      %1706 = vmatpush1.msra.mxu0 0.0
      %1707 = vmatprep.subr.mxu0 0.0
      %1708 = vmatpush1.msra.mxu0 0.0
      %1709 = vmatprep.subr.mxu0 0.0
      %1710 = vmatpush1.msra.mxu0 0.0
      %1711 = vmatprep.subr.mxu0 0.0
      %1712 = vmatpush1.msra.mxu0 0.0
      %1713 = vmatprep.subr.mxu0 0.0
      %1714 = vmatpush1.msra.mxu0 0.0
      %1715 = vmatprep.subr.mxu0 0.0
      %1716 = vmatpush1.msra.mxu0 0.0
      %1717 = vmatprep.subr.mxu0 0.0
      %1718 = vmatpush1.msra.mxu0 0.0
      %1719 = vmatprep.subr.mxu0 0.0
      %1720 = vmatpush1.msra.mxu0 0.0
      %1721 = vmatprep.subr.mxu0 0.0
      %1722 = vmatpush1.msra.mxu0 0.0
      %1723 = vmatprep.subr.mxu0 0.0
      %1724 = vmatpush1.msra.mxu0 0.0
      %1725 = vmatprep.subr.mxu0 0.0
      %1726 = vmatpush1.msra.mxu0 0.0
      %1727 = vmatprep.subr.mxu0 0.0
      %1728 = vmatpush1.msra.mxu0 0.0
      %1729 = vmatprep.subr.mxu0 0.0
      %1730 = vmatpush1.msra.mxu0 0.0
      %1731 = vmatprep.subr.mxu0 0.0
      %1732 = vmatpush1.msra.mxu0 0.0
      %1733 = vmatprep.subr.mxu0 0.0
      %1734 = vmatpush1.msra.mxu0 0.0
      %1735 = vmatprep.subr.mxu0 0.0
      %1736 = vmatpush1.msra.mxu0 0.0
      %1737 = vmatprep.subr.mxu0 0.0
      %1738 = vmatpush1.msra.mxu0 0.0
      %1739 = vmatprep.subr.mxu0 0.0
      %1740 = vmatpush1.msra.mxu0 0.0
      %1741 = vmatprep.subr.mxu0 0.0
      %1742 = vmatpush1.msra.mxu0 0.0
      %1743 = vmatprep.subr.mxu0 0.0
      %1744 = vmatpush1.msra.mxu0 0.0
      %1745 = vmatprep.subr.mxu0 0.0
      %1746 = vmatpush1.msra.mxu0 0.0
      %1747 = vmatprep.subr.mxu0 0.0
      %1748 = vmatpush1.msra.mxu0 0.0
      %1749 = vmatprep.subr.mxu0 0.0
      %1750 = vmatpush1.msra.mxu0 0.0
      %1751 = vmatprep.subr.mxu0 0.0
      %1752 = vmatpush1.msra.mxu0 0.0
      %1753 = vmatprep.subr.mxu0 0.0
      %1754 = vmatpush1.msra.mxu0 0.0
      %1755 = vmatprep.mubr.f32.mxu0 0.0
      %v1756 = vand.u32 %v1430, 4294901760
      %1757 = vmatmul.mubr.f32.gmra.mrb[0].mxu0 %v1756
      %v1758 = vpop.f32.mrb[0].mxu0
      %v1759 = vadd.f32 %v1553, %v1758
      %v1760 = vpop.f32.mrb[0].mxu0
      %v1761 = vadd.f32 %v1555, %v1760
      %1762 = vmatprep.mubr.f32.mxu0 0.0
      %v1763 = vand.u32 %v1433, 4294901760
      %1764 = vmatmul.mubr.f32.gmra.mrb[0].mxu0 %v1763
      %v1765 = vpop.f32.mrb[0].mxu0
      %v1766 = vadd.f32 %v1564, %v1765
      %v1767 = vpop.f32.mrb[0].mxu0
      %v1768 = vadd.f32 %v1566, %v1767
      %1769 = vmatprep.mubr.f32.mxu0 0.0
      %v1770 = vand.u32 %v1436, 4294901760
      %1771 = vmatmul.mubr.f32.gmra.mrb[0].mxu0 %v1770
      %v1772 = vpop.f32.mrb[0].mxu0
      %v1773 = vadd.f32 %v1575, %v1772
      %v1774 = vpop.f32.mrb[0].mxu0
      %v1775 = vadd.f32 %v1577, %v1774
      %1776 = vmatprep.mubr.f32.mxu0 0.0
      %v1777 = vand.u32 %v1439, 4294901760
      %1778 = vmatmul.mubr.f32.gmra.mrb[0].mxu0 %v1777
      %v1779 = vpop.f32.mrb[0].mxu0
      %v1780 = vadd.f32 %v1586, %v1779
      %v1781 = vpop.f32.mrb[0].mxu0
      %v1782 = vadd.f32 %v1588, %v1781
      %1783 = vmatprep.mubr.f32.mxu0 0.0
      %v1784 = vand.u32 %v1442, 4294901760
      %1785 = vmatmul.mubr.f32.gmra.mrb[0].mxu0 %v1784
      %v1786 = vpop.f32.mrb[0].mxu0
      %v1787 = vadd.f32 %v1597, %v1786
      %v1788 = vpop.f32.mrb[0].mxu0
      %v1789 = vadd.f32 %v1599, %v1788
      %1790 = vmatprep.mubr.f32.mxu0 0.0
      %v1791 = vand.u32 %v1445, 4294901760
      %1792 = vmatmul.mubr.f32.gmra.mrb[0].mxu0 %v1791
      %v1793 = vpop.f32.mrb[0].mxu0
      %v1794 = vpop.f32.mrb[0].mxu0
      %v1795 = vadd.f32 %v1609, %v1794
      %1796 = vmatprep.mubr.f32.mxu0 0.0
      %v1797 = vand.u32 %v1448, 4294901760
      %1798 = vmatmul.mubr.f32.gmra.mrb[0].mxu0 %v1797
      %v1799 = vpop.f32.mrb[0].mxu0
      %v1800 = vpop.f32.mrb[0].mxu0
      %v1801 = vadd.f32 %v1619, %v1800
      %1802 = vmatprep.mubr.f32.mxu0 0.0
      %v1803 = vand.u32 %v1451, 4294901760
      %1804 = vmatmul.mubr.f32.gmra.mrb[0].mxu0 %v1803
      %v1805 = vpop.f32.mrb[0].mxu0
      %v1806 = vpop.f32.mrb[0].mxu0
      %v1807 = vadd.f32 %v1629, %v1806
      %1808 = vmatprep.mubr.f32.mxu0 0.0
      %v1809 = vand.u32 %v1454, 4294901760
      %1810 = vmatmul.mubr.f32.gmra.mrb[0].mxu0 %v1809
      %v1811 = vpop.f32.mrb[0].mxu0
      %v1812 = vpop.f32.mrb[0].mxu0
      %v1813 = vadd.f32 %v1639, %v1812
      %1814 = vmatprep.mubr.f32.mxu0 0.0
      %v1815 = vand.u32 %v1457, 4294901760
      %1816 = vmatmul.mubr.f32.gmra.mrb[0].mxu0 %v1815
      %v1817 = vpop.f32.mrb[0].mxu0
      %v1818 = vpop.f32.mrb[0].mxu0
      %v1819 = vadd.f32 %v1649, %v1818
      %1820 = vmatprep.mubr.f32.mxu0 0.0
      %v1821 = vand.u32 %v1460, 4294901760
      %1822 = vmatmul.mubr.f32.gmra.mrb[0].mxu0 %v1821
      %v1823 = vpop.f32.mrb[0].mxu0
      %v1824 = vpop.f32.mrb[0].mxu0
      %v1825 = vadd.f32 %v1659, %v1824
      %1826 = vdwg.mxu0
      %v1827 = vand.u32 %v1417, 4294901760
      %v1828 = vsub.f32 %v1417, %v1827
      %1829 = vmatprep.subr.mxu0 %v1828
      %v1830 = vand.u32 %v1416, 4294901760
      %v1831 = vsub.f32 %v1416, %v1830
      %1832 = vmatpush1.msra.mxu0 %v1831
      %v1833 = vand.u32 %v1421, 4294901760
      %v1834 = vsub.f32 %v1421, %v1833
      %1835 = vmatprep.subr.mxu0 %v1834
      %v1836 = vand.u32 %v1420, 4294901760
      %v1837 = vsub.f32 %v1420, %v1836
      %1838 = vmatpush1.msra.mxu0 %v1837
      %v1839 = vand.u32 %v1467, 4294901760
      %v1840 = vsub.f32 %v1467, %v1839
      %1841 = vmatprep.subr.mxu0 %v1840
      %v1842 = vand.u32 %v1464, 4294901760
      %v1843 = vsub.f32 %v1464, %v1842
      %1844 = vmatpush1.msra.mxu0 %v1843
      %1845 = vmatprep.subr.mxu0 0.0
      %1846 = vmatpush1.msra.mxu0 0.0
      %1847 = vmatprep.subr.mxu0 0.0
      %1848 = vmatpush1.msra.mxu0 0.0
      %1849 = vmatprep.subr.mxu0 0.0
      %1850 = vmatpush1.msra.mxu0 0.0
      %1851 = vmatprep.subr.mxu0 0.0
      %1852 = vmatpush1.msra.mxu0 0.0
      %1853 = vmatprep.subr.mxu0 0.0
      %1854 = vmatpush1.msra.mxu0 0.0
      %1855 = vmatprep.subr.mxu0 0.0
      %1856 = vmatpush1.msra.mxu0 0.0
      %1857 = vmatprep.subr.mxu0 0.0
      %1858 = vmatpush1.msra.mxu0 0.0
      %1859 = vmatprep.subr.mxu0 0.0
      %1860 = vmatpush1.msra.mxu0 0.0
      %1861 = vmatprep.subr.mxu0 0.0
      %1862 = vmatpush1.msra.mxu0 0.0
      %1863 = vmatprep.subr.mxu0 0.0
      %1864 = vmatpush1.msra.mxu0 0.0
      %1865 = vmatprep.subr.mxu0 0.0
      %1866 = vmatpush1.msra.mxu0 0.0
      %1867 = vmatprep.subr.mxu0 0.0
      %1868 = vmatpush1.msra.mxu0 0.0
      %1869 = vmatprep.subr.mxu0 0.0
      %1870 = vmatpush1.msra.mxu0 0.0
      %1871 = vmatprep.subr.mxu0 0.0
      %1872 = vmatpush1.msra.mxu0 0.0
      %1873 = vmatprep.subr.mxu0 0.0
      %1874 = vmatpush1.msra.mxu0 0.0
      %1875 = vmatprep.subr.mxu0 0.0
      %1876 = vmatpush1.msra.mxu0 0.0
      %1877 = vmatprep.subr.mxu0 0.0
      %1878 = vmatpush1.msra.mxu0 0.0
      %1879 = vmatprep.subr.mxu0 0.0
      %1880 = vmatpush1.msra.mxu0 0.0
      %1881 = vmatprep.subr.mxu0 0.0
      %1882 = vmatpush1.msra.mxu0 0.0
      %1883 = vmatprep.subr.mxu0 0.0
      %1884 = vmatpush1.msra.mxu0 0.0
      %1885 = vmatprep.subr.mxu0 0.0
      %1886 = vmatpush1.msra.mxu0 0.0
      %1887 = vmatprep.subr.mxu0 0.0
      %1888 = vmatpush1.msra.mxu0 0.0
      %1889 = vmatprep.subr.mxu0 0.0
      %1890 = vmatpush1.msra.mxu0 0.0
      %1891 = vmatprep.subr.mxu0 0.0
      %1892 = vmatpush1.msra.mxu0 0.0
      %1893 = vmatprep.subr.mxu0 0.0
      %1894 = vmatpush1.msra.mxu0 0.0
      %1895 = vmatprep.subr.mxu0 0.0
      %1896 = vmatpush1.msra.mxu0 0.0
      %1897 = vmatprep.subr.mxu0 0.0
      %1898 = vmatpush1.msra.mxu0 0.0
      %1899 = vmatprep.subr.mxu0 0.0
      %1900 = vmatpush1.msra.mxu0 0.0
      %1901 = vmatprep.subr.mxu0 0.0
      %1902 = vmatpush1.msra.mxu0 0.0
      %1903 = vmatprep.mubr.f32.mxu0 0.0
      %v1904 = vand.u32 %v1430, 4294901760
      %v1905 = vsub.f32 %v1430, %v1904
      %1906 = vmatmul.mubr.f32.gmra.mrb[0].mxu0 %v1905
      %v1907 = vpop.f32.mrb[0].mxu0
      %v1908 = vadd.f32 %v1759, %v1907
      %v1909 = vpop.f32.mrb[0].mxu0
      %v1910 = vadd.f32 %v1761, %v1909
      %1911 = vmatprep.mubr.f32.mxu0 0.0
      %v1912 = vand.u32 %v1433, 4294901760
      %v1913 = vsub.f32 %v1433, %v1912
      %1914 = vmatmul.mubr.f32.gmra.mrb[0].mxu0 %v1913
      %v1915 = vpop.f32.mrb[0].mxu0
      %v1916 = vadd.f32 %v1766, %v1915
      %v1917 = vpop.f32.mrb[0].mxu0
      %v1918 = vadd.f32 %v1768, %v1917
      %1919 = vmatprep.mubr.f32.mxu0 0.0
      %v1920 = vand.u32 %v1436, 4294901760
      %v1921 = vsub.f32 %v1436, %v1920
      %1922 = vmatmul.mubr.f32.gmra.mrb[0].mxu0 %v1921
      %v1923 = vpop.f32.mrb[0].mxu0
      %v1924 = vadd.f32 %v1773, %v1923
      %v1925 = vpop.f32.mrb[0].mxu0
      %v1926 = vadd.f32 %v1775, %v1925
      %1927 = vmatprep.mubr.f32.mxu0 0.0
      %v1928 = vand.u32 %v1439, 4294901760
      %v1929 = vsub.f32 %v1439, %v1928
      %1930 = vmatmul.mubr.f32.gmra.mrb[0].mxu0 %v1929
      %v1931 = vpop.f32.mrb[0].mxu0
      %v1932 = vadd.f32 %v1780, %v1931
      %v1933 = vpop.f32.mrb[0].mxu0
      %v1934 = vadd.f32 %v1782, %v1933
      %1935 = vmatprep.mubr.f32.mxu0 0.0
      %v1936 = vand.u32 %v1442, 4294901760
      %v1937 = vsub.f32 %v1442, %v1936
      %1938 = vmatmul.mubr.f32.gmra.mrb[0].mxu0 %v1937
      %v1939 = vpop.f32.mrb[0].mxu0
      %v1940 = vadd.f32 %v1787, %v1939
      %v1941 = vpop.f32.mrb[0].mxu0
      %v1942 = vadd.f32 %v1789, %v1941
      %1943 = vmatprep.mubr.f32.mxu0 0.0
      %v1944 = vand.u32 %v1445, 4294901760
      %v1945 = vsub.f32 %v1445, %v1944
      %1946 = vmatmul.mubr.f32.gmra.mrb[0].mxu0 %v1945
      %v1947 = vpop.f32.mrb[0].mxu0
      %v1948 = vpop.f32.mrb[0].mxu0
      %v1949 = vadd.f32 %v1795, %v1948
      %1950 = vmatprep.mubr.f32.mxu0 0.0
      %v1951 = vand.u32 %v1448, 4294901760
      %v1952 = vsub.f32 %v1448, %v1951
      %1953 = vmatmul.mubr.f32.gmra.mrb[0].mxu0 %v1952
      %v1954 = vpop.f32.mrb[0].mxu0
      %v1955 = vpop.f32.mrb[0].mxu0
      %v1956 = vadd.f32 %v1801, %v1955
      %1957 = vmatprep.mubr.f32.mxu0 0.0
      %v1958 = vand.u32 %v1451, 4294901760
      %v1959 = vsub.f32 %v1451, %v1958
      %1960 = vmatmul.mubr.f32.gmra.mrb[0].mxu0 %v1959
      %v1961 = vpop.f32.mrb[0].mxu0
      %v1962 = vpop.f32.mrb[0].mxu0
      %v1963 = vadd.f32 %v1807, %v1962
      %1964 = vmatprep.mubr.f32.mxu0 0.0
      %v1965 = vand.u32 %v1454, 4294901760
      %v1966 = vsub.f32 %v1454, %v1965
      %1967 = vmatmul.mubr.f32.gmra.mrb[0].mxu0 %v1966
      %v1968 = vpop.f32.mrb[0].mxu0
      %v1969 = vpop.f32.mrb[0].mxu0
      %v1970 = vadd.f32 %v1813, %v1969
      %1971 = vmatprep.mubr.f32.mxu0 0.0
      %v1972 = vand.u32 %v1457, 4294901760
      %v1973 = vsub.f32 %v1457, %v1972
      %1974 = vmatmul.mubr.f32.gmra.mrb[0].mxu0 %v1973
      %v1975 = vpop.f32.mrb[0].mxu0
      %v1976 = vpop.f32.mrb[0].mxu0
      %v1977 = vadd.f32 %v1819, %v1976
      %1978 = vmatprep.mubr.f32.mxu0 0.0
      %v1979 = vand.u32 %v1460, 4294901760
      %v1980 = vsub.f32 %v1460, %v1979
      %1981 = vmatmul.mubr.f32.gmra.mrb[0].mxu0 %v1980
      %v1982 = vpop.f32.mrb[0].mxu0
      %v1983 = vpop.f32.mrb[0].mxu0
      %v1984 = vadd.f32 %v1825, %v1983
      %1985 = vdwg.mxu0
      %v1986 = vand.u32 %v1417, 4294901760
      %1987 = vmatprep.subr.mxu0 %v1986
      %v1988 = vand.u32 %v1416, 4294901760
      %1989 = vmatpush1.msra.mxu0 %v1988
      %v1990 = vand.u32 %v1421, 4294901760
      %1991 = vmatprep.subr.mxu0 %v1990
      %v1992 = vand.u32 %v1420, 4294901760
      %1993 = vmatpush1.msra.mxu0 %v1992
      %v1994 = vand.u32 %v1467, 4294901760
      %1995 = vmatprep.subr.mxu0 %v1994
      %v1996 = vand.u32 %v1464, 4294901760
      %1997 = vmatpush1.msra.mxu0 %v1996
      %1998 = vmatprep.subr.mxu0 0.0
      %1999 = vmatpush1.msra.mxu0 0.0
      %2000 = vmatprep.subr.mxu0 0.0
      %2001 = vmatpush1.msra.mxu0 0.0
      %2002 = vmatprep.subr.mxu0 0.0
      %2003 = vmatpush1.msra.mxu0 0.0
      %2004 = vmatprep.subr.mxu0 0.0
      %2005 = vmatpush1.msra.mxu0 0.0
      %2006 = vmatprep.subr.mxu0 0.0
      %2007 = vmatpush1.msra.mxu0 0.0
      %2008 = vmatprep.subr.mxu0 0.0
      %2009 = vmatpush1.msra.mxu0 0.0
      %2010 = vmatprep.subr.mxu0 0.0
      %2011 = vmatpush1.msra.mxu0 0.0
      %2012 = vmatprep.subr.mxu0 0.0
      %2013 = vmatpush1.msra.mxu0 0.0
      %2014 = vmatprep.subr.mxu0 0.0
      %2015 = vmatpush1.msra.mxu0 0.0
      %2016 = vmatprep.subr.mxu0 0.0
      %2017 = vmatpush1.msra.mxu0 0.0
      %2018 = vmatprep.subr.mxu0 0.0
      %2019 = vmatpush1.msra.mxu0 0.0
      %2020 = vmatprep.subr.mxu0 0.0
      %2021 = vmatpush1.msra.mxu0 0.0
      %2022 = vmatprep.subr.mxu0 0.0
      %2023 = vmatpush1.msra.mxu0 0.0
      %2024 = vmatprep.subr.mxu0 0.0
      %2025 = vmatpush1.msra.mxu0 0.0
      %2026 = vmatprep.subr.mxu0 0.0
      %2027 = vmatpush1.msra.mxu0 0.0
      %2028 = vmatprep.subr.mxu0 0.0
      %2029 = vmatpush1.msra.mxu0 0.0
      %2030 = vmatprep.subr.mxu0 0.0
      %2031 = vmatpush1.msra.mxu0 0.0
      %2032 = vmatprep.subr.mxu0 0.0
      %2033 = vmatpush1.msra.mxu0 0.0
      %2034 = vmatprep.subr.mxu0 0.0
      %2035 = vmatpush1.msra.mxu0 0.0
      %2036 = vmatprep.subr.mxu0 0.0
      %2037 = vmatpush1.msra.mxu0 0.0
      %2038 = vmatprep.subr.mxu0 0.0
      %2039 = vmatpush1.msra.mxu0 0.0
      %2040 = vmatprep.subr.mxu0 0.0
      %2041 = vmatpush1.msra.mxu0 0.0
      %2042 = vmatprep.subr.mxu0 0.0
      %2043 = vmatpush1.msra.mxu0 0.0
      %2044 = vmatprep.subr.mxu0 0.0
      %2045 = vmatpush1.msra.mxu0 0.0
      %2046 = vmatprep.subr.mxu0 0.0
      %2047 = vmatpush1.msra.mxu0 0.0
      %2048 = vmatprep.subr.mxu0 0.0
      %2049 = vmatpush1.msra.mxu0 0.0
      %2050 = vmatprep.subr.mxu0 0.0
      %2051 = vmatpush1.msra.mxu0 0.0
      %2052 = vmatprep.subr.mxu0 0.0
      %2053 = vmatpush1.msra.mxu0 0.0
      %2054 = vmatprep.subr.mxu0 0.0
      %2055 = vmatpush1.msra.mxu0 0.0
      %2056 = vmatprep.mubr.f32.mxu0 0.0
      %v2057 = vand.u32 %v1430, 4294901760
      %v2058 = vsub.f32 %v1430, %v2057
      %v2059 = vand.u32 %v2058, 4294901760
      %2060 = vmatmul.mubr.f32.gmra.mrb[0].mxu0 %v2059
      %v2061 = vpop.f32.mrb[0].mxu0
      %v2062 = vadd.f32 %v1908, %v2061
      %v2063 = vpop.f32.mrb[0].mxu0
      %v2064 = vadd.f32 %v1910, %v2063
      %2065 = vmatprep.mubr.f32.mxu0 0.0
      %v2066 = vand.u32 %v1433, 4294901760
      %v2067 = vsub.f32 %v1433, %v2066
      %v2068 = vand.u32 %v2067, 4294901760
      %2069 = vmatmul.mubr.f32.gmra.mrb[0].mxu0 %v2068
      %v2070 = vpop.f32.mrb[0].mxu0
      %v2071 = vadd.f32 %v1916, %v2070
      %v2072 = vpop.f32.mrb[0].mxu0
      %v2073 = vadd.f32 %v1918, %v2072
      %2074 = vmatprep.mubr.f32.mxu0 0.0
      %v2075 = vand.u32 %v1436, 4294901760
      %v2076 = vsub.f32 %v1436, %v2075
      %v2077 = vand.u32 %v2076, 4294901760
      %2078 = vmatmul.mubr.f32.gmra.mrb[0].mxu0 %v2077
      %v2079 = vpop.f32.mrb[0].mxu0
      %v2080 = vadd.f32 %v1924, %v2079
      %v2081 = vpop.f32.mrb[0].mxu0
      %v2082 = vadd.f32 %v1926, %v2081
      %2083 = vmatprep.mubr.f32.mxu0 0.0
      %v2084 = vand.u32 %v1439, 4294901760
      %v2085 = vsub.f32 %v1439, %v2084
      %v2086 = vand.u32 %v2085, 4294901760
      %2087 = vmatmul.mubr.f32.gmra.mrb[0].mxu0 %v2086
      %v2088 = vpop.f32.mrb[0].mxu0
      %v2089 = vadd.f32 %v1932, %v2088
      %v2090 = vpop.f32.mrb[0].mxu0
      %v2091 = vadd.f32 %v1934, %v2090
      %2092 = vmatprep.mubr.f32.mxu0 0.0
      %v2093 = vand.u32 %v1442, 4294901760
      %v2094 = vsub.f32 %v1442, %v2093
      %v2095 = vand.u32 %v2094, 4294901760
      %2096 = vmatmul.mubr.f32.gmra.mrb[0].mxu0 %v2095
      %v2097 = vpop.f32.mrb[0].mxu0
      %v2098 = vadd.f32 %v1940, %v2097
      %v2099 = vpop.f32.mrb[0].mxu0
      %v2100 = vadd.f32 %v1942, %v2099
      %2101 = vmatprep.mubr.f32.mxu0 0.0
      %v2102 = vand.u32 %v1445, 4294901760
      %v2103 = vsub.f32 %v1445, %v2102
      %v2104 = vand.u32 %v2103, 4294901760
      %2105 = vmatmul.mubr.f32.gmra.mrb[0].mxu0 %v2104
      %v2106 = vpop.f32.mrb[0].mxu0
      %v2107 = vpop.f32.mrb[0].mxu0
      %v2108 = vadd.f32 %v1949, %v2107
      %2109 = vmatprep.mubr.f32.mxu0 0.0
      %v2110 = vand.u32 %v1448, 4294901760
      %v2111 = vsub.f32 %v1448, %v2110
      %v2112 = vand.u32 %v2111, 4294901760
      %2113 = vmatmul.mubr.f32.gmra.mrb[0].mxu0 %v2112
      %v2114 = vpop.f32.mrb[0].mxu0
      %v2115 = vpop.f32.mrb[0].mxu0
      %v2116 = vadd.f32 %v1956, %v2115
      %2117 = vmatprep.mubr.f32.mxu0 0.0
      %v2118 = vand.u32 %v1451, 4294901760
      %v2119 = vsub.f32 %v1451, %v2118
      %v2120 = vand.u32 %v2119, 4294901760
      %2121 = vmatmul.mubr.f32.gmra.mrb[0].mxu0 %v2120
      %v2122 = vpop.f32.mrb[0].mxu0
      %v2123 = vpop.f32.mrb[0].mxu0
      %v2124 = vadd.f32 %v1963, %v2123
      %2125 = vmatprep.mubr.f32.mxu0 0.0
      %v2126 = vand.u32 %v1454, 4294901760
      %v2127 = vsub.f32 %v1454, %v2126
      %v2128 = vand.u32 %v2127, 4294901760
      %2129 = vmatmul.mubr.f32.gmra.mrb[0].mxu0 %v2128
      %v2130 = vpop.f32.mrb[0].mxu0
      %v2131 = vpop.f32.mrb[0].mxu0
      %v2132 = vadd.f32 %v1970, %v2131
      %2133 = vmatprep.mubr.f32.mxu0 0.0
      %v2134 = vand.u32 %v1457, 4294901760
      %v2135 = vsub.f32 %v1457, %v2134
      %v2136 = vand.u32 %v2135, 4294901760
      %2137 = vmatmul.mubr.f32.gmra.mrb[0].mxu0 %v2136
      %v2138 = vpop.f32.mrb[0].mxu0
      %v2139 = vpop.f32.mrb[0].mxu0
      %v2140 = vadd.f32 %v1977, %v2139
      %2141 = vmatprep.mubr.f32.mxu0 0.0
      %v2142 = vand.u32 %v1460, 4294901760
      %v2143 = vsub.f32 %v1460, %v2142
      %v2144 = vand.u32 %v2143, 4294901760
      %2145 = vmatmul.mubr.f32.gmra.mrb[0].mxu0 %v2144
      %v2146 = vpop.f32.mrb[0].mxu0
      %v2147 = vpop.f32.mrb[0].mxu0
      %v2148 = vadd.f32 %v1984, %v2147
      %2149 = vdwg.mxu0
      %v2150 = vand.u32 %v1417, 4294901760
      %v2151 = vsub.f32 %v1417, %v2150
      %v2152 = vand.u32 %v2151, 4294901760
      %2153 = vmatprep.subr.mxu0 %v2152
      %v2154 = vand.u32 %v1416, 4294901760
      %v2155 = vsub.f32 %v1416, %v2154
      %v2156 = vand.u32 %v2155, 4294901760
      %2157 = vmatpush1.msra.mxu0 %v2156
      %v2158 = vand.u32 %v1421, 4294901760
      %v2159 = vsub.f32 %v1421, %v2158
      %v2160 = vand.u32 %v2159, 4294901760
      %2161 = vmatprep.subr.mxu0 %v2160
      %v2162 = vand.u32 %v1420, 4294901760
      %v2163 = vsub.f32 %v1420, %v2162
      %v2164 = vand.u32 %v2163, 4294901760
      %2165 = vmatpush1.msra.mxu0 %v2164
      %v2166 = vand.u32 %v1467, 4294901760
      %v2167 = vsub.f32 %v1467, %v2166
      %v2168 = vand.u32 %v2167, 4294901760
      %2169 = vmatprep.subr.mxu0 %v2168
      %v2170 = vand.u32 %v1464, 4294901760
      %v2171 = vsub.f32 %v1464, %v2170
      %v2172 = vand.u32 %v2171, 4294901760
      %2173 = vmatpush1.msra.mxu0 %v2172
      %2174 = vmatprep.subr.mxu0 0.0
      %2175 = vmatpush1.msra.mxu0 0.0
      %2176 = vmatprep.subr.mxu0 0.0
      %2177 = vmatpush1.msra.mxu0 0.0
      %2178 = vmatprep.subr.mxu0 0.0
      %2179 = vmatpush1.msra.mxu0 0.0
      %2180 = vmatprep.subr.mxu0 0.0
      %2181 = vmatpush1.msra.mxu0 0.0
      %2182 = vmatprep.subr.mxu0 0.0
      %2183 = vmatpush1.msra.mxu0 0.0
      %2184 = vmatprep.subr.mxu0 0.0
      %2185 = vmatpush1.msra.mxu0 0.0
      %2186 = vmatprep.subr.mxu0 0.0
      %2187 = vmatpush1.msra.mxu0 0.0
      %2188 = vmatprep.subr.mxu0 0.0
      %2189 = vmatpush1.msra.mxu0 0.0
      %2190 = vmatprep.subr.mxu0 0.0
      %2191 = vmatpush1.msra.mxu0 0.0
      %2192 = vmatprep.subr.mxu0 0.0
      %2193 = vmatpush1.msra.mxu0 0.0
      %2194 = vmatprep.subr.mxu0 0.0
      %2195 = vmatpush1.msra.mxu0 0.0
      %2196 = vmatprep.subr.mxu0 0.0
      %2197 = vmatpush1.msra.mxu0 0.0
      %2198 = vmatprep.subr.mxu0 0.0
      %2199 = vmatpush1.msra.mxu0 0.0
      %2200 = vmatprep.subr.mxu0 0.0
      %2201 = vmatpush1.msra.mxu0 0.0
      %2202 = vmatprep.subr.mxu0 0.0
      %2203 = vmatpush1.msra.mxu0 0.0
      %2204 = vmatprep.subr.mxu0 0.0
      %2205 = vmatpush1.msra.mxu0 0.0
      %2206 = vmatprep.subr.mxu0 0.0
      %2207 = vmatpush1.msra.mxu0 0.0
      %2208 = vmatprep.subr.mxu0 0.0
      %2209 = vmatpush1.msra.mxu0 0.0
      %2210 = vmatprep.subr.mxu0 0.0
      %2211 = vmatpush1.msra.mxu0 0.0
      %2212 = vmatprep.subr.mxu0 0.0
      %2213 = vmatpush1.msra.mxu0 0.0
      %2214 = vmatprep.subr.mxu0 0.0
      %2215 = vmatpush1.msra.mxu0 0.0
      %2216 = vmatprep.subr.mxu0 0.0
      %2217 = vmatpush1.msra.mxu0 0.0
      %2218 = vmatprep.subr.mxu0 0.0
      %2219 = vmatpush1.msra.mxu0 0.0
      %2220 = vmatprep.subr.mxu0 0.0
      %2221 = vmatpush1.msra.mxu0 0.0
      %2222 = vmatprep.subr.mxu0 0.0
      %2223 = vmatpush1.msra.mxu0 0.0
      %2224 = vmatprep.subr.mxu0 0.0
      %2225 = vmatpush1.msra.mxu0 0.0
      %2226 = vmatprep.subr.mxu0 0.0
      %2227 = vmatpush1.msra.mxu0 0.0
      %2228 = vmatprep.subr.mxu0 0.0
      %2229 = vmatpush1.msra.mxu0 0.0
      %2230 = vmatprep.subr.mxu0 0.0
      %2231 = vmatpush1.msra.mxu0 0.0
      %2232 = vmatprep.mubr.f32.mxu0 0.0
      %v2233 = vand.u32 %v1430, 4294901760
      %2234 = vmatmul.mubr.f32.gmra.mrb[0].mxu0 %v2233
      %v2235 = vpop.f32.mrb[0].mxu0
      %v2236 = vadd.f32 %v2062, %v2235
      %v2237 = vpop.f32.mrb[0].mxu0
      %v2238 = vadd.f32 %v2064, %v2237
      %2239 = vmatprep.mubr.f32.mxu0 0.0
      %v2240 = vand.u32 %v1433, 4294901760
      %2241 = vmatmul.mubr.f32.gmra.mrb[0].mxu0 %v2240
      %v2242 = vpop.f32.mrb[0].mxu0
      %v2243 = vadd.f32 %v2071, %v2242
      %v2244 = vpop.f32.mrb[0].mxu0
      %v2245 = vadd.f32 %v2073, %v2244
      %2246 = vmatprep.mubr.f32.mxu0 0.0
      %v2247 = vand.u32 %v1436, 4294901760
      %2248 = vmatmul.mubr.f32.gmra.mrb[0].mxu0 %v2247
      %v2249 = vpop.f32.mrb[0].mxu0
      %v2250 = vadd.f32 %v2080, %v2249
      %v2251 = vpop.f32.mrb[0].mxu0
      %v2252 = vadd.f32 %v2082, %v2251
      %2253 = vmatprep.mubr.f32.mxu0 0.0
      %v2254 = vand.u32 %v1439, 4294901760
      %2255 = vmatmul.mubr.f32.gmra.mrb[0].mxu0 %v2254
      %v2256 = vpop.f32.mrb[0].mxu0
      %v2257 = vadd.f32 %v2089, %v2256
      %v2258 = vpop.f32.mrb[0].mxu0
      %v2259 = vadd.f32 %v2091, %v2258
      %2260 = vmatprep.mubr.f32.mxu0 0.0
      %v2261 = vand.u32 %v1442, 4294901760
      %2262 = vmatmul.mubr.f32.gmra.mrb[0].mxu0 %v2261
      %v2263 = vpop.f32.mrb[0].mxu0
      %v2264 = vadd.f32 %v2098, %v2263
      %v2265 = vpop.f32.mrb[0].mxu0
      %v2266 = vadd.f32 %v2100, %v2265
      %2267 = vmatprep.mubr.f32.mxu0 0.0
      %v2268 = vand.u32 %v1445, 4294901760
      %2269 = vmatmul.mubr.f32.gmra.mrb[0].mxu0 %v2268
      %v2270 = vpop.f32.mrb[0].mxu0
      %v2271 = vpop.f32.mrb[0].mxu0
      %v2272 = vadd.f32 %v2108, %v2271
      %2273 = vmatprep.mubr.f32.mxu0 0.0
      %v2274 = vand.u32 %v1448, 4294901760
      %2275 = vmatmul.mubr.f32.gmra.mrb[0].mxu0 %v2274
      %v2276 = vpop.f32.mrb[0].mxu0
      %v2277 = vpop.f32.mrb[0].mxu0
      %v2278 = vadd.f32 %v2116, %v2277
      %2279 = vmatprep.mubr.f32.mxu0 0.0
      %v2280 = vand.u32 %v1451, 4294901760
      %2281 = vmatmul.mubr.f32.gmra.mrb[0].mxu0 %v2280
      %v2282 = vpop.f32.mrb[0].mxu0
      %v2283 = vpop.f32.mrb[0].mxu0
      %v2284 = vadd.f32 %v2124, %v2283
      %2285 = vmatprep.mubr.f32.mxu0 0.0
      %v2286 = vand.u32 %v1454, 4294901760
      %2287 = vmatmul.mubr.f32.gmra.mrb[0].mxu0 %v2286
      %v2288 = vpop.f32.mrb[0].mxu0
      %v2289 = vpop.f32.mrb[0].mxu0
      %v2290 = vadd.f32 %v2132, %v2289
      %2291 = vmatprep.mubr.f32.mxu0 0.0
      %v2292 = vand.u32 %v1457, 4294901760
      %2293 = vmatmul.mubr.f32.gmra.mrb[0].mxu0 %v2292
      %v2294 = vpop.f32.mrb[0].mxu0
      %v2295 = vpop.f32.mrb[0].mxu0
      %v2296 = vadd.f32 %v2140, %v2295
      %2297 = vmatprep.mubr.f32.mxu0 0.0
      %v2298 = vand.u32 %v1460, 4294901760
      %2299 = vmatmul.mubr.f32.gmra.mrb[0].mxu0 %v2298
      %v2300 = vpop.f32.mrb[0].mxu0
      %v2301 = vpop.f32.mrb[0].mxu0
      %v2302 = vadd.f32 %v2148, %v2301
      %2303 = vdwg.mxu0
      %v2304 = vand.u32 %v1417, 4294901760
      %2305 = vmatprep.subr.mxu0 %v2304
      %v2306 = vand.u32 %v1416, 4294901760
      %2307 = vmatpush1.msra.mxu0 %v2306
      %v2308 = vand.u32 %v1421, 4294901760
      %2309 = vmatprep.subr.mxu0 %v2308
      %v2310 = vand.u32 %v1420, 4294901760
      %2311 = vmatpush1.msra.mxu0 %v2310
      %v2312 = vand.u32 %v1467, 4294901760
      %2313 = vmatprep.subr.mxu0 %v2312
      %v2314 = vand.u32 %v1464, 4294901760
      %2315 = vmatpush1.msra.mxu0 %v2314
      %2316 = vmatprep.subr.mxu0 0.0
      %2317 = vmatpush1.msra.mxu0 0.0
      %2318 = vmatprep.subr.mxu0 0.0
      %2319 = vmatpush1.msra.mxu0 0.0
      %2320 = vmatprep.subr.mxu0 0.0
      %2321 = vmatpush1.msra.mxu0 0.0
      %2322 = vmatprep.subr.mxu0 0.0
      %2323 = vmatpush1.msra.mxu0 0.0
      %2324 = vmatprep.subr.mxu0 0.0
      %2325 = vmatpush1.msra.mxu0 0.0
      %2326 = vmatprep.subr.mxu0 0.0
      %2327 = vmatpush1.msra.mxu0 0.0
      %2328 = vmatprep.subr.mxu0 0.0
      %2329 = vmatpush1.msra.mxu0 0.0
      %2330 = vmatprep.subr.mxu0 0.0
      %2331 = vmatpush1.msra.mxu0 0.0
      %2332 = vmatprep.subr.mxu0 0.0
      %2333 = vmatpush1.msra.mxu0 0.0
      %2334 = vmatprep.subr.mxu0 0.0
      %2335 = vmatpush1.msra.mxu0 0.0
      %2336 = vmatprep.subr.mxu0 0.0
      %2337 = vmatpush1.msra.mxu0 0.0
      %2338 = vmatprep.subr.mxu0 0.0
      %2339 = vmatpush1.msra.mxu0 0.0
      %2340 = vmatprep.subr.mxu0 0.0
      %2341 = vmatpush1.msra.mxu0 0.0
      %2342 = vmatprep.subr.mxu0 0.0
      %2343 = vmatpush1.msra.mxu0 0.0
      %2344 = vmatprep.subr.mxu0 0.0
      %2345 = vmatpush1.msra.mxu0 0.0
      %2346 = vmatprep.subr.mxu0 0.0
      %2347 = vmatpush1.msra.mxu0 0.0
      %2348 = vmatprep.subr.mxu0 0.0
      %2349 = vmatpush1.msra.mxu0 0.0
      %2350 = vmatprep.subr.mxu0 0.0
      %2351 = vmatpush1.msra.mxu0 0.0
      %2352 = vmatprep.subr.mxu0 0.0
      %2353 = vmatpush1.msra.mxu0 0.0
      %2354 = vmatprep.subr.mxu0 0.0
      %2355 = vmatpush1.msra.mxu0 0.0
      %2356 = vmatprep.subr.mxu0 0.0
      %2357 = vmatpush1.msra.mxu0 0.0
      %2358 = vmatprep.subr.mxu0 0.0
      %2359 = vmatpush1.msra.mxu0 0.0
      %2360 = vmatprep.subr.mxu0 0.0
      %2361 = vmatpush1.msra.mxu0 0.0
      %2362 = vmatprep.subr.mxu0 0.0
      %2363 = vmatpush1.msra.mxu0 0.0
      %2364 = vmatprep.subr.mxu0 0.0
      %2365 = vmatpush1.msra.mxu0 0.0
      %2366 = vmatprep.subr.mxu0 0.0
      %2367 = vmatpush1.msra.mxu0 0.0
      %2368 = vmatprep.subr.mxu0 0.0
      %2369 = vmatpush1.msra.mxu0 0.0
      %2370 = vmatprep.subr.mxu0 0.0
      %2371 = vmatpush1.msra.mxu0 0.0
      %2372 = vmatprep.subr.mxu0 0.0
      %2373 = vmatpush1.msra.mxu0 0.0
      %2374 = vmatprep.mubr.f32.mxu0 0.0
      %v2375 = vand.u32 %v1430, 4294901760
      %2376 = vmatmul.mubr.f32.gmra.mrb[0].mxu0 %v2375
      %v2377 = vpop.f32.mrb[0].mxu0
      %v2378 = vadd.f32 %v2236, %v2377
      %v2379 = vpop.f32.mrb[0].mxu0
      %v2380 = vadd.f32 %v2238, %v2379
      %2381 = vmatprep.mubr.f32.mxu0 0.0
      %v2382 = vand.u32 %v1433, 4294901760
      %2383 = vmatmul.mubr.f32.gmra.mrb[0].mxu0 %v2382
      %v2384 = vpop.f32.mrb[0].mxu0
      %v2385 = vadd.f32 %v2243, %v2384
      %v2386 = vpop.f32.mrb[0].mxu0
      %v2387 = vadd.f32 %v2245, %v2386
      %2388 = vmatprep.mubr.f32.mxu0 0.0
      %v2389 = vand.u32 %v1436, 4294901760
      %2390 = vmatmul.mubr.f32.gmra.mrb[0].mxu0 %v2389
      %v2391 = vpop.f32.mrb[0].mxu0
      %v2392 = vadd.f32 %v2250, %v2391
      %v2393 = vpop.f32.mrb[0].mxu0
      %v2394 = vadd.f32 %v2252, %v2393
      %2395 = vmatprep.mubr.f32.mxu0 0.0
      %v2396 = vand.u32 %v1439, 4294901760
      %2397 = vmatmul.mubr.f32.gmra.mrb[0].mxu0 %v2396
      %v2398 = vpop.f32.mrb[0].mxu0
      %v2399 = vadd.f32 %v2257, %v2398
      %v2400 = vpop.f32.mrb[0].mxu0
      %v2401 = vadd.f32 %v2259, %v2400
      %2402 = vmatprep.mubr.f32.mxu0 0.0
      %v2403 = vand.u32 %v1442, 4294901760
      %2404 = vmatmul.mubr.f32.gmra.mrb[0].mxu0 %v2403
      %v2405 = vpop.f32.mrb[0].mxu0
      %v2406 = vadd.f32 %v2264, %v2405
      %v2407 = vpop.f32.mrb[0].mxu0
      %v2408 = vadd.f32 %v2266, %v2407
      %2409 = vmatprep.mubr.f32.mxu0 0.0
      %v2410 = vand.u32 %v1445, 4294901760
      %2411 = vmatmul.mubr.f32.gmra.mrb[0].mxu0 %v2410
      %v2412 = vpop.f32.mrb[0].mxu0
      %v2413 = vpop.f32.mrb[0].mxu0
      %v2414 = vadd.f32 %v2272, %v2413
      %2415 = vmatprep.mubr.f32.mxu0 0.0
      %v2416 = vand.u32 %v1448, 4294901760
      %2417 = vmatmul.mubr.f32.gmra.mrb[0].mxu0 %v2416
      %v2418 = vpop.f32.mrb[0].mxu0
      %v2419 = vpop.f32.mrb[0].mxu0
      %v2420 = vadd.f32 %v2278, %v2419
      %2421 = vmatprep.mubr.f32.mxu0 0.0
      %v2422 = vand.u32 %v1451, 4294901760
      %2423 = vmatmul.mubr.f32.gmra.mrb[0].mxu0 %v2422
      %v2424 = vpop.f32.mrb[0].mxu0
      %v2425 = vpop.f32.mrb[0].mxu0
      %v2426 = vadd.f32 %v2284, %v2425
      %2427 = vmatprep.mubr.f32.mxu0 0.0
      %v2428 = vand.u32 %v1454, 4294901760
      %2429 = vmatmul.mubr.f32.gmra.mrb[0].mxu0 %v2428
      %v2430 = vpop.f32.mrb[0].mxu0
      %v2431 = vpop.f32.mrb[0].mxu0
      %v2432 = vadd.f32 %v2290, %v2431
      %2433 = vmatprep.mubr.f32.mxu0 0.0
      %v2434 = vand.u32 %v1457, 4294901760
      %2435 = vmatmul.mubr.f32.gmra.mrb[0].mxu0 %v2434
      %v2436 = vpop.f32.mrb[0].mxu0
      %v2437 = vpop.f32.mrb[0].mxu0
      %v2438 = vadd.f32 %v2296, %v2437
      %2439 = vmatprep.mubr.f32.mxu0 0.0
      %v2440 = vand.u32 %v1460, 4294901760
      %2441 = vmatmul.mubr.f32.gmra.mrb[0].mxu0 %v2440
      %v2442 = vpop.f32.mrb[0].mxu0
      %v2443 = vpop.f32.mrb[0].mxu0
      %v2444 = vadd.f32 %v2302, %v2443
      %2445 = vdwg.mxu0
      %v2446 = vand.u32 %v1419, 4294901760
      %2447 = vmatprep.subr.mxu0 %v2446
      %v2448 = vand.u32 %v1418, 4294901760
      %2449 = vmatpush1.msra.mxu0 %v2448
      %v2450 = vand.u32 %v1423, 4294901760
      %2451 = vmatprep.subr.mxu0 %v2450
      %v2452 = vand.u32 %v1422, 4294901760
      %2453 = vmatpush1.msra.mxu0 %v2452
      %v2454 = vand.u32 %v1473, 4294901760
      %2455 = vmatprep.subr.mxu0 %v2454
      %v2456 = vand.u32 %v1470, 4294901760
      %2457 = vmatpush1.msra.mxu0 %v2456
      %2458 = vmatprep.subr.mxu0 0.0
      %2459 = vmatpush1.msra.mxu0 0.0
      %2460 = vmatprep.subr.mxu0 0.0
      %2461 = vmatpush1.msra.mxu0 0.0
      %2462 = vmatprep.subr.mxu0 0.0
      %2463 = vmatpush1.msra.mxu0 0.0
      %2464 = vmatprep.subr.mxu0 0.0
      %2465 = vmatpush1.msra.mxu0 0.0
      %2466 = vmatprep.subr.mxu0 0.0
      %2467 = vmatpush1.msra.mxu0 0.0
      %2468 = vmatprep.subr.mxu0 0.0
      %2469 = vmatpush1.msra.mxu0 0.0
      %2470 = vmatprep.subr.mxu0 0.0
      %2471 = vmatpush1.msra.mxu0 0.0
      %2472 = vmatprep.subr.mxu0 0.0
      %2473 = vmatpush1.msra.mxu0 0.0
      %2474 = vmatprep.subr.mxu0 0.0
      %2475 = vmatpush1.msra.mxu0 0.0
      %2476 = vmatprep.subr.mxu0 0.0
      %2477 = vmatpush1.msra.mxu0 0.0
      %2478 = vmatprep.subr.mxu0 0.0
      %2479 = vmatpush1.msra.mxu0 0.0
      %2480 = vmatprep.subr.mxu0 0.0
      %2481 = vmatpush1.msra.mxu0 0.0
      %2482 = vmatprep.subr.mxu0 0.0
      %2483 = vmatpush1.msra.mxu0 0.0
      %2484 = vmatprep.subr.mxu0 0.0
      %2485 = vmatpush1.msra.mxu0 0.0
      %2486 = vmatprep.subr.mxu0 0.0
      %2487 = vmatpush1.msra.mxu0 0.0
      %2488 = vmatprep.subr.mxu0 0.0
      %2489 = vmatpush1.msra.mxu0 0.0
      %2490 = vmatprep.subr.mxu0 0.0
      %2491 = vmatpush1.msra.mxu0 0.0
      %2492 = vmatprep.subr.mxu0 0.0
      %2493 = vmatpush1.msra.mxu0 0.0
      %2494 = vmatprep.subr.mxu0 0.0
      %2495 = vmatpush1.msra.mxu0 0.0
      %2496 = vmatprep.subr.mxu0 0.0
      %2497 = vmatpush1.msra.mxu0 0.0
      %2498 = vmatprep.subr.mxu0 0.0
      %2499 = vmatpush1.msra.mxu0 0.0
      %2500 = vmatprep.subr.mxu0 0.0
      %2501 = vmatpush1.msra.mxu0 0.0
      %2502 = vmatprep.subr.mxu0 0.0
      %2503 = vmatpush1.msra.mxu0 0.0
      %2504 = vmatprep.subr.mxu0 0.0
      %2505 = vmatpush1.msra.mxu0 0.0
      %2506 = vmatprep.subr.mxu0 0.0
      %2507 = vmatpush1.msra.mxu0 0.0
      %2508 = vmatprep.subr.mxu0 0.0
      %2509 = vmatpush1.msra.mxu0 0.0
      %2510 = vmatprep.subr.mxu0 0.0
      %2511 = vmatpush1.msra.mxu0 0.0
      %2512 = vmatprep.subr.mxu0 0.0
      %2513 = vmatpush1.msra.mxu0 0.0
      %2514 = vmatprep.subr.mxu0 0.0
      %2515 = vmatpush1.msra.mxu0 0.0
      %2516 = vmatprep.mubr.f32.mxu0 0.0
      %v2517 = vand.u32 %v1430, 4294901760
      %v2518 = vsub.f32 %v1430, %v2517
      %v2519 = vand.u32 %v2518, 4294901760
      %v2520 = vsub.f32 %v2518, %v2519
      %v2521 = vand.u32 %v2520, 4294901760
      %2522 = vmatmul.mubr.f32.gmra.mrb[0].mxu0 %v2521
      %v2523 = vpop.f32.mrb[0].mxu0
      %v2524 = vadd.f32 0.0, %v2523
      %v2525 = vpop.f32.mrb[0].mxu0
      %2526 = vmatprep.mubr.f32.mxu0 0.0
      %v2527 = vand.u32 %v1433, 4294901760
      %v2528 = vsub.f32 %v1433, %v2527
      %v2529 = vand.u32 %v2528, 4294901760
      %v2530 = vsub.f32 %v2528, %v2529
      %v2531 = vand.u32 %v2530, 4294901760
      %2532 = vmatmul.mubr.f32.gmra.mrb[0].mxu0 %v2531
      %v2533 = vpop.f32.mrb[0].mxu0
      %v2534 = vadd.f32 0.0, %v2533
      %v2535 = vpop.f32.mrb[0].mxu0
      %2536 = vmatprep.mubr.f32.mxu0 0.0
      %v2537 = vand.u32 %v1436, 4294901760
      %v2538 = vsub.f32 %v1436, %v2537
      %v2539 = vand.u32 %v2538, 4294901760
      %v2540 = vsub.f32 %v2538, %v2539
      %v2541 = vand.u32 %v2540, 4294901760
      %2542 = vmatmul.mubr.f32.gmra.mrb[0].mxu0 %v2541
      %v2543 = vpop.f32.mrb[0].mxu0
      %v2544 = vadd.f32 0.0, %v2543
      %v2545 = vpop.f32.mrb[0].mxu0
      %2546 = vmatprep.mubr.f32.mxu0 0.0
      %v2547 = vand.u32 %v1439, 4294901760
      %v2548 = vsub.f32 %v1439, %v2547
      %v2549 = vand.u32 %v2548, 4294901760
      %v2550 = vsub.f32 %v2548, %v2549
      %v2551 = vand.u32 %v2550, 4294901760
      %2552 = vmatmul.mubr.f32.gmra.mrb[0].mxu0 %v2551
      %v2553 = vpop.f32.mrb[0].mxu0
      %v2554 = vadd.f32 0.0, %v2553
      %v2555 = vpop.f32.mrb[0].mxu0
      %2556 = vmatprep.mubr.f32.mxu0 0.0
      %v2557 = vand.u32 %v1442, 4294901760
      %v2558 = vsub.f32 %v1442, %v2557
      %v2559 = vand.u32 %v2558, 4294901760
      %v2560 = vsub.f32 %v2558, %v2559
      %v2561 = vand.u32 %v2560, 4294901760
      %2562 = vmatmul.mubr.f32.gmra.mrb[0].mxu0 %v2561
      %v2563 = vpop.f32.mrb[0].mxu0
      %v2564 = vadd.f32 0.0, %v2563
      %v2565 = vpop.f32.mrb[0].mxu0
      %2566 = vmatprep.mubr.f32.mxu0 0.0
      %v2567 = vand.u32 %v1445, 4294901760
      %v2568 = vsub.f32 %v1445, %v2567
      %v2569 = vand.u32 %v2568, 4294901760
      %v2570 = vsub.f32 %v2568, %v2569
      %v2571 = vand.u32 %v2570, 4294901760
      %2572 = vmatmul.mubr.f32.gmra.mrb[0].mxu0 %v2571
      %v2573 = vpop.f32.mrb[0].mxu0
      %v2574 = vadd.f32 0.0, %v2573
      %v2575 = vpop.f32.mrb[0].mxu0
      %v2576 = vadd.f32 0.0, %v2575
      %2577 = vmatprep.mubr.f32.mxu0 0.0
      %v2578 = vand.u32 %v1448, 4294901760
      %v2579 = vsub.f32 %v1448, %v2578
      %v2580 = vand.u32 %v2579, 4294901760
      %v2581 = vsub.f32 %v2579, %v2580
      %v2582 = vand.u32 %v2581, 4294901760
      %2583 = vmatmul.mubr.f32.gmra.mrb[0].mxu0 %v2582
      %v2584 = vpop.f32.mrb[0].mxu0
      %v2585 = vadd.f32 0.0, %v2584
      %v2586 = vpop.f32.mrb[0].mxu0
      %v2587 = vadd.f32 0.0, %v2586
      %2588 = vmatprep.mubr.f32.mxu0 0.0
      %v2589 = vand.u32 %v1451, 4294901760
      %v2590 = vsub.f32 %v1451, %v2589
      %v2591 = vand.u32 %v2590, 4294901760
      %v2592 = vsub.f32 %v2590, %v2591
      %v2593 = vand.u32 %v2592, 4294901760
      %2594 = vmatmul.mubr.f32.gmra.mrb[0].mxu0 %v2593
      %v2595 = vpop.f32.mrb[0].mxu0
      %v2596 = vadd.f32 0.0, %v2595
      %v2597 = vpop.f32.mrb[0].mxu0
      %v2598 = vadd.f32 0.0, %v2597
      %2599 = vmatprep.mubr.f32.mxu0 0.0
      %v2600 = vand.u32 %v1454, 4294901760
      %v2601 = vsub.f32 %v1454, %v2600
      %v2602 = vand.u32 %v2601, 4294901760
      %v2603 = vsub.f32 %v2601, %v2602
      %v2604 = vand.u32 %v2603, 4294901760
      %2605 = vmatmul.mubr.f32.gmra.mrb[0].mxu0 %v2604
      %v2606 = vpop.f32.mrb[0].mxu0
      %v2607 = vadd.f32 0.0, %v2606
      %v2608 = vpop.f32.mrb[0].mxu0
      %v2609 = vadd.f32 0.0, %v2608
      %2610 = vmatprep.mubr.f32.mxu0 0.0
      %v2611 = vand.u32 %v1457, 4294901760
      %v2612 = vsub.f32 %v1457, %v2611
      %v2613 = vand.u32 %v2612, 4294901760
      %v2614 = vsub.f32 %v2612, %v2613
      %v2615 = vand.u32 %v2614, 4294901760
      %2616 = vmatmul.mubr.f32.gmra.mrb[0].mxu0 %v2615
      %v2617 = vpop.f32.mrb[0].mxu0
      %v2618 = vadd.f32 0.0, %v2617
      %v2619 = vpop.f32.mrb[0].mxu0
      %v2620 = vadd.f32 0.0, %v2619
      %2621 = vmatprep.mubr.f32.mxu0 0.0
      %v2622 = vand.u32 %v1460, 4294901760
      %v2623 = vsub.f32 %v1460, %v2622
      %v2624 = vand.u32 %v2623, 4294901760
      %v2625 = vsub.f32 %v2623, %v2624
      %v2626 = vand.u32 %v2625, 4294901760
      %2627 = vmatmul.mubr.f32.gmra.mrb[0].mxu0 %v2626
      %v2628 = vpop.f32.mrb[0].mxu0
      %v2629 = vadd.f32 0.0, %v2628
      %v2630 = vpop.f32.mrb[0].mxu0
      %v2631 = vadd.f32 0.0, %v2630
      %2632 = vdwg.mxu0
      %v2633 = vand.u32 %v1419, 4294901760
      %v2634 = vsub.f32 %v1419, %v2633
      %v2635 = vand.u32 %v2634, 4294901760
      %v2636 = vsub.f32 %v2634, %v2635
      %v2637 = vand.u32 %v2636, 4294901760
      %2638 = vmatprep.subr.mxu0 %v2637
      %v2639 = vand.u32 %v1418, 4294901760
      %v2640 = vsub.f32 %v1418, %v2639
      %v2641 = vand.u32 %v2640, 4294901760
      %v2642 = vsub.f32 %v2640, %v2641
      %v2643 = vand.u32 %v2642, 4294901760
      %2644 = vmatpush1.msra.mxu0 %v2643
      %v2645 = vand.u32 %v1423, 4294901760
      %v2646 = vsub.f32 %v1423, %v2645
      %v2647 = vand.u32 %v2646, 4294901760
      %v2648 = vsub.f32 %v2646, %v2647
      %v2649 = vand.u32 %v2648, 4294901760
      %2650 = vmatprep.subr.mxu0 %v2649
      %v2651 = vand.u32 %v1422, 4294901760
      %v2652 = vsub.f32 %v1422, %v2651
      %v2653 = vand.u32 %v2652, 4294901760
      %v2654 = vsub.f32 %v2652, %v2653
      %v2655 = vand.u32 %v2654, 4294901760
      %2656 = vmatpush1.msra.mxu0 %v2655
      %v2657 = vand.u32 %v1473, 4294901760
      %v2658 = vsub.f32 %v1473, %v2657
      %v2659 = vand.u32 %v2658, 4294901760
      %v2660 = vsub.f32 %v2658, %v2659
      %v2661 = vand.u32 %v2660, 4294901760
      %2662 = vmatprep.subr.mxu0 %v2661
      %v2663 = vand.u32 %v1470, 4294901760
      %v2664 = vsub.f32 %v1470, %v2663
      %v2665 = vand.u32 %v2664, 4294901760
      %v2666 = vsub.f32 %v2664, %v2665
      %v2667 = vand.u32 %v2666, 4294901760
      %2668 = vmatpush1.msra.mxu0 %v2667
      %2669 = vmatprep.subr.mxu0 0.0
      %2670 = vmatpush1.msra.mxu0 0.0
      %2671 = vmatprep.subr.mxu0 0.0
      %2672 = vmatpush1.msra.mxu0 0.0
      %2673 = vmatprep.subr.mxu0 0.0
      %2674 = vmatpush1.msra.mxu0 0.0
      %2675 = vmatprep.subr.mxu0 0.0
      %2676 = vmatpush1.msra.mxu0 0.0
      %2677 = vmatprep.subr.mxu0 0.0
      %2678 = vmatpush1.msra.mxu0 0.0
      %2679 = vmatprep.subr.mxu0 0.0
      %2680 = vmatpush1.msra.mxu0 0.0
      %2681 = vmatprep.subr.mxu0 0.0
      %2682 = vmatpush1.msra.mxu0 0.0
      %2683 = vmatprep.subr.mxu0 0.0
      %2684 = vmatpush1.msra.mxu0 0.0
      %2685 = vmatprep.subr.mxu0 0.0
      %2686 = vmatpush1.msra.mxu0 0.0
      %2687 = vmatprep.subr.mxu0 0.0
      %2688 = vmatpush1.msra.mxu0 0.0
      %2689 = vmatprep.subr.mxu0 0.0
      %2690 = vmatpush1.msra.mxu0 0.0
      %2691 = vmatprep.subr.mxu0 0.0
      %2692 = vmatpush1.msra.mxu0 0.0
      %2693 = vmatprep.subr.mxu0 0.0
      %2694 = vmatpush1.msra.mxu0 0.0
      %2695 = vmatprep.subr.mxu0 0.0
      %2696 = vmatpush1.msra.mxu0 0.0
      %2697 = vmatprep.subr.mxu0 0.0
      %2698 = vmatpush1.msra.mxu0 0.0
      %2699 = vmatprep.subr.mxu0 0.0
      %2700 = vmatpush1.msra.mxu0 0.0
      %2701 = vmatprep.subr.mxu0 0.0
      %2702 = vmatpush1.msra.mxu0 0.0
      %2703 = vmatprep.subr.mxu0 0.0
      %2704 = vmatpush1.msra.mxu0 0.0
      %2705 = vmatprep.subr.mxu0 0.0
      %2706 = vmatpush1.msra.mxu0 0.0
      %2707 = vmatprep.subr.mxu0 0.0
      %2708 = vmatpush1.msra.mxu0 0.0
      %2709 = vmatprep.subr.mxu0 0.0
      %2710 = vmatpush1.msra.mxu0 0.0
      %2711 = vmatprep.subr.mxu0 0.0
      %2712 = vmatpush1.msra.mxu0 0.0
      %2713 = vmatprep.subr.mxu0 0.0
      %2714 = vmatpush1.msra.mxu0 0.0
      %2715 = vmatprep.subr.mxu0 0.0
      %2716 = vmatpush1.msra.mxu0 0.0
      %2717 = vmatprep.subr.mxu0 0.0
      %2718 = vmatpush1.msra.mxu0 0.0
      %2719 = vmatprep.subr.mxu0 0.0
      %2720 = vmatpush1.msra.mxu0 0.0
      %2721 = vmatprep.subr.mxu0 0.0
      %2722 = vmatpush1.msra.mxu0 0.0
      %2723 = vmatprep.subr.mxu0 0.0
      %2724 = vmatpush1.msra.mxu0 0.0
      %2725 = vmatprep.subr.mxu0 0.0
      %2726 = vmatpush1.msra.mxu0 0.0
      %2727 = vmatprep.mubr.f32.mxu0 0.0
      %v2728 = vand.u32 %v1430, 4294901760
      %2729 = vmatmul.mubr.f32.gmra.mrb[0].mxu0 %v2728
      %v2730 = vpop.f32.mrb[0].mxu0
      %v2731 = vadd.f32 %v2524, %v2730
      %v2732 = vpop.f32.mrb[0].mxu0
      %2733 = vmatprep.mubr.f32.mxu0 0.0
      %v2734 = vand.u32 %v1433, 4294901760
      %2735 = vmatmul.mubr.f32.gmra.mrb[0].mxu0 %v2734
      %v2736 = vpop.f32.mrb[0].mxu0
      %v2737 = vadd.f32 %v2534, %v2736
      %v2738 = vpop.f32.mrb[0].mxu0
      %2739 = vmatprep.mubr.f32.mxu0 0.0
      %v2740 = vand.u32 %v1436, 4294901760
      %2741 = vmatmul.mubr.f32.gmra.mrb[0].mxu0 %v2740
      %v2742 = vpop.f32.mrb[0].mxu0
      %v2743 = vadd.f32 %v2544, %v2742
      %v2744 = vpop.f32.mrb[0].mxu0
      %2745 = vmatprep.mubr.f32.mxu0 0.0
      %v2746 = vand.u32 %v1439, 4294901760
      %2747 = vmatmul.mubr.f32.gmra.mrb[0].mxu0 %v2746
      %v2748 = vpop.f32.mrb[0].mxu0
      %v2749 = vadd.f32 %v2554, %v2748
      %v2750 = vpop.f32.mrb[0].mxu0
      %2751 = vmatprep.mubr.f32.mxu0 0.0
      %v2752 = vand.u32 %v1442, 4294901760
      %2753 = vmatmul.mubr.f32.gmra.mrb[0].mxu0 %v2752
      %v2754 = vpop.f32.mrb[0].mxu0
      %v2755 = vadd.f32 %v2564, %v2754
      %v2756 = vpop.f32.mrb[0].mxu0
      %2757 = vmatprep.mubr.f32.mxu0 0.0
      %v2758 = vand.u32 %v1445, 4294901760
      %2759 = vmatmul.mubr.f32.gmra.mrb[0].mxu0 %v2758
      %v2760 = vpop.f32.mrb[0].mxu0
      %v2761 = vadd.f32 %v2574, %v2760
      %v2762 = vpop.f32.mrb[0].mxu0
      %v2763 = vadd.f32 %v2576, %v2762
      %2764 = vmatprep.mubr.f32.mxu0 0.0
      %v2765 = vand.u32 %v1448, 4294901760
      %2766 = vmatmul.mubr.f32.gmra.mrb[0].mxu0 %v2765
      %v2767 = vpop.f32.mrb[0].mxu0
      %v2768 = vadd.f32 %v2585, %v2767
      %v2769 = vpop.f32.mrb[0].mxu0
      %v2770 = vadd.f32 %v2587, %v2769
      %2771 = vmatprep.mubr.f32.mxu0 0.0
      %v2772 = vand.u32 %v1451, 4294901760
      %2773 = vmatmul.mubr.f32.gmra.mrb[0].mxu0 %v2772
      %v2774 = vpop.f32.mrb[0].mxu0
      %v2775 = vadd.f32 %v2596, %v2774
      %v2776 = vpop.f32.mrb[0].mxu0
      %v2777 = vadd.f32 %v2598, %v2776
      %2778 = vmatprep.mubr.f32.mxu0 0.0
      %v2779 = vand.u32 %v1454, 4294901760
      %2780 = vmatmul.mubr.f32.gmra.mrb[0].mxu0 %v2779
      %v2781 = vpop.f32.mrb[0].mxu0
      %v2782 = vadd.f32 %v2607, %v2781
      %v2783 = vpop.f32.mrb[0].mxu0
      %v2784 = vadd.f32 %v2609, %v2783
      %2785 = vmatprep.mubr.f32.mxu0 0.0
      %v2786 = vand.u32 %v1457, 4294901760
      %2787 = vmatmul.mubr.f32.gmra.mrb[0].mxu0 %v2786
      %v2788 = vpop.f32.mrb[0].mxu0
      %v2789 = vadd.f32 %v2618, %v2788
      %v2790 = vpop.f32.mrb[0].mxu0
      %v2791 = vadd.f32 %v2620, %v2790
      %2792 = vmatprep.mubr.f32.mxu0 0.0
      %v2793 = vand.u32 %v1460, 4294901760
      %2794 = vmatmul.mubr.f32.gmra.mrb[0].mxu0 %v2793
      %v2795 = vpop.f32.mrb[0].mxu0
      %v2796 = vadd.f32 %v2629, %v2795
      %v2797 = vpop.f32.mrb[0].mxu0
      %v2798 = vadd.f32 %v2631, %v2797
      %2799 = vdwg.mxu0
      %v2800 = vand.u32 %v1419, 4294901760
      %v2801 = vsub.f32 %v1419, %v2800
      %2802 = vmatprep.subr.mxu0 %v2801
      %v2803 = vand.u32 %v1418, 4294901760
      %v2804 = vsub.f32 %v1418, %v2803
      %2805 = vmatpush1.msra.mxu0 %v2804
      %v2806 = vand.u32 %v1423, 4294901760
      %v2807 = vsub.f32 %v1423, %v2806
      %2808 = vmatprep.subr.mxu0 %v2807
      %v2809 = vand.u32 %v1422, 4294901760
      %v2810 = vsub.f32 %v1422, %v2809
      %2811 = vmatpush1.msra.mxu0 %v2810
      %v2812 = vand.u32 %v1473, 4294901760
      %v2813 = vsub.f32 %v1473, %v2812
      %2814 = vmatprep.subr.mxu0 %v2813
      %v2815 = vand.u32 %v1470, 4294901760
      %v2816 = vsub.f32 %v1470, %v2815
      %2817 = vmatpush1.msra.mxu0 %v2816
      %2818 = vmatprep.subr.mxu0 0.0
      %2819 = vmatpush1.msra.mxu0 0.0
      %2820 = vmatprep.subr.mxu0 0.0
      %2821 = vmatpush1.msra.mxu0 0.0
      %2822 = vmatprep.subr.mxu0 0.0
      %2823 = vmatpush1.msra.mxu0 0.0
      %2824 = vmatprep.subr.mxu0 0.0
      %2825 = vmatpush1.msra.mxu0 0.0
      %2826 = vmatprep.subr.mxu0 0.0
      %2827 = vmatpush1.msra.mxu0 0.0
      %2828 = vmatprep.subr.mxu0 0.0
      %2829 = vmatpush1.msra.mxu0 0.0
      %2830 = vmatprep.subr.mxu0 0.0
      %2831 = vmatpush1.msra.mxu0 0.0
      %2832 = vmatprep.subr.mxu0 0.0
      %2833 = vmatpush1.msra.mxu0 0.0
      %2834 = vmatprep.subr.mxu0 0.0
      %2835 = vmatpush1.msra.mxu0 0.0
      %2836 = vmatprep.subr.mxu0 0.0
      %2837 = vmatpush1.msra.mxu0 0.0
      %2838 = vmatprep.subr.mxu0 0.0
      %2839 = vmatpush1.msra.mxu0 0.0
      %2840 = vmatprep.subr.mxu0 0.0
      %2841 = vmatpush1.msra.mxu0 0.0
      %2842 = vmatprep.subr.mxu0 0.0
      %2843 = vmatpush1.msra.mxu0 0.0
      %2844 = vmatprep.subr.mxu0 0.0
      %2845 = vmatpush1.msra.mxu0 0.0
      %2846 = vmatprep.subr.mxu0 0.0
      %2847 = vmatpush1.msra.mxu0 0.0
      %2848 = vmatprep.subr.mxu0 0.0
      %2849 = vmatpush1.msra.mxu0 0.0
      %2850 = vmatprep.subr.mxu0 0.0
      %2851 = vmatpush1.msra.mxu0 0.0
      %2852 = vmatprep.subr.mxu0 0.0
      %2853 = vmatpush1.msra.mxu0 0.0
      %2854 = vmatprep.subr.mxu0 0.0
      %2855 = vmatpush1.msra.mxu0 0.0
      %2856 = vmatprep.subr.mxu0 0.0
      %2857 = vmatpush1.msra.mxu0 0.0
      %2858 = vmatprep.subr.mxu0 0.0
      %2859 = vmatpush1.msra.mxu0 0.0
      %2860 = vmatprep.subr.mxu0 0.0
      %2861 = vmatpush1.msra.mxu0 0.0
      %2862 = vmatprep.subr.mxu0 0.0
      %2863 = vmatpush1.msra.mxu0 0.0
      %2864 = vmatprep.subr.mxu0 0.0
      %2865 = vmatpush1.msra.mxu0 0.0
      %2866 = vmatprep.subr.mxu0 0.0
      %2867 = vmatpush1.msra.mxu0 0.0
      %2868 = vmatprep.subr.mxu0 0.0
      %2869 = vmatpush1.msra.mxu0 0.0
      %2870 = vmatprep.subr.mxu0 0.0
      %2871 = vmatpush1.msra.mxu0 0.0
      %2872 = vmatprep.subr.mxu0 0.0
      %2873 = vmatpush1.msra.mxu0 0.0
      %2874 = vmatprep.subr.mxu0 0.0
      %2875 = vmatpush1.msra.mxu0 0.0
      %2876 = vmatprep.mubr.f32.mxu0 0.0
      %v2877 = vand.u32 %v1430, 4294901760
      %v2878 = vsub.f32 %v1430, %v2877
      %2879 = vmatmul.mubr.f32.gmra.mrb[0].mxu0 %v2878
      %v2880 = vpop.f32.mrb[0].mxu0
      %v2881 = vadd.f32 %v2731, %v2880
      %v2882 = vpop.f32.mrb[0].mxu0
      %2883 = vmatprep.mubr.f32.mxu0 0.0
      %v2884 = vand.u32 %v1433, 4294901760
      %v2885 = vsub.f32 %v1433, %v2884
      %2886 = vmatmul.mubr.f32.gmra.mrb[0].mxu0 %v2885
      %v2887 = vpop.f32.mrb[0].mxu0
      %v2888 = vadd.f32 %v2737, %v2887
      %v2889 = vpop.f32.mrb[0].mxu0
      %2890 = vmatprep.mubr.f32.mxu0 0.0
      %v2891 = vand.u32 %v1436, 4294901760
      %v2892 = vsub.f32 %v1436, %v2891
      %2893 = vmatmul.mubr.f32.gmra.mrb[0].mxu0 %v2892
      %v2894 = vpop.f32.mrb[0].mxu0
      %v2895 = vadd.f32 %v2743, %v2894
      %v2896 = vpop.f32.mrb[0].mxu0
      %2897 = vmatprep.mubr.f32.mxu0 0.0
      %v2898 = vand.u32 %v1439, 4294901760
      %v2899 = vsub.f32 %v1439, %v2898
      %2900 = vmatmul.mubr.f32.gmra.mrb[0].mxu0 %v2899
      %v2901 = vpop.f32.mrb[0].mxu0
      %v2902 = vadd.f32 %v2749, %v2901
      %v2903 = vpop.f32.mrb[0].mxu0
      %2904 = vmatprep.mubr.f32.mxu0 0.0
      %v2905 = vand.u32 %v1442, 4294901760
      %v2906 = vsub.f32 %v1442, %v2905
      %2907 = vmatmul.mubr.f32.gmra.mrb[0].mxu0 %v2906
      %v2908 = vpop.f32.mrb[0].mxu0
      %v2909 = vadd.f32 %v2755, %v2908
      %v2910 = vpop.f32.mrb[0].mxu0
      %2911 = vmatprep.mubr.f32.mxu0 0.0
      %v2912 = vand.u32 %v1445, 4294901760
      %v2913 = vsub.f32 %v1445, %v2912
      %2914 = vmatmul.mubr.f32.gmra.mrb[0].mxu0 %v2913
      %v2915 = vpop.f32.mrb[0].mxu0
      %v2916 = vadd.f32 %v2761, %v2915
      %v2917 = vpop.f32.mrb[0].mxu0
      %v2918 = vadd.f32 %v2763, %v2917
      %2919 = vmatprep.mubr.f32.mxu0 0.0
      %v2920 = vand.u32 %v1448, 4294901760
      %v2921 = vsub.f32 %v1448, %v2920
      %2922 = vmatmul.mubr.f32.gmra.mrb[0].mxu0 %v2921
      %v2923 = vpop.f32.mrb[0].mxu0
      %v2924 = vadd.f32 %v2768, %v2923
      %v2925 = vpop.f32.mrb[0].mxu0
      %v2926 = vadd.f32 %v2770, %v2925
      %2927 = vmatprep.mubr.f32.mxu0 0.0
      %v2928 = vand.u32 %v1451, 4294901760
      %v2929 = vsub.f32 %v1451, %v2928
      %2930 = vmatmul.mubr.f32.gmra.mrb[0].mxu0 %v2929
      %v2931 = vpop.f32.mrb[0].mxu0
      %v2932 = vadd.f32 %v2775, %v2931
      %v2933 = vpop.f32.mrb[0].mxu0
      %v2934 = vadd.f32 %v2777, %v2933
      %2935 = vmatprep.mubr.f32.mxu0 0.0
      %v2936 = vand.u32 %v1454, 4294901760
      %v2937 = vsub.f32 %v1454, %v2936
      %2938 = vmatmul.mubr.f32.gmra.mrb[0].mxu0 %v2937
      %v2939 = vpop.f32.mrb[0].mxu0
      %v2940 = vadd.f32 %v2782, %v2939
      %v2941 = vpop.f32.mrb[0].mxu0
      %v2942 = vadd.f32 %v2784, %v2941
      %2943 = vmatprep.mubr.f32.mxu0 0.0
      %v2944 = vand.u32 %v1457, 4294901760
      %v2945 = vsub.f32 %v1457, %v2944
      %2946 = vmatmul.mubr.f32.gmra.mrb[0].mxu0 %v2945
      %v2947 = vpop.f32.mrb[0].mxu0
      %v2948 = vadd.f32 %v2789, %v2947
      %v2949 = vpop.f32.mrb[0].mxu0
      %v2950 = vadd.f32 %v2791, %v2949
      %2951 = vmatprep.mubr.f32.mxu0 0.0
      %v2952 = vand.u32 %v1460, 4294901760
      %v2953 = vsub.f32 %v1460, %v2952
      %2954 = vmatmul.mubr.f32.gmra.mrb[0].mxu0 %v2953
      %v2955 = vpop.f32.mrb[0].mxu0
      %v2956 = vadd.f32 %v2796, %v2955
      %v2957 = vpop.f32.mrb[0].mxu0
      %v2958 = vadd.f32 %v2798, %v2957
      %2959 = vdwg.mxu0
      %v2960 = vand.u32 %v1419, 4294901760
      %2961 = vmatprep.subr.mxu0 %v2960
      %v2962 = vand.u32 %v1418, 4294901760
      %2963 = vmatpush1.msra.mxu0 %v2962
      %v2964 = vand.u32 %v1423, 4294901760
      %2965 = vmatprep.subr.mxu0 %v2964
      %v2966 = vand.u32 %v1422, 4294901760
      %2967 = vmatpush1.msra.mxu0 %v2966
      %v2968 = vand.u32 %v1473, 4294901760
      %2969 = vmatprep.subr.mxu0 %v2968
      %v2970 = vand.u32 %v1470, 4294901760
      %2971 = vmatpush1.msra.mxu0 %v2970
      %2972 = vmatprep.subr.mxu0 0.0
      %2973 = vmatpush1.msra.mxu0 0.0
      %2974 = vmatprep.subr.mxu0 0.0
      %2975 = vmatpush1.msra.mxu0 0.0
      %2976 = vmatprep.subr.mxu0 0.0
      %2977 = vmatpush1.msra.mxu0 0.0
      %2978 = vmatprep.subr.mxu0 0.0
      %2979 = vmatpush1.msra.mxu0 0.0
      %2980 = vmatprep.subr.mxu0 0.0
      %2981 = vmatpush1.msra.mxu0 0.0
      %2982 = vmatprep.subr.mxu0 0.0
      %2983 = vmatpush1.msra.mxu0 0.0
      %2984 = vmatprep.subr.mxu0 0.0
      %2985 = vmatpush1.msra.mxu0 0.0
      %2986 = vmatprep.subr.mxu0 0.0
      %2987 = vmatpush1.msra.mxu0 0.0
      %2988 = vmatprep.subr.mxu0 0.0
      %2989 = vmatpush1.msra.mxu0 0.0
      %2990 = vmatprep.subr.mxu0 0.0
      %2991 = vmatpush1.msra.mxu0 0.0
      %2992 = vmatprep.subr.mxu0 0.0
      %2993 = vmatpush1.msra.mxu0 0.0
      %2994 = vmatprep.subr.mxu0 0.0
      %2995 = vmatpush1.msra.mxu0 0.0
      %2996 = vmatprep.subr.mxu0 0.0
      %2997 = vmatpush1.msra.mxu0 0.0
      %2998 = vmatprep.subr.mxu0 0.0
      %2999 = vmatpush1.msra.mxu0 0.0
      %3000 = vmatprep.subr.mxu0 0.0
      %3001 = vmatpush1.msra.mxu0 0.0
      %3002 = vmatprep.subr.mxu0 0.0
      %3003 = vmatpush1.msra.mxu0 0.0
      %3004 = vmatprep.subr.mxu0 0.0
      %3005 = vmatpush1.msra.mxu0 0.0
      %3006 = vmatprep.subr.mxu0 0.0
      %3007 = vmatpush1.msra.mxu0 0.0
      %3008 = vmatprep.subr.mxu0 0.0
      %3009 = vmatpush1.msra.mxu0 0.0
      %3010 = vmatprep.subr.mxu0 0.0
      %3011 = vmatpush1.msra.mxu0 0.0
      %3012 = vmatprep.subr.mxu0 0.0
      %3013 = vmatpush1.msra.mxu0 0.0
      %3014 = vmatprep.subr.mxu0 0.0
      %3015 = vmatpush1.msra.mxu0 0.0
      %3016 = vmatprep.subr.mxu0 0.0
      %3017 = vmatpush1.msra.mxu0 0.0
      %3018 = vmatprep.subr.mxu0 0.0
      %3019 = vmatpush1.msra.mxu0 0.0
      %3020 = vmatprep.subr.mxu0 0.0
      %3021 = vmatpush1.msra.mxu0 0.0
      %3022 = vmatprep.subr.mxu0 0.0
      %3023 = vmatpush1.msra.mxu0 0.0
      %3024 = vmatprep.subr.mxu0 0.0
      %3025 = vmatpush1.msra.mxu0 0.0
      %3026 = vmatprep.subr.mxu0 0.0
      %3027 = vmatpush1.msra.mxu0 0.0
      %3028 = vmatprep.subr.mxu0 0.0
      %3029 = vmatpush1.msra.mxu0 0.0
      %3030 = vmatprep.mubr.f32.mxu0 0.0
      %v3031 = vand.u32 %v1430, 4294901760
      %v3032 = vsub.f32 %v1430, %v3031
      %v3033 = vand.u32 %v3032, 4294901760
      %3034 = vmatmul.mubr.f32.gmra.mrb[0].mxu0 %v3033
      %v3035 = vpop.f32.mrb[0].mxu0
      %v3036 = vadd.f32 %v2881, %v3035
      %v3037 = vpop.f32.mrb[0].mxu0
      %3038 = vmatprep.mubr.f32.mxu0 0.0
      %v3039 = vand.u32 %v1433, 4294901760
      %v3040 = vsub.f32 %v1433, %v3039
      %v3041 = vand.u32 %v3040, 4294901760
      %3042 = vmatmul.mubr.f32.gmra.mrb[0].mxu0 %v3041
      %v3043 = vpop.f32.mrb[0].mxu0
      %v3044 = vadd.f32 %v2888, %v3043
      %v3045 = vpop.f32.mrb[0].mxu0
      %3046 = vmatprep.mubr.f32.mxu0 0.0
      %v3047 = vand.u32 %v1436, 4294901760
      %v3048 = vsub.f32 %v1436, %v3047
      %v3049 = vand.u32 %v3048, 4294901760
      %3050 = vmatmul.mubr.f32.gmra.mrb[0].mxu0 %v3049
      %v3051 = vpop.f32.mrb[0].mxu0
      %v3052 = vadd.f32 %v2895, %v3051
      %v3053 = vpop.f32.mrb[0].mxu0
      %3054 = vmatprep.mubr.f32.mxu0 0.0
      %v3055 = vand.u32 %v1439, 4294901760
      %v3056 = vsub.f32 %v1439, %v3055
      %v3057 = vand.u32 %v3056, 4294901760
      %3058 = vmatmul.mubr.f32.gmra.mrb[0].mxu0 %v3057
      %v3059 = vpop.f32.mrb[0].mxu0
      %v3060 = vadd.f32 %v2902, %v3059
      %v3061 = vpop.f32.mrb[0].mxu0
      %3062 = vmatprep.mubr.f32.mxu0 0.0
      %v3063 = vand.u32 %v1442, 4294901760
      %v3064 = vsub.f32 %v1442, %v3063
      %v3065 = vand.u32 %v3064, 4294901760
      %3066 = vmatmul.mubr.f32.gmra.mrb[0].mxu0 %v3065
      %v3067 = vpop.f32.mrb[0].mxu0
      %v3068 = vadd.f32 %v2909, %v3067
      %v3069 = vpop.f32.mrb[0].mxu0
      %3070 = vmatprep.mubr.f32.mxu0 0.0
      %v3071 = vand.u32 %v1445, 4294901760
      %v3072 = vsub.f32 %v1445, %v3071
      %v3073 = vand.u32 %v3072, 4294901760
      %3074 = vmatmul.mubr.f32.gmra.mrb[0].mxu0 %v3073
      %v3075 = vpop.f32.mrb[0].mxu0
      %v3076 = vadd.f32 %v2916, %v3075
      %v3077 = vpop.f32.mrb[0].mxu0
      %v3078 = vadd.f32 %v2918, %v3077
      %3079 = vmatprep.mubr.f32.mxu0 0.0
      %v3080 = vand.u32 %v1448, 4294901760
      %v3081 = vsub.f32 %v1448, %v3080
      %v3082 = vand.u32 %v3081, 4294901760
      %3083 = vmatmul.mubr.f32.gmra.mrb[0].mxu0 %v3082
      %v3084 = vpop.f32.mrb[0].mxu0
      %v3085 = vadd.f32 %v2924, %v3084
      %v3086 = vpop.f32.mrb[0].mxu0
      %v3087 = vadd.f32 %v2926, %v3086
      %3088 = vmatprep.mubr.f32.mxu0 0.0
      %v3089 = vand.u32 %v1451, 4294901760
      %v3090 = vsub.f32 %v1451, %v3089
      %v3091 = vand.u32 %v3090, 4294901760
      %3092 = vmatmul.mubr.f32.gmra.mrb[0].mxu0 %v3091
      %v3093 = vpop.f32.mrb[0].mxu0
      %v3094 = vadd.f32 %v2932, %v3093
      %v3095 = vpop.f32.mrb[0].mxu0
      %v3096 = vadd.f32 %v2934, %v3095
      %3097 = vmatprep.mubr.f32.mxu0 0.0
      %v3098 = vand.u32 %v1454, 4294901760
      %v3099 = vsub.f32 %v1454, %v3098
      %v3100 = vand.u32 %v3099, 4294901760
      %3101 = vmatmul.mubr.f32.gmra.mrb[0].mxu0 %v3100
      %v3102 = vpop.f32.mrb[0].mxu0
      %v3103 = vadd.f32 %v2940, %v3102
      %v3104 = vpop.f32.mrb[0].mxu0
      %v3105 = vadd.f32 %v2942, %v3104
      %3106 = vmatprep.mubr.f32.mxu0 0.0
      %v3107 = vand.u32 %v1457, 4294901760
      %v3108 = vsub.f32 %v1457, %v3107
      %v3109 = vand.u32 %v3108, 4294901760
      %3110 = vmatmul.mubr.f32.gmra.mrb[0].mxu0 %v3109
      %v3111 = vpop.f32.mrb[0].mxu0
      %v3112 = vadd.f32 %v2948, %v3111
      %v3113 = vpop.f32.mrb[0].mxu0
      %v3114 = vadd.f32 %v2950, %v3113
      %3115 = vmatprep.mubr.f32.mxu0 0.0
      %v3116 = vand.u32 %v1460, 4294901760
      %v3117 = vsub.f32 %v1460, %v3116
      %v3118 = vand.u32 %v3117, 4294901760
      %3119 = vmatmul.mubr.f32.gmra.mrb[0].mxu0 %v3118
      %v3120 = vpop.f32.mrb[0].mxu0
      %v3121 = vadd.f32 %v2956, %v3120
      %v3122 = vpop.f32.mrb[0].mxu0
      %v3123 = vadd.f32 %v2958, %v3122
      %3124 = vdwg.mxu0
      %v3125 = vand.u32 %v1419, 4294901760
      %v3126 = vsub.f32 %v1419, %v3125
      %v3127 = vand.u32 %v3126, 4294901760
      %3128 = vmatprep.subr.mxu0 %v3127
      %v3129 = vand.u32 %v1418, 4294901760
      %v3130 = vsub.f32 %v1418, %v3129
      %v3131 = vand.u32 %v3130, 4294901760
      %3132 = vmatpush1.msra.mxu0 %v3131
      %v3133 = vand.u32 %v1423, 4294901760
      %v3134 = vsub.f32 %v1423, %v3133
      %v3135 = vand.u32 %v3134, 4294901760
      %3136 = vmatprep.subr.mxu0 %v3135
      %v3137 = vand.u32 %v1422, 4294901760
      %v3138 = vsub.f32 %v1422, %v3137
      %v3139 = vand.u32 %v3138, 4294901760
      %3140 = vmatpush1.msra.mxu0 %v3139
      %v3141 = vand.u32 %v1473, 4294901760
      %v3142 = vsub.f32 %v1473, %v3141
      %v3143 = vand.u32 %v3142, 4294901760
      %3144 = vmatprep.subr.mxu0 %v3143
      %v3145 = vand.u32 %v1470, 4294901760
      %v3146 = vsub.f32 %v1470, %v3145
      %v3147 = vand.u32 %v3146, 4294901760
      %3148 = vmatpush1.msra.mxu0 %v3147
      %3149 = vmatprep.subr.mxu0 0.0
      %3150 = vmatpush1.msra.mxu0 0.0
      %3151 = vmatprep.subr.mxu0 0.0
      %3152 = vmatpush1.msra.mxu0 0.0
      %3153 = vmatprep.subr.mxu0 0.0
      %3154 = vmatpush1.msra.mxu0 0.0
      %3155 = vmatprep.subr.mxu0 0.0
      %3156 = vmatpush1.msra.mxu0 0.0
      %3157 = vmatprep.subr.mxu0 0.0
      %3158 = vmatpush1.msra.mxu0 0.0
      %3159 = vmatprep.subr.mxu0 0.0
      %3160 = vmatpush1.msra.mxu0 0.0
      %3161 = vmatprep.subr.mxu0 0.0
      %3162 = vmatpush1.msra.mxu0 0.0
      %3163 = vmatprep.subr.mxu0 0.0
      %3164 = vmatpush1.msra.mxu0 0.0
      %3165 = vmatprep.subr.mxu0 0.0
      %3166 = vmatpush1.msra.mxu0 0.0
      %3167 = vmatprep.subr.mxu0 0.0
      %3168 = vmatpush1.msra.mxu0 0.0
      %3169 = vmatprep.subr.mxu0 0.0
      %3170 = vmatpush1.msra.mxu0 0.0
      %3171 = vmatprep.subr.mxu0 0.0
      %3172 = vmatpush1.msra.mxu0 0.0
      %3173 = vmatprep.subr.mxu0 0.0
      %3174 = vmatpush1.msra.mxu0 0.0
      %3175 = vmatprep.subr.mxu0 0.0
      %3176 = vmatpush1.msra.mxu0 0.0
      %3177 = vmatprep.subr.mxu0 0.0
      %3178 = vmatpush1.msra.mxu0 0.0
      %3179 = vmatprep.subr.mxu0 0.0
      %3180 = vmatpush1.msra.mxu0 0.0
      %3181 = vmatprep.subr.mxu0 0.0
      %3182 = vmatpush1.msra.mxu0 0.0
      %3183 = vmatprep.subr.mxu0 0.0
      %3184 = vmatpush1.msra.mxu0 0.0
      %3185 = vmatprep.subr.mxu0 0.0
      %3186 = vmatpush1.msra.mxu0 0.0
      %3187 = vmatprep.subr.mxu0 0.0
      %3188 = vmatpush1.msra.mxu0 0.0
      %3189 = vmatprep.subr.mxu0 0.0
      %3190 = vmatpush1.msra.mxu0 0.0
      %3191 = vmatprep.subr.mxu0 0.0
      %3192 = vmatpush1.msra.mxu0 0.0
      %3193 = vmatprep.subr.mxu0 0.0
      %3194 = vmatpush1.msra.mxu0 0.0
      %3195 = vmatprep.subr.mxu0 0.0
      %3196 = vmatpush1.msra.mxu0 0.0
      %3197 = vmatprep.subr.mxu0 0.0
      %3198 = vmatpush1.msra.mxu0 0.0
      %3199 = vmatprep.subr.mxu0 0.0
      %3200 = vmatpush1.msra.mxu0 0.0
      %3201 = vmatprep.subr.mxu0 0.0
      %3202 = vmatpush1.msra.mxu0 0.0
      %3203 = vmatprep.subr.mxu0 0.0
      %3204 = vmatpush1.msra.mxu0 0.0
      %3205 = vmatprep.subr.mxu0 0.0
      %3206 = vmatpush1.msra.mxu0 0.0
      %3207 = vmatprep.mubr.f32.mxu0 0.0
      %v3208 = vand.u32 %v1430, 4294901760
      %3209 = vmatmul.mubr.f32.gmra.mrb[0].mxu0 %v3208
      %v3210 = vpop.f32.mrb[0].mxu0
      %v3211 = vadd.f32 %v3036, %v3210
      %v3212 = vpop.f32.mrb[0].mxu0
      %3213 = vmatprep.mubr.f32.mxu0 0.0
      %v3214 = vand.u32 %v1433, 4294901760
      %3215 = vmatmul.mubr.f32.gmra.mrb[0].mxu0 %v3214
      %v3216 = vpop.f32.mrb[0].mxu0
      %v3217 = vadd.f32 %v3044, %v3216
      %v3218 = vpop.f32.mrb[0].mxu0
      %3219 = vmatprep.mubr.f32.mxu0 0.0
      %v3220 = vand.u32 %v1436, 4294901760
      %3221 = vmatmul.mubr.f32.gmra.mrb[0].mxu0 %v3220
      %v3222 = vpop.f32.mrb[0].mxu0
      %v3223 = vadd.f32 %v3052, %v3222
      %v3224 = vpop.f32.mrb[0].mxu0
      %3225 = vmatprep.mubr.f32.mxu0 0.0
      %v3226 = vand.u32 %v1439, 4294901760
      %3227 = vmatmul.mubr.f32.gmra.mrb[0].mxu0 %v3226
      %v3228 = vpop.f32.mrb[0].mxu0
      %v3229 = vadd.f32 %v3060, %v3228
      %v3230 = vpop.f32.mrb[0].mxu0
      %3231 = vmatprep.mubr.f32.mxu0 0.0
      %v3232 = vand.u32 %v1442, 4294901760
      %3233 = vmatmul.mubr.f32.gmra.mrb[0].mxu0 %v3232
      %v3234 = vpop.f32.mrb[0].mxu0
      %v3235 = vadd.f32 %v3068, %v3234
      %v3236 = vpop.f32.mrb[0].mxu0
      %3237 = vmatprep.mubr.f32.mxu0 0.0
      %v3238 = vand.u32 %v1445, 4294901760
      %3239 = vmatmul.mubr.f32.gmra.mrb[0].mxu0 %v3238
      %v3240 = vpop.f32.mrb[0].mxu0
      %v3241 = vadd.f32 %v3076, %v3240
      %v3242 = vpop.f32.mrb[0].mxu0
      %v3243 = vadd.f32 %v3078, %v3242
      %3244 = vmatprep.mubr.f32.mxu0 0.0
      %v3245 = vand.u32 %v1448, 4294901760
      %3246 = vmatmul.mubr.f32.gmra.mrb[0].mxu0 %v3245
      %v3247 = vpop.f32.mrb[0].mxu0
      %v3248 = vadd.f32 %v3085, %v3247
      %v3249 = vpop.f32.mrb[0].mxu0
      %v3250 = vadd.f32 %v3087, %v3249
      %3251 = vmatprep.mubr.f32.mxu0 0.0
      %v3252 = vand.u32 %v1451, 4294901760
      %3253 = vmatmul.mubr.f32.gmra.mrb[0].mxu0 %v3252
      %v3254 = vpop.f32.mrb[0].mxu0
      %v3255 = vadd.f32 %v3094, %v3254
      %v3256 = vpop.f32.mrb[0].mxu0
      %v3257 = vadd.f32 %v3096, %v3256
      %3258 = vmatprep.mubr.f32.mxu0 0.0
      %v3259 = vand.u32 %v1454, 4294901760
      %3260 = vmatmul.mubr.f32.gmra.mrb[0].mxu0 %v3259
      %v3261 = vpop.f32.mrb[0].mxu0
      %v3262 = vadd.f32 %v3103, %v3261
      %v3263 = vpop.f32.mrb[0].mxu0
      %v3264 = vadd.f32 %v3105, %v3263
      %3265 = vmatprep.mubr.f32.mxu0 0.0
      %v3266 = vand.u32 %v1457, 4294901760
      %3267 = vmatmul.mubr.f32.gmra.mrb[0].mxu0 %v3266
      %v3268 = vpop.f32.mrb[0].mxu0
      %v3269 = vadd.f32 %v3112, %v3268
      %v3270 = vpop.f32.mrb[0].mxu0
      %v3271 = vadd.f32 %v3114, %v3270
      %3272 = vmatprep.mubr.f32.mxu0 0.0
      %v3273 = vand.u32 %v1460, 4294901760
      %3274 = vmatmul.mubr.f32.gmra.mrb[0].mxu0 %v3273
      %v3275 = vpop.f32.mrb[0].mxu0
      %v3276 = vadd.f32 %v3121, %v3275
      %v3277 = vpop.f32.mrb[0].mxu0
      %v3278 = vadd.f32 %v3123, %v3277
      %3279 = vdwg.mxu0
      %v3280 = vand.u32 %v1419, 4294901760
      %3281 = vmatprep.subr.mxu0 %v3280
      %v3282 = vand.u32 %v1418, 4294901760
      %3283 = vmatpush1.msra.mxu0 %v3282
      %v3284 = vand.u32 %v1423, 4294901760
      %3285 = vmatprep.subr.mxu0 %v3284
      %v3286 = vand.u32 %v1422, 4294901760
      %3287 = vmatpush1.msra.mxu0 %v3286
      %v3288 = vand.u32 %v1473, 4294901760
      %3289 = vmatprep.subr.mxu0 %v3288
      %v3290 = vand.u32 %v1470, 4294901760
      %3291 = vmatpush1.msra.mxu0 %v3290
      %3292 = vmatprep.subr.mxu0 0.0
      %3293 = vmatpush1.msra.mxu0 0.0
      %3294 = vmatprep.subr.mxu0 0.0
      %3295 = vmatpush1.msra.mxu0 0.0
      %3296 = vmatprep.subr.mxu0 0.0
      %3297 = vmatpush1.msra.mxu0 0.0
      %3298 = vmatprep.subr.mxu0 0.0
      %3299 = vmatpush1.msra.mxu0 0.0
      %3300 = vmatprep.subr.mxu0 0.0
      %3301 = vmatpush1.msra.mxu0 0.0
      %3302 = vmatprep.subr.mxu0 0.0
      %3303 = vmatpush1.msra.mxu0 0.0
      %3304 = vmatprep.subr.mxu0 0.0
      %3305 = vmatpush1.msra.mxu0 0.0
      %3306 = vmatprep.subr.mxu0 0.0
      %3307 = vmatpush1.msra.mxu0 0.0
      %3308 = vmatprep.subr.mxu0 0.0
      %3309 = vmatpush1.msra.mxu0 0.0
      %3310 = vmatprep.subr.mxu0 0.0
      %3311 = vmatpush1.msra.mxu0 0.0
      %3312 = vmatprep.subr.mxu0 0.0
      %3313 = vmatpush1.msra.mxu0 0.0
      %3314 = vmatprep.subr.mxu0 0.0
      %3315 = vmatpush1.msra.mxu0 0.0
      %3316 = vmatprep.subr.mxu0 0.0
      %3317 = vmatpush1.msra.mxu0 0.0
      %3318 = vmatprep.subr.mxu0 0.0
      %3319 = vmatpush1.msra.mxu0 0.0
      %3320 = vmatprep.subr.mxu0 0.0
      %3321 = vmatpush1.msra.mxu0 0.0
      %3322 = vmatprep.subr.mxu0 0.0
      %3323 = vmatpush1.msra.mxu0 0.0
      %3324 = vmatprep.subr.mxu0 0.0
      %3325 = vmatpush1.msra.mxu0 0.0
      %3326 = vmatprep.subr.mxu0 0.0
      %3327 = vmatpush1.msra.mxu0 0.0
      %3328 = vmatprep.subr.mxu0 0.0
      %3329 = vmatpush1.msra.mxu0 0.0
      %3330 = vmatprep.subr.mxu0 0.0
      %3331 = vmatpush1.msra.mxu0 0.0
      %3332 = vmatprep.subr.mxu0 0.0
      %3333 = vmatpush1.msra.mxu0 0.0
      %3334 = vmatprep.subr.mxu0 0.0
      %3335 = vmatpush1.msra.mxu0 0.0
      %3336 = vmatprep.subr.mxu0 0.0
      %3337 = vmatpush1.msra.mxu0 0.0
      %3338 = vmatprep.subr.mxu0 0.0
      %3339 = vmatpush1.msra.mxu0 0.0
      %3340 = vmatprep.subr.mxu0 0.0
      %3341 = vmatpush1.msra.mxu0 0.0
      %3342 = vmatprep.subr.mxu0 0.0
      %3343 = vmatpush1.msra.mxu0 0.0
      %3344 = vmatprep.subr.mxu0 0.0
      %3345 = vmatpush1.msra.mxu0 0.0
      %3346 = vmatprep.subr.mxu0 0.0
      %3347 = vmatpush1.msra.mxu0 0.0
      %3348 = vmatprep.subr.mxu0 0.0
      %3349 = vmatpush1.msra.mxu0 0.0
      %3350 = vmatprep.mubr.f32.mxu0 0.0
      %v3351 = vand.u32 %v1430, 4294901760
      %3352 = vmatmul.mubr.f32.gmra.mrb[0].mxu0 %v3351
      %v3353 = vpop.f32.mrb[0].mxu0
      %v3354 = vadd.f32 %v3211, %v3353
      %v3355 = vpop.f32.mrb[0].mxu0
      %3356 = vmatprep.mubr.f32.mxu0 0.0
      %v3357 = vand.u32 %v1433, 4294901760
      %3358 = vmatmul.mubr.f32.gmra.mrb[0].mxu0 %v3357
      %v3359 = vpop.f32.mrb[0].mxu0
      %v3360 = vadd.f32 %v3217, %v3359
      %v3361 = vpop.f32.mrb[0].mxu0
      %3362 = vmatprep.mubr.f32.mxu0 0.0
      %v3363 = vand.u32 %v1436, 4294901760
      %3364 = vmatmul.mubr.f32.gmra.mrb[0].mxu0 %v3363
      %v3365 = vpop.f32.mrb[0].mxu0
      %v3366 = vadd.f32 %v3223, %v3365
      %v3367 = vpop.f32.mrb[0].mxu0
      %3368 = vmatprep.mubr.f32.mxu0 0.0
      %v3369 = vand.u32 %v1439, 4294901760
      %3370 = vmatmul.mubr.f32.gmra.mrb[0].mxu0 %v3369
      %v3371 = vpop.f32.mrb[0].mxu0
      %v3372 = vadd.f32 %v3229, %v3371
      %v3373 = vpop.f32.mrb[0].mxu0
      %3374 = vmatprep.mubr.f32.mxu0 0.0
      %v3375 = vand.u32 %v1442, 4294901760
      %3376 = vmatmul.mubr.f32.gmra.mrb[0].mxu0 %v3375
      %v3377 = vpop.f32.mrb[0].mxu0
      %v3378 = vadd.f32 %v3235, %v3377
      %v3379 = vpop.f32.mrb[0].mxu0
      %3380 = vmatprep.mubr.f32.mxu0 0.0
      %v3381 = vand.u32 %v1445, 4294901760
      %3382 = vmatmul.mubr.f32.gmra.mrb[0].mxu0 %v3381
      %v3383 = vpop.f32.mrb[0].mxu0
      %v3384 = vadd.f32 %v3241, %v3383
      %v3385 = vpop.f32.mrb[0].mxu0
      %v3386 = vadd.f32 %v3243, %v3385
      %3387 = vmatprep.mubr.f32.mxu0 0.0
      %v3388 = vand.u32 %v1448, 4294901760
      %3389 = vmatmul.mubr.f32.gmra.mrb[0].mxu0 %v3388
      %v3390 = vpop.f32.mrb[0].mxu0
      %v3391 = vadd.f32 %v3248, %v3390
      %v3392 = vpop.f32.mrb[0].mxu0
      %v3393 = vadd.f32 %v3250, %v3392
      %3394 = vmatprep.mubr.f32.mxu0 0.0
      %v3395 = vand.u32 %v1451, 4294901760
      %3396 = vmatmul.mubr.f32.gmra.mrb[0].mxu0 %v3395
      %v3397 = vpop.f32.mrb[0].mxu0
      %v3398 = vadd.f32 %v3255, %v3397
      %v3399 = vpop.f32.mrb[0].mxu0
      %v3400 = vadd.f32 %v3257, %v3399
      %3401 = vmatprep.mubr.f32.mxu0 0.0
      %v3402 = vand.u32 %v1454, 4294901760
      %3403 = vmatmul.mubr.f32.gmra.mrb[0].mxu0 %v3402
      %v3404 = vpop.f32.mrb[0].mxu0
      %v3405 = vadd.f32 %v3262, %v3404
      %v3406 = vpop.f32.mrb[0].mxu0
      %v3407 = vadd.f32 %v3264, %v3406
      %3408 = vmatprep.mubr.f32.mxu0 0.0
      %v3409 = vand.u32 %v1457, 4294901760
      %3410 = vmatmul.mubr.f32.gmra.mrb[0].mxu0 %v3409
      %v3411 = vpop.f32.mrb[0].mxu0
      %v3412 = vadd.f32 %v3269, %v3411
      %v3413 = vpop.f32.mrb[0].mxu0
      %v3414 = vadd.f32 %v3271, %v3413
      %3415 = vmatprep.mubr.f32.mxu0 0.0
      %v3416 = vand.u32 %v1460, 4294901760
      %3417 = vmatmul.mubr.f32.gmra.mrb[0].mxu0 %v3416
      %v3418 = vpop.f32.mrb[0].mxu0
      %v3419 = vadd.f32 %v3276, %v3418
      %v3420 = vpop.f32.mrb[0].mxu0
      %v3421 = vadd.f32 %v3278, %v3420
      %3422 = vdwg.mxu0
      %v3423 = vld [vmem:[%s7] ss:$2 sm:$0x3]
      %v3425 = vlaneseq
      %v3426 = vshrl.u32 %v3425, 7
      %v3427 = vsub.s32 0, %v3426
      %v3428 = vrot.slane %v3423, %v3427
      %v3429 = vlaneseq
      %v3430 = vshrl.u32 %v3429, 7
      %v3431 = vsub.s32 1, %v3430
      %v3432 = vrot.slane %v3423, %v3431
      %3433 = vrot.lane.b32.xlu0 %v3428, 111
      %v3434 = vpop.permute.xlu0 %3433
      %3435 = vrot.lane.b32.xlu0 %v3432, 111
      %v3436 = vpop.permute.xlu0 %3435
      %vm3437 = vcmask 908288
      %v3438 = vsel %vm3437, %v3434, %v3436
      %v3442 = vmul.f32 %v2378, %v3434
      %v3443 = vmul.f32 %v2380, %v3438
      %v3444 = vmul.f32 %v3354, %v3436
      %v3445 = vmul.f32 %v2385, %v3434
      %v3446 = vmul.f32 %v2387, %v3438
      %v3447 = vmul.f32 %v3360, %v3436
      %v3448 = vadd.f32 %v3442, 0.0
      %v3449 = vadd.f32 %v3443, 0.0
      %v3450 = vadd.f32 %v3444, 0.0
      %v3451 = vadd.f32 %v3445, 0.0
      %v3452 = vadd.f32 %v3446, 0.0
      %v3453 = vadd.f32 %v3447, 0.0
      %v3460 = vrot.slane %v2385, 1
      %v3461 = vrot.slane %v2392, 1
      %v3462 = vsel %vm1305, %v3460, %v3461
      %v3463 = vrot.slane %v2387, 1
      %v3464 = vrot.slane %v2394, 1
      %v3465 = vsel %vm1305, %v3463, %v3464
      %v3466 = vrot.slane %v3360, 1
      %v3467 = vrot.slane %v3366, 1
      %v3468 = vsel %vm1305, %v3466, %v3467
      %3469 = vrot.lane.b32.xlu0 %v3462, 127
      %v3470 = vpop.permute.xlu0 %3469
      %3471 = vrot.lane.b32.xlu0 %v3465, 127
      %v3472 = vpop.permute.xlu0 %3471
      %3473 = vrot.lane.b32.xlu0 %v3468, 127
      %v3474 = vpop.permute.xlu0 %3473
      %3475 = vrot.lane.b32.xlu0 %v3461, 127
      %v3476 = vpop.permute.xlu0 %3475
      %3477 = vrot.lane.b32.xlu0 %v3464, 127
      %v3478 = vpop.permute.xlu0 %3477
      %3479 = vrot.lane.b32.xlu0 %v3467, 127
      %v3480 = vpop.permute.xlu0 %3479
      %vm3481 = vcmask 1039360
      %v3482 = vsel %vm3481, %v3470, %v3472
      %v3483 = vsel %vm3481, %v3472, %v3474
      %v3484 = vsel %vm3481, %v3476, %v3478
      %v3485 = vsel %vm3481, %v3478, %v3480
      %v3492 = vadd.f32 %v3448, %v3482
      %v3493 = vadd.f32 %v3449, %v3483
      %v3494 = vadd.f32 %v3450, %v3474
      %v3495 = vadd.f32 %v3451, %v3484
      %v3496 = vadd.f32 %v3452, %v3485
      %v3497 = vadd.f32 %v3453, %v3480
      %s3498 = scalar_lea.vmem %s7, 1
      %v3499 = vld [vmem:[%s3498] ss:$2 sm:$0x3]
      %v3501 = vlaneseq
      %v3502 = vshrl.u32 %v3501, 7
      %v3503 = vsub.s32 0, %v3502
      %v3504 = vrot.slane %v3499, %v3503
      %v3505 = vlaneseq
      %v3506 = vshrl.u32 %v3505, 7
      %v3507 = vsub.s32 1, %v3506
      %v3508 = vrot.slane %v3499, %v3507
      %3509 = vrot.lane.b32.xlu0 %v3504, 113
      %v3510 = vpop.permute.xlu0 %3509
      %3511 = vrot.lane.b32.xlu0 %v3508, 113
      %v3512 = vpop.permute.xlu0 %3511
      %vm3513 = vcmask 924672
      %v3514 = vsel %vm3513, %v3510, %v3512
      %v3518 = vmul.f32 %v2392, %v3510
      %v3519 = vmul.f32 %v2394, %v3514
      %v3520 = vmul.f32 %v3366, %v3512
      %v3521 = vmul.f32 %v2399, %v3510
      %v3522 = vmul.f32 %v2401, %v3514
      %v3523 = vmul.f32 %v3372, %v3512
      %v3530 = vrot.slane %v3518, 2
      %v3531 = vrot.slane %v3521, 2
      %v3532 = vsel %vm1326, %v3530, %v3531
      %v3533 = vrot.slane %v3519, 2
      %v3534 = vrot.slane %v3522, 2
      %v3535 = vsel %vm1326, %v3533, %v3534
      %v3536 = vrot.slane %v3520, 2
      %v3537 = vrot.slane %v3523, 2
      %v3538 = vsel %vm1326, %v3536, %v3537
      %3539 = vrot.lane.b32.xlu0 %v3532, 126
      %v3540 = vpop.permute.xlu0 %3539
      %3541 = vrot.lane.b32.xlu0 %v3535, 126
      %v3542 = vpop.permute.xlu0 %3541
      %3543 = vrot.lane.b32.xlu0 %v3538, 126
      %v3544 = vpop.permute.xlu0 %3543
      %3545 = vrot.lane.b32.xlu0 %v3531, 126
      %v3546 = vpop.permute.xlu0 %3545
      %3547 = vrot.lane.b32.xlu0 %v3534, 126
      %v3548 = vpop.permute.xlu0 %3547
      %3549 = vrot.lane.b32.xlu0 %v3537, 126
      %v3550 = vpop.permute.xlu0 %3549
      %vm3551 = vcmask 1031168
      %v3552 = vsel %vm3551, %v3540, %v3542
      %v3553 = vsel %vm3551, %v3542, %v3544
      %v3554 = vsel %vm3551, %v3546, %v3548
      %v3555 = vsel %vm3551, %v3548, %v3550
      %v3562 = vadd.f32 %v3492, %v3552
      %v3563 = vadd.f32 %v3493, %v3553
      %v3564 = vadd.f32 %v3494, %v3544
      %v3565 = vadd.f32 %v3495, %v3554
      %v3566 = vadd.f32 %v3496, %v3555
      %v3567 = vadd.f32 %v3497, %v3550
      %3568 = vrot.lane.b32.xlu0 %v3428, 127
      %v3569 = vpop.permute.xlu0 %3568
      %3570 = vrot.lane.b32.xlu0 %v3432, 127
      %v3571 = vpop.permute.xlu0 %3570
      %v3572 = vsel %vm3481, %v3569, %v3571
      %v3576 = vmul.f32 %v2399, %v3569
      %v3577 = vmul.f32 %v2401, %v3572
      %v3578 = vmul.f32 %v3372, %v3571
      %v3579 = vmul.f32 %v2406, %v3569
      %v3580 = vmul.f32 %v2408, %v3572
      %v3581 = vmul.f32 %v3378, %v3571
      %v3588 = vrot.slane %v3576, 3
      %v3589 = vrot.slane %v3579, 3
      %v3590 = vsel %vm1347, %v3588, %v3589
      %v3591 = vrot.slane %v3577, 3
      %v3592 = vrot.slane %v3580, 3
      %v3593 = vsel %vm1347, %v3591, %v3592
      %v3594 = vrot.slane %v3578, 3
      %v3595 = vrot.slane %v3581, 3
      %v3596 = vsel %vm1347, %v3594, %v3595
      %3597 = vrot.lane.b32.xlu0 %v3590, 112
      %v3598 = vpop.permute.xlu0 %3597
      %3599 = vrot.lane.b32.xlu0 %v3593, 112
      %v3600 = vpop.permute.xlu0 %3599
      %3601 = vrot.lane.b32.xlu0 %v3596, 112
      %v3602 = vpop.permute.xlu0 %3601
      %3603 = vrot.lane.b32.xlu0 %v3589, 112
      %v3604 = vpop.permute.xlu0 %3603
      %3605 = vrot.lane.b32.xlu0 %v3592, 112
      %v3606 = vpop.permute.xlu0 %3605
      %3607 = vrot.lane.b32.xlu0 %v3595, 112
      %v3608 = vpop.permute.xlu0 %3607
      %vm3609 = vcmask 916480
      %v3610 = vsel %vm3609, %v3598, %v3600
      %v3611 = vsel %vm3609, %v3600, %v3602
      %v3612 = vsel %vm3609, %v3604, %v3606
      %v3613 = vsel %vm3609, %v3606, %v3608
      %v3620 = vadd.f32 %v3562, %v3610
      %v3621 = vadd.f32 %v3563, %v3611
      %v3622 = vadd.f32 %v3564, %v3602
      %v3623 = vadd.f32 %v3565, %v3612
      %v3624 = vadd.f32 %v3566, %v3613
      %v3625 = vadd.f32 %v3567, %v3608
      %v3630 = vrot.slane %v2408, 4
      %v3631 = vrot.slane %v2414, 4
      %v3632 = vsel %vm441, %v3630, %v3631
      %v3633 = vrot.slane %v3378, 4
      %v3634 = vrot.slane %v3384, 4
      %v3635 = vsel %vm441, %v3633, %v3634
      %3636 = vrot.lane.b32.xlu0 %v3632, 111
      %v3637 = vpop.permute.xlu0 %3636
      %3638 = vrot.lane.b32.xlu0 %v3635, 111
      %v3639 = vpop.permute.xlu0 %3638
      %3640 = vrot.lane.b32.xlu0 %v3631, 111
      %v3641 = vpop.permute.xlu0 %3640
      %3642 = vrot.lane.b32.xlu0 %v3634, 111
      %v3643 = vpop.permute.xlu0 %3642
      %v3644 = vsel %vm3437, %v3637, %v3639
      %v3645 = vsel %vm3437, %v3641, %v3643
      %v3652 = vadd.f32 %v3620, %v3637
      %v3653 = vadd.f32 %v3621, %v3644
      %v3654 = vadd.f32 %v3622, %v3639
      %v3655 = vadd.f32 %v3623, %v3641
      %v3656 = vadd.f32 %v3624, %v3645
      %v3657 = vadd.f32 %v3625, %v3643
      %3658 = vrot.lane.b32.xlu0 %v3504, 1
      %v3659 = vpop.permute.xlu0 %3658
      %3660 = vrot.lane.b32.xlu0 %v3508, 1
      %v3661 = vpop.permute.xlu0 %3660
      %vm3662 = vcmask 7168
      %v3663 = vsel %vm3662, %v3659, %v3661
      %v3667 = vmul.f32 %v2414, %v3659
      %v3668 = vmul.f32 %v3384, %v3663
      %v3669 = vmul.f32 %v3386, %v3661
      %v3670 = vmul.f32 %v2420, %v3659
      %v3671 = vmul.f32 %v3391, %v3663
      %v3672 = vmul.f32 %v3393, %v3661
      %vm3679 = vcmask 1042432
      %v3680 = vrot.slane %v3667, 5
      %v3681 = vrot.slane %v3670, 5
      %v3682 = vsel %vm3679, %v3680, %v3681
      %v3683 = vrot.slane %v3668, 5
      %v3684 = vrot.slane %v3671, 5
      %v3685 = vsel %vm3679, %v3683, %v3684
      %v3686 = vrot.slane %v3669, 5
      %v3687 = vrot.slane %v3672, 5
      %v3688 = vsel %vm3679, %v3686, %v3687
      %3689 = vrot.lane.b32.xlu0 %v3682, 110
      %v3690 = vpop.permute.xlu0 %3689
      %3691 = vrot.lane.b32.xlu0 %v3685, 110
      %v3692 = vpop.permute.xlu0 %3691
      %3693 = vrot.lane.b32.xlu0 %v3688, 110
      %v3694 = vpop.permute.xlu0 %3693
      %3695 = vrot.lane.b32.xlu0 %v3681, 110
      %v3696 = vpop.permute.xlu0 %3695
      %3697 = vrot.lane.b32.xlu0 %v3684, 110
      %v3698 = vpop.permute.xlu0 %3697
      %3699 = vrot.lane.b32.xlu0 %v3687, 110
      %v3700 = vpop.permute.xlu0 %3699
      %vm3701 = vcmask 900096
      %v3702 = vsel %vm3701, %v3690, %v3692
      %v3703 = vsel %vm3701, %v3692, %v3694
      %v3704 = vsel %vm3701, %v3696, %v3698
      %v3705 = vsel %vm3701, %v3698, %v3700
      %v3712 = vadd.f32 %v3652, %v3690
      %v3713 = vadd.f32 %v3653, %v3702
      %v3714 = vadd.f32 %v3654, %v3703
      %v3715 = vadd.f32 %v3655, %v3696
      %v3716 = vadd.f32 %v3656, %v3704
      %v3717 = vadd.f32 %v3657, %v3705
      %3718 = vrot.lane.b32.xlu0 %v3428, 15
      %v3719 = vpop.permute.xlu0 %3718
      %3720 = vrot.lane.b32.xlu0 %v3432, 15
      %v3721 = vpop.permute.xlu0 %3720
      %vm3722 = vcmask 121856
      %v3723 = vsel %vm3722, %v3719, %v3721
      %v3727 = vmul.f32 %v2420, %v3719
      %v3728 = vmul.f32 %v3391, %v3723
      %v3729 = vmul.f32 %v3393, %v3721
      %v3730 = vmul.f32 %v2426, %v3719
      %v3731 = vmul.f32 %v3398, %v3723
      %v3732 = vmul.f32 %v3400, %v3721
      %v3739 = vrot.slane %v3727, 6
      %v3740 = vrot.slane %v3730, 6
      %v3741 = vsel %vm1462, %v3739, %v3740
      %v3742 = vrot.slane %v3728, 6
      %v3743 = vrot.slane %v3731, 6
      %v3744 = vsel %vm1462, %v3742, %v3743
      %v3745 = vrot.slane %v3729, 6
      %v3746 = vrot.slane %v3732, 6
      %v3747 = vsel %vm1462, %v3745, %v3746
      %3748 = vrot.lane.b32.xlu0 %v3741, 96
      %v3749 = vpop.permute.xlu0 %3748
      %3750 = vrot.lane.b32.xlu0 %v3744, 96
      %v3751 = vpop.permute.xlu0 %3750
      %3752 = vrot.lane.b32.xlu0 %v3747, 96
      %v3753 = vpop.permute.xlu0 %3752
      %3754 = vrot.lane.b32.xlu0 %v3740, 96
      %v3755 = vpop.permute.xlu0 %3754
      %3756 = vrot.lane.b32.xlu0 %v3743, 96
      %v3757 = vpop.permute.xlu0 %3756
      %3758 = vrot.lane.b32.xlu0 %v3746, 96
      %v3759 = vpop.permute.xlu0 %3758
      %vm3760 = vcmask 785408
      %v3761 = vsel %vm3760, %v3749, %v3751
      %v3762 = vsel %vm3760, %v3751, %v3753
      %v3763 = vsel %vm3760, %v3755, %v3757
      %v3764 = vsel %vm3760, %v3757, %v3759
      %v3771 = vadd.f32 %v3712, %v3749
      %v3772 = vadd.f32 %v3713, %v3761
      %v3773 = vadd.f32 %v3714, %v3762
      %v3774 = vadd.f32 %v3715, %v3755
      %v3775 = vadd.f32 %v3716, %v3763
      %v3776 = vadd.f32 %v3717, %v3764
      %v3783 = vrot.slane %v2426, 7
      %v3784 = vrot.slane %v2432, 7
      %v3785 = vsel %vm1390, %v3783, %v3784
      %v3786 = vrot.slane %v3398, 7
      %v3787 = vrot.slane %v3405, 7
      %v3788 = vsel %vm1390, %v3786, %v3787
      %v3789 = vrot.slane %v3400, 7
      %v3790 = vrot.slane %v3407, 7
      %v3791 = vsel %vm1390, %v3789, %v3790
      %3792 = vrot.lane.b32.xlu0 %v3785, 95
      %v3793 = vpop.permute.xlu0 %3792
      %3794 = vrot.lane.b32.xlu0 %v3788, 95
      %v3795 = vpop.permute.xlu0 %3794
      %3796 = vrot.lane.b32.xlu0 %v3791, 95
      %v3797 = vpop.permute.xlu0 %3796
      %3798 = vrot.lane.b32.xlu0 %v3784, 95
      %v3799 = vpop.permute.xlu0 %3798
      %3800 = vrot.lane.b32.xlu0 %v3787, 95
      %v3801 = vpop.permute.xlu0 %3800
      %3802 = vrot.lane.b32.xlu0 %v3790, 95
      %v3803 = vpop.permute.xlu0 %3802
      %vm3804 = vcmask 777216
      %v3805 = vsel %vm3804, %v3793, %v3795
      %v3806 = vsel %vm3804, %v3795, %v3797
      %v3807 = vsel %vm3804, %v3799, %v3801
      %v3808 = vsel %vm3804, %v3801, %v3803
      %v3815 = vadd.f32 %v3771, %v3793
      %v3816 = vadd.f32 %v3772, %v3805
      %v3817 = vadd.f32 %v3773, %v3806
      %v3818 = vadd.f32 %v3774, %v3799
      %v3819 = vadd.f32 %v3775, %v3807
      %v3820 = vadd.f32 %v3776, %v3808
      %3821 = vrot.lane.b32.xlu0 %v3504, 17
      %v3822 = vpop.permute.xlu0 %3821
      %3823 = vrot.lane.b32.xlu0 %v3508, 17
      %v3824 = vpop.permute.xlu0 %3823
      %vm3825 = vcmask 138240
      %v3826 = vsel %vm3825, %v3822, %v3824
      %v3830 = vmul.f32 %v2438, %v3822
      %v3831 = vmul.f32 %v3412, %v3826
      %v3832 = vmul.f32 %v3414, %v3824
      %v3833 = vmul.f32 %v2444, %v3822
      %v3834 = vmul.f32 %v3419, %v3826
      %v3835 = vmul.f32 %v3421, %v3824
      %3842 = vrot.lane.b32.xlu0 %v3830, 94
      %v3843 = vpop.permute.xlu0 %3842
      %3844 = vrot.lane.b32.xlu0 %v3831, 94
      %v3845 = vpop.permute.xlu0 %3844
      %3846 = vrot.lane.b32.xlu0 %v3832, 94
      %v3847 = vpop.permute.xlu0 %3846
      %3848 = vrot.lane.b32.xlu0 %v3833, 94
      %v3849 = vpop.permute.xlu0 %3848
      %3850 = vrot.lane.b32.xlu0 %v3834, 94
      %v3851 = vpop.permute.xlu0 %3850
      %3852 = vrot.lane.b32.xlu0 %v3835, 94
      %v3853 = vpop.permute.xlu0 %3852
      %vm3854 = vcmask 769024
      %v3855 = vsel %vm3854, %v3843, %v3845
      %v3856 = vsel %vm3854, %v3845, %v3847
      %v3857 = vsel %vm3854, %v3849, %v3851
      %v3858 = vsel %vm3854, %v3851, %v3853
      %v3865 = vadd.f32 %v3815, %v3843
      %v3866 = vadd.f32 %v3816, %v3855
      %v3867 = vadd.f32 %v3817, %v3856
      %v3868 = vadd.f32 %v3818, %v3849
      %v3869 = vadd.f32 %v3819, %v3857
      %v3870 = vadd.f32 %v3820, %v3858
      %v3871 = vxor.u32 %v3865, 2147483648
      %v3872 = vxor.u32 %v3866, 2147483648
      %v3873 = vxor.u32 %v3867, 2147483648
      %v3874 = vxor.u32 %v3868, 2147483648
      %v3875 = vxor.u32 %v3869, 2147483648
      %v3876 = vxor.u32 %v3870, 2147483648
      %v3877 = vmul.f32 %v3871, 1.442695
      %v3878 = vpow.pop %v3877
      %v3879 = vmul.f32 %v3872, 1.442695
      %v3880 = vpow.pop %v3879
      %v3881 = vmul.f32 %v3873, 1.442695
      %v3882 = vpow.pop %v3881
      %v3883 = vmul.f32 %v3874, 1.442695
      %v3884 = vpow.pop %v3883
      %v3885 = vmul.f32 %v3875, 1.442695
      %v3886 = vpow.pop %v3885
      %v3887 = vmul.f32 %v3876, 1.442695
      %v3888 = vpow.pop %v3887
      %v3889 = vadd.f32 %v3878, 1.0
      %v3890 = vadd.f32 %v3880, 1.0
      %v3891 = vadd.f32 %v3882, 1.0
      %v3892 = vadd.f32 %v3884, 1.0
      %v3893 = vadd.f32 %v3886, 1.0
      %v3894 = vadd.f32 %v3888, 1.0
      %v3895 = vrcp.pop %v3889
      %v3896 = vmul.f32 1.0, %v3895
      %v3897 = vrcp.pop %v3890
      %v3898 = vmul.f32 1.0, %v3897
      %v3899 = vrcp.pop %v3891
      %v3900 = vmul.f32 1.0, %v3899
      %v3901 = vrcp.pop %v3892
      %v3902 = vmul.f32 1.0, %v3901
      %v3903 = vrcp.pop %v3893
      %v3904 = vmul.f32 1.0, %v3903
      %v3905 = vrcp.pop %v3894
      %v3906 = vmul.f32 1.0, %v3905
      %3913 = vrot.lane.b32.xlu0 %v3896, 17
      %v3914 = vpop.permute.xlu0 %3913
      %3915 = vrot.lane.b32.xlu0 %v3898, 17
      %v3916 = vpop.permute.xlu0 %3915
      %3917 = vrot.lane.b32.xlu0 %v3900, 17
      %v3918 = vpop.permute.xlu0 %3917
      %3919 = vrot.lane.b32.xlu0 %v3902, 17
      %v3920 = vpop.permute.xlu0 %3919
      %3921 = vrot.lane.b32.xlu0 %v3904, 17
      %v3922 = vpop.permute.xlu0 %3921
      %3923 = vrot.lane.b32.xlu0 %v3906, 17
      %v3924 = vpop.permute.xlu0 %3923
      %v3925 = vsel %vm3825, %v3914, %v3916
      %v3926 = vsel %vm3825, %v3916, %v3918
      %v3927 = vsel %vm3825, %v3920, %v3922
      %v3928 = vsel %vm3825, %v3922, %v3924
      %3933 = vst [vmem:[#allocation3] sm:$0xff] %v3925
      %3934 = vst [vmem:[#allocation3 + $0x8] sm:$0xff] %v3926
      %3935 = vst [vmem:[#allocation3 + $0x10] sm:$0x1] %v3927
      %3936 = vst [vmem:[#allocation3 + $0x18] sm:$0x1] %v3928
      %v3937 = vrot.slane %v3896, 7
      %v3938 = vrot.slane %v3898, 7
      %v3939 = vrot.slane %v3900, 7
      %v3940 = vrot.slane %v3902, 7
      %v3941 = vsel %vm1390, %v3937, %v3940
      %v3942 = vrot.slane %v3904, 7
      %v3943 = vsel %vm1390, %v3938, %v3942
      %v3944 = vrot.slane %v3906, 7
      %v3945 = vsel %vm1390, %v3939, %v3944
      %3946 = vrot.lane.b32.xlu0 %v3937, 17
      %v3947 = vpop.permute.xlu0 %3946
      %3948 = vrot.lane.b32.xlu0 %v3938, 17
      %v3949 = vpop.permute.xlu0 %3948
      %3950 = vrot.lane.b32.xlu0 %v3939, 17
      %v3951 = vpop.permute.xlu0 %3950
      %3952 = vrot.lane.b32.xlu0 %v3941, 17
      %v3953 = vpop.permute.xlu0 %3952
      %3954 = vrot.lane.b32.xlu0 %v3943, 17
      %v3955 = vpop.permute.xlu0 %3954
      %3956 = vrot.lane.b32.xlu0 %v3945, 17
      %v3957 = vpop.permute.xlu0 %3956
      %v3958 = vsel %vm3825, %v3947, %v3949
      %v3959 = vsel %vm3825, %v3949, %v3951
      %v3960 = vsel %vm3825, %v3953, %v3955
      %v3961 = vsel %vm3825, %v3955, %v3957
      %3966 = vst [vmem:[#allocation3 + $0x10] sm:$0xfe] %v3958
      %3967 = vst [vmem:[#allocation3 + $0x18] sm:$0xfe] %v3959
      %3968 = vst [vmem:[#allocation3 + $0x20] sm:$0x3] %v3960
      %3969 = vst [vmem:[#allocation3 + $0x28] sm:$0x3] %v3961
      %v3970 = vrot.slane %v3896, 6
      %v3971 = vrot.slane %v3898, 6
      %v3972 = vrot.slane %v3900, 6
      %v3973 = vrot.slane %v3902, 6
      %v3974 = vsel %vm1462, %v3970, %v3973
      %v3975 = vrot.slane %v3904, 6
      %v3976 = vsel %vm1462, %v3971, %v3975
      %v3977 = vrot.slane %v3906, 6
      %v3978 = vsel %vm1462, %v3972, %v3977
      %3979 = vrot.lane.b32.xlu0 %v3970, 17
      %v3980 = vpop.permute.xlu0 %3979
      %3981 = vrot.lane.b32.xlu0 %v3971, 17
      %v3982 = vpop.permute.xlu0 %3981
      %3983 = vrot.lane.b32.xlu0 %v3972, 17
      %v3984 = vpop.permute.xlu0 %3983
      %3985 = vrot.lane.b32.xlu0 %v3974, 17
      %v3986 = vpop.permute.xlu0 %3985
      %3987 = vrot.lane.b32.xlu0 %v3976, 17
      %v3988 = vpop.permute.xlu0 %3987
      %3989 = vrot.lane.b32.xlu0 %v3978, 17
      %v3990 = vpop.permute.xlu0 %3989
      %v3991 = vsel %vm3825, %v3980, %v3982
      %v3992 = vsel %vm3825, %v3982, %v3984
      %v3993 = vsel %vm3825, %v3986, %v3988
      %v3994 = vsel %vm3825, %v3988, %v3990
      %3999 = vst [vmem:[#allocation3 + $0x20] sm:$0xfc] %v3991
      %4000 = vst [vmem:[#allocation3 + $0x28] sm:$0xfc] %v3992
      %4001 = vst [vmem:[#allocation3 + $0x30] sm:$0x7] %v3993
      %4002 = vst [vmem:[#allocation3 + $0x38] sm:$0x7] %v3994
      %v4003 = vrot.slane %v3896, 5
      %v4004 = vrot.slane %v3898, 5
      %v4005 = vrot.slane %v3900, 5
      %v4006 = vrot.slane %v3902, 5
      %v4007 = vsel %vm3679, %v4003, %v4006
      %v4008 = vrot.slane %v3904, 5
      %v4009 = vsel %vm3679, %v4004, %v4008
      %v4010 = vrot.slane %v3906, 5
      %v4011 = vsel %vm3679, %v4005, %v4010
      %4012 = vrot.lane.b32.xlu0 %v4003, 17
      %v4013 = vpop.permute.xlu0 %4012
      %4014 = vrot.lane.b32.xlu0 %v4004, 17
      %v4015 = vpop.permute.xlu0 %4014
      %4016 = vrot.lane.b32.xlu0 %v4005, 17
      %v4017 = vpop.permute.xlu0 %4016
      %4018 = vrot.lane.b32.xlu0 %v4007, 17
      %v4019 = vpop.permute.xlu0 %4018
      %4020 = vrot.lane.b32.xlu0 %v4009, 17
      %v4021 = vpop.permute.xlu0 %4020
      %4022 = vrot.lane.b32.xlu0 %v4011, 17
      %v4023 = vpop.permute.xlu0 %4022
      %v4024 = vsel %vm3825, %v4013, %v4015
      %v4025 = vsel %vm3825, %v4015, %v4017
      %v4026 = vsel %vm3825, %v4019, %v4021
      %v4027 = vsel %vm3825, %v4021, %v4023
      %4032 = vst [vmem:[#allocation3 + $0x30] sm:$0xf8] %v4024
      %4033 = vst [vmem:[#allocation3 + $0x38] sm:$0xf8] %v4025
      %4034 = vst [vmem:[#allocation3 + $0x40] sm:$0xf] %v4026
      %4035 = vst [vmem:[#allocation3 + $0x48] sm:$0xf] %v4027
      %v4036 = vmul.f32 %v1213, %v1292
      %v4037 = vmul.f32 %v1214, %v1292
      %v4038 = vmul.f32 %v1215, %v1294
      %v4039 = vmul.f32 %v1216, %v1294
      %v4040 = vmul.f32 %v1217, %v1296
      %v4041 = vmul.f32 %v1218, %v1296
      %v4042 = vmul.f32 %v1219, %v1298
      %v4043 = vmul.f32 %v1220, %v1298
      %v4044 = vmul.f32 %v1221, %v1300
      %v4045 = vmul.f32 %v1222, %v1300
      %v4046 = vld [vmem:[#allocation3] sm:$0xff]
      %v4047 = vld [vmem:[#allocation3 + $0x8] sm:$0xff]
      %v4048 = vld [vmem:[#allocation3 + $0x10] sm:$0xff]
      %v4049 = vld [vmem:[#allocation3 + $0x18] sm:$0xff]
      %v4050 = vld [vmem:[#allocation3 + $0x20] sm:$0xff]
      %v4051 = vld [vmem:[#allocation3 + $0x28] sm:$0xff]
      %v4052 = vld [vmem:[#allocation3 + $0x30] sm:$0xff]
      %v4053 = vld [vmem:[#allocation3 + $0x38] sm:$0xff]
      %v4054 = vld [vmem:[#allocation3 + $0x40] sm:$0xf]
      %v4055 = vld [vmem:[#allocation3 + $0x48] sm:$0xf]
      %v4056 = vmul.f32 %v4036, %v4046
      %v4057 = vmul.f32 %v4037, %v4047
      %v4058 = vmul.f32 %v4038, %v4048
      %v4059 = vmul.f32 %v4039, %v4049
      %v4060 = vmul.f32 %v4040, %v4050
      %v4061 = vmul.f32 %v4041, %v4051
      %v4062 = vmul.f32 %v4042, %v4052
      %v4063 = vmul.f32 %v4043, %v4053
      %v4064 = vmul.f32 %v4044, %v4054
      %v4065 = vmul.f32 %v4045, %v4055
      %v4066 = vld [vmem:[%s8] sm:$0xff]
      %v4067 = vld [vmem:[%s9] sm:$0xff]
      %4069 = vset.pattern.permute.xlu0 0
      %4070 = vperm.xlu0 %4069, %v4067
      %v4071 = vpop.permute.xlu0 %4070
      %v4074 = vsel %vm425, %v4066, 0
      %v4077 = vsel %vm441, %v4064, 0
      %v4080 = vsel %vm441, %v4065, 0
      %v4082 = vand.u32 %v4057, 4294901760
      %4083 = vmatprep.subr.mxu0 %v4082
      %v4084 = vand.u32 %v4056, 4294901760
      %4085 = vmatpush1.msra.mxu0 %v4084
      %v4086 = vand.u32 %v4059, 4294901760
      %4087 = vmatprep.subr.mxu0 %v4086
      %v4088 = vand.u32 %v4058, 4294901760
      %4089 = vmatpush1.msra.mxu0 %v4088
      %v4090 = vand.u32 %v4061, 4294901760
      %4091 = vmatprep.subr.mxu0 %v4090
      %v4092 = vand.u32 %v4060, 4294901760
      %4093 = vmatpush1.msra.mxu0 %v4092
      %v4094 = vand.u32 %v4063, 4294901760
      %4095 = vmatprep.subr.mxu0 %v4094
      %v4096 = vand.u32 %v4062, 4294901760
      %4097 = vmatpush1.msra.mxu0 %v4096
      %v4098 = vand.u32 %v4080, 4294901760
      %4099 = vmatprep.subr.mxu0 %v4098
      %v4100 = vand.u32 %v4077, 4294901760
      %4101 = vmatpush1.msra.mxu0 %v4100
      %4102 = vmatprep.subr.mxu0 0.0
      %4103 = vmatpush1.msra.mxu0 0.0
      %4104 = vmatprep.subr.mxu0 0.0
      %4105 = vmatpush1.msra.mxu0 0.0
      %4106 = vmatprep.subr.mxu0 0.0
      %4107 = vmatpush1.msra.mxu0 0.0
      %4108 = vmatprep.subr.mxu0 0.0
      %4109 = vmatpush1.msra.mxu0 0.0
      %4110 = vmatprep.subr.mxu0 0.0
      %4111 = vmatpush1.msra.mxu0 0.0
      %4112 = vmatprep.subr.mxu0 0.0
      %4113 = vmatpush1.msra.mxu0 0.0
      %4114 = vmatprep.subr.mxu0 0.0
      %4115 = vmatpush1.msra.mxu0 0.0
      %4116 = vmatprep.subr.mxu0 0.0
      %4117 = vmatpush1.msra.mxu0 0.0
      %4118 = vmatprep.subr.mxu0 0.0
      %4119 = vmatpush1.msra.mxu0 0.0
      %4120 = vmatprep.subr.mxu0 0.0
      %4121 = vmatpush1.msra.mxu0 0.0
      %4122 = vmatprep.subr.mxu0 0.0
      %4123 = vmatpush1.msra.mxu0 0.0
      %4124 = vmatprep.subr.mxu0 0.0
      %4125 = vmatpush1.msra.mxu0 0.0
      %4126 = vmatprep.subr.mxu0 0.0
      %4127 = vmatpush1.msra.mxu0 0.0
      %4128 = vmatprep.subr.mxu0 0.0
      %4129 = vmatpush1.msra.mxu0 0.0
      %4130 = vmatprep.subr.mxu0 0.0
      %4131 = vmatpush1.msra.mxu0 0.0
      %4132 = vmatprep.subr.mxu0 0.0
      %4133 = vmatpush1.msra.mxu0 0.0
      %4134 = vmatprep.subr.mxu0 0.0
      %4135 = vmatpush1.msra.mxu0 0.0
      %4136 = vmatprep.subr.mxu0 0.0
      %4137 = vmatpush1.msra.mxu0 0.0
      %4138 = vmatprep.subr.mxu0 0.0
      %4139 = vmatpush1.msra.mxu0 0.0
      %4140 = vmatprep.subr.mxu0 0.0
      %4141 = vmatpush1.msra.mxu0 0.0
      %4142 = vmatprep.subr.mxu0 0.0
      %4143 = vmatpush1.msra.mxu0 0.0
      %4144 = vmatprep.subr.mxu0 0.0
      %4145 = vmatpush1.msra.mxu0 0.0
      %4146 = vmatprep.subr.mxu0 0.0
      %4147 = vmatpush1.msra.mxu0 0.0
      %4148 = vmatprep.subr.mxu0 0.0
      %4149 = vmatpush1.msra.mxu0 0.0
      %4150 = vmatprep.subr.mxu0 0.0
      %4151 = vmatpush1.msra.mxu0 0.0
      %4152 = vmatprep.subr.mxu0 0.0
      %4153 = vmatpush1.msra.mxu0 0.0
      %4154 = vmatprep.subr.mxu0 0.0
      %4155 = vmatpush1.msra.mxu0 0.0
      %4156 = vmatprep.mubr.f32.mxu0 0.0
      %v4157 = vand.u32 %v4074, 4294901760
      %v4158 = vsub.f32 %v4074, %v4157
      %v4159 = vand.u32 %v4158, 4294901760
      %v4160 = vsub.f32 %v4158, %v4159
      %v4161 = vand.u32 %v4160, 4294901760
      %4162 = vmatmul.mubr.f32.gmra.mrb[0].mxu0 %v4161
      %v4163 = vpop.f32.mrb[0].mxu0
      %v4164 = vadd.f32 %v4071, %v4163
      %v4165 = vpop.f32.mrb[0].mxu0
      %v4166 = vadd.f32 %v4071, %v4165
      %4167 = vdwg.mxu0
      %v4168 = vand.u32 %v4057, 4294901760
      %v4169 = vsub.f32 %v4057, %v4168
      %v4170 = vand.u32 %v4169, 4294901760
      %v4171 = vsub.f32 %v4169, %v4170
      %v4172 = vand.u32 %v4171, 4294901760
      %4173 = vmatprep.subr.mxu0 %v4172
      %v4174 = vand.u32 %v4056, 4294901760
      %v4175 = vsub.f32 %v4056, %v4174
      %v4176 = vand.u32 %v4175, 4294901760
      %v4177 = vsub.f32 %v4175, %v4176
      %v4178 = vand.u32 %v4177, 4294901760
      %4179 = vmatpush1.msra.mxu0 %v4178
      %v4180 = vand.u32 %v4059, 4294901760
      %v4181 = vsub.f32 %v4059, %v4180
      %v4182 = vand.u32 %v4181, 4294901760
      %v4183 = vsub.f32 %v4181, %v4182
      %v4184 = vand.u32 %v4183, 4294901760
      %4185 = vmatprep.subr.mxu0 %v4184
      %v4186 = vand.u32 %v4058, 4294901760
      %v4187 = vsub.f32 %v4058, %v4186
      %v4188 = vand.u32 %v4187, 4294901760
      %v4189 = vsub.f32 %v4187, %v4188
      %v4190 = vand.u32 %v4189, 4294901760
      %4191 = vmatpush1.msra.mxu0 %v4190
      %v4192 = vand.u32 %v4061, 4294901760
      %v4193 = vsub.f32 %v4061, %v4192
      %v4194 = vand.u32 %v4193, 4294901760
      %v4195 = vsub.f32 %v4193, %v4194
      %v4196 = vand.u32 %v4195, 4294901760
      %4197 = vmatprep.subr.mxu0 %v4196
      %v4198 = vand.u32 %v4060, 4294901760
      %v4199 = vsub.f32 %v4060, %v4198
      %v4200 = vand.u32 %v4199, 4294901760
      %v4201 = vsub.f32 %v4199, %v4200
      %v4202 = vand.u32 %v4201, 4294901760
      %4203 = vmatpush1.msra.mxu0 %v4202
      %v4204 = vand.u32 %v4063, 4294901760
      %v4205 = vsub.f32 %v4063, %v4204
      %v4206 = vand.u32 %v4205, 4294901760
      %v4207 = vsub.f32 %v4205, %v4206
      %v4208 = vand.u32 %v4207, 4294901760
      %4209 = vmatprep.subr.mxu0 %v4208
      %v4210 = vand.u32 %v4062, 4294901760
      %v4211 = vsub.f32 %v4062, %v4210
      %v4212 = vand.u32 %v4211, 4294901760
      %v4213 = vsub.f32 %v4211, %v4212
      %v4214 = vand.u32 %v4213, 4294901760
      %4215 = vmatpush1.msra.mxu0 %v4214
      %v4216 = vand.u32 %v4080, 4294901760
      %v4217 = vsub.f32 %v4080, %v4216
      %v4218 = vand.u32 %v4217, 4294901760
      %v4219 = vsub.f32 %v4217, %v4218
      %v4220 = vand.u32 %v4219, 4294901760
      %4221 = vmatprep.subr.mxu0 %v4220
      %v4222 = vand.u32 %v4077, 4294901760
      %v4223 = vsub.f32 %v4077, %v4222
      %v4224 = vand.u32 %v4223, 4294901760
      %v4225 = vsub.f32 %v4223, %v4224
      %v4226 = vand.u32 %v4225, 4294901760
      %4227 = vmatpush1.msra.mxu0 %v4226
      %4228 = vmatprep.subr.mxu0 0.0
      %4229 = vmatpush1.msra.mxu0 0.0
      %4230 = vmatprep.subr.mxu0 0.0
      %4231 = vmatpush1.msra.mxu0 0.0
      %4232 = vmatprep.subr.mxu0 0.0
      %4233 = vmatpush1.msra.mxu0 0.0
      %4234 = vmatprep.subr.mxu0 0.0
      %4235 = vmatpush1.msra.mxu0 0.0
      %4236 = vmatprep.subr.mxu0 0.0
      %4237 = vmatpush1.msra.mxu0 0.0
      %4238 = vmatprep.subr.mxu0 0.0
      %4239 = vmatpush1.msra.mxu0 0.0
      %4240 = vmatprep.subr.mxu0 0.0
      %4241 = vmatpush1.msra.mxu0 0.0
      %4242 = vmatprep.subr.mxu0 0.0
      %4243 = vmatpush1.msra.mxu0 0.0
      %4244 = vmatprep.subr.mxu0 0.0
      %4245 = vmatpush1.msra.mxu0 0.0
      %4246 = vmatprep.subr.mxu0 0.0
      %4247 = vmatpush1.msra.mxu0 0.0
      %4248 = vmatprep.subr.mxu0 0.0
      %4249 = vmatpush1.msra.mxu0 0.0
      %4250 = vmatprep.subr.mxu0 0.0
      %4251 = vmatpush1.msra.mxu0 0.0
      %4252 = vmatprep.subr.mxu0 0.0
      %4253 = vmatpush1.msra.mxu0 0.0
      %4254 = vmatprep.subr.mxu0 0.0
      %4255 = vmatpush1.msra.mxu0 0.0
      %4256 = vmatprep.subr.mxu0 0.0
      %4257 = vmatpush1.msra.mxu0 0.0
      %4258 = vmatprep.subr.mxu0 0.0
      %4259 = vmatpush1.msra.mxu0 0.0
      %4260 = vmatprep.subr.mxu0 0.0
      %4261 = vmatpush1.msra.mxu0 0.0
      %4262 = vmatprep.subr.mxu0 0.0
      %4263 = vmatpush1.msra.mxu0 0.0
      %4264 = vmatprep.subr.mxu0 0.0
      %4265 = vmatpush1.msra.mxu0 0.0
      %4266 = vmatprep.subr.mxu0 0.0
      %4267 = vmatpush1.msra.mxu0 0.0
      %4268 = vmatprep.subr.mxu0 0.0
      %4269 = vmatpush1.msra.mxu0 0.0
      %4270 = vmatprep.subr.mxu0 0.0
      %4271 = vmatpush1.msra.mxu0 0.0
      %4272 = vmatprep.subr.mxu0 0.0
      %4273 = vmatpush1.msra.mxu0 0.0
      %4274 = vmatprep.subr.mxu0 0.0
      %4275 = vmatpush1.msra.mxu0 0.0
      %4276 = vmatprep.subr.mxu0 0.0
      %4277 = vmatpush1.msra.mxu0 0.0
      %4278 = vmatprep.subr.mxu0 0.0
      %4279 = vmatpush1.msra.mxu0 0.0
      %4280 = vmatprep.subr.mxu0 0.0
      %4281 = vmatpush1.msra.mxu0 0.0
      %4282 = vmatprep.mubr.f32.mxu0 0.0
      %v4283 = vand.u32 %v4074, 4294901760
      %4284 = vmatmul.mubr.f32.gmra.mrb[0].mxu0 %v4283
      %v4285 = vpop.f32.mrb[0].mxu0
      %v4286 = vadd.f32 %v4164, %v4285
      %v4287 = vpop.f32.mrb[0].mxu0
      %v4288 = vadd.f32 %v4166, %v4287
      %4289 = vdwg.mxu0
      %v4290 = vand.u32 %v4057, 4294901760
      %v4291 = vsub.f32 %v4057, %v4290
      %4292 = vmatprep.subr.mxu0 %v4291
      %v4293 = vand.u32 %v4056, 4294901760
      %v4294 = vsub.f32 %v4056, %v4293
      %4295 = vmatpush1.msra.mxu0 %v4294
      %v4296 = vand.u32 %v4059, 4294901760
      %v4297 = vsub.f32 %v4059, %v4296
      %4298 = vmatprep.subr.mxu0 %v4297
      %v4299 = vand.u32 %v4058, 4294901760
      %v4300 = vsub.f32 %v4058, %v4299
      %4301 = vmatpush1.msra.mxu0 %v4300
      %v4302 = vand.u32 %v4061, 4294901760
      %v4303 = vsub.f32 %v4061, %v4302
      %4304 = vmatprep.subr.mxu0 %v4303
      %v4305 = vand.u32 %v4060, 4294901760
      %v4306 = vsub.f32 %v4060, %v4305
      %4307 = vmatpush1.msra.mxu0 %v4306
      %v4308 = vand.u32 %v4063, 4294901760
      %v4309 = vsub.f32 %v4063, %v4308
      %4310 = vmatprep.subr.mxu0 %v4309
      %v4311 = vand.u32 %v4062, 4294901760
      %v4312 = vsub.f32 %v4062, %v4311
      %4313 = vmatpush1.msra.mxu0 %v4312
      %v4314 = vand.u32 %v4080, 4294901760
      %v4315 = vsub.f32 %v4080, %v4314
      %4316 = vmatprep.subr.mxu0 %v4315
      %v4317 = vand.u32 %v4077, 4294901760
      %v4318 = vsub.f32 %v4077, %v4317
      %4319 = vmatpush1.msra.mxu0 %v4318
      %4320 = vmatprep.subr.mxu0 0.0
      %4321 = vmatpush1.msra.mxu0 0.0
      %4322 = vmatprep.subr.mxu0 0.0
      %4323 = vmatpush1.msra.mxu0 0.0
      %4324 = vmatprep.subr.mxu0 0.0
      %4325 = vmatpush1.msra.mxu0 0.0
      %4326 = vmatprep.subr.mxu0 0.0
      %4327 = vmatpush1.msra.mxu0 0.0
      %4328 = vmatprep.subr.mxu0 0.0
      %4329 = vmatpush1.msra.mxu0 0.0
      %4330 = vmatprep.subr.mxu0 0.0
      %4331 = vmatpush1.msra.mxu0 0.0
      %4332 = vmatprep.subr.mxu0 0.0
      %4333 = vmatpush1.msra.mxu0 0.0
      %4334 = vmatprep.subr.mxu0 0.0
      %4335 = vmatpush1.msra.mxu0 0.0
      %4336 = vmatprep.subr.mxu0 0.0
      %4337 = vmatpush1.msra.mxu0 0.0
      %4338 = vmatprep.subr.mxu0 0.0
      %4339 = vmatpush1.msra.mxu0 0.0
      %4340 = vmatprep.subr.mxu0 0.0
      %4341 = vmatpush1.msra.mxu0 0.0
      %4342 = vmatprep.subr.mxu0 0.0
      %4343 = vmatpush1.msra.mxu0 0.0
      %4344 = vmatprep.subr.mxu0 0.0
      %4345 = vmatpush1.msra.mxu0 0.0
      %4346 = vmatprep.subr.mxu0 0.0
      %4347 = vmatpush1.msra.mxu0 0.0
      %4348 = vmatprep.subr.mxu0 0.0
      %4349 = vmatpush1.msra.mxu0 0.0
      %4350 = vmatprep.subr.mxu0 0.0
      %4351 = vmatpush1.msra.mxu0 0.0
      %4352 = vmatprep.subr.mxu0 0.0
      %4353 = vmatpush1.msra.mxu0 0.0
      %4354 = vmatprep.subr.mxu0 0.0
      %4355 = vmatpush1.msra.mxu0 0.0
      %4356 = vmatprep.subr.mxu0 0.0
      %4357 = vmatpush1.msra.mxu0 0.0
      %4358 = vmatprep.subr.mxu0 0.0
      %4359 = vmatpush1.msra.mxu0 0.0
      %4360 = vmatprep.subr.mxu0 0.0
      %4361 = vmatpush1.msra.mxu0 0.0
      %4362 = vmatprep.subr.mxu0 0.0
      %4363 = vmatpush1.msra.mxu0 0.0
      %4364 = vmatprep.subr.mxu0 0.0
      %4365 = vmatpush1.msra.mxu0 0.0
      %4366 = vmatprep.subr.mxu0 0.0
      %4367 = vmatpush1.msra.mxu0 0.0
      %4368 = vmatprep.subr.mxu0 0.0
      %4369 = vmatpush1.msra.mxu0 0.0
      %4370 = vmatprep.subr.mxu0 0.0
      %4371 = vmatpush1.msra.mxu0 0.0
      %4372 = vmatprep.subr.mxu0 0.0
      %4373 = vmatpush1.msra.mxu0 0.0
      %4374 = vmatprep.mubr.f32.mxu0 0.0
      %v4375 = vand.u32 %v4074, 4294901760
      %v4376 = vsub.f32 %v4074, %v4375
      %4377 = vmatmul.mubr.f32.gmra.mrb[0].mxu0 %v4376
      %v4378 = vpop.f32.mrb[0].mxu0
      %v4379 = vadd.f32 %v4286, %v4378
      %v4380 = vpop.f32.mrb[0].mxu0
      %v4381 = vadd.f32 %v4288, %v4380
      %4382 = vdwg.mxu0
      %v4383 = vand.u32 %v4057, 4294901760
      %4384 = vmatprep.subr.mxu0 %v4383
      %v4385 = vand.u32 %v4056, 4294901760
      %4386 = vmatpush1.msra.mxu0 %v4385
      %v4387 = vand.u32 %v4059, 4294901760
      %4388 = vmatprep.subr.mxu0 %v4387
      %v4389 = vand.u32 %v4058, 4294901760
      %4390 = vmatpush1.msra.mxu0 %v4389
      %v4391 = vand.u32 %v4061, 4294901760
      %4392 = vmatprep.subr.mxu0 %v4391
      %v4393 = vand.u32 %v4060, 4294901760
      %4394 = vmatpush1.msra.mxu0 %v4393
      %v4395 = vand.u32 %v4063, 4294901760
      %4396 = vmatprep.subr.mxu0 %v4395
      %v4397 = vand.u32 %v4062, 4294901760
      %4398 = vmatpush1.msra.mxu0 %v4397
      %v4399 = vand.u32 %v4080, 4294901760
      %4400 = vmatprep.subr.mxu0 %v4399
      %v4401 = vand.u32 %v4077, 4294901760
      %4402 = vmatpush1.msra.mxu0 %v4401
      %4403 = vmatprep.subr.mxu0 0.0
      %4404 = vmatpush1.msra.mxu0 0.0
      %4405 = vmatprep.subr.mxu0 0.0
      %4406 = vmatpush1.msra.mxu0 0.0
      %4407 = vmatprep.subr.mxu0 0.0
      %4408 = vmatpush1.msra.mxu0 0.0
      %4409 = vmatprep.subr.mxu0 0.0
      %4410 = vmatpush1.msra.mxu0 0.0
      %4411 = vmatprep.subr.mxu0 0.0
      %4412 = vmatpush1.msra.mxu0 0.0
      %4413 = vmatprep.subr.mxu0 0.0
      %4414 = vmatpush1.msra.mxu0 0.0
      %4415 = vmatprep.subr.mxu0 0.0
      %4416 = vmatpush1.msra.mxu0 0.0
      %4417 = vmatprep.subr.mxu0 0.0
      %4418 = vmatpush1.msra.mxu0 0.0
      %4419 = vmatprep.subr.mxu0 0.0
      %4420 = vmatpush1.msra.mxu0 0.0
      %4421 = vmatprep.subr.mxu0 0.0
      %4422 = vmatpush1.msra.mxu0 0.0
      %4423 = vmatprep.subr.mxu0 0.0
      %4424 = vmatpush1.msra.mxu0 0.0
      %4425 = vmatprep.subr.mxu0 0.0
      %4426 = vmatpush1.msra.mxu0 0.0
      %4427 = vmatprep.subr.mxu0 0.0
      %4428 = vmatpush1.msra.mxu0 0.0
      %4429 = vmatprep.subr.mxu0 0.0
      %4430 = vmatpush1.msra.mxu0 0.0
      %4431 = vmatprep.subr.mxu0 0.0
      %4432 = vmatpush1.msra.mxu0 0.0
      %4433 = vmatprep.subr.mxu0 0.0
      %4434 = vmatpush1.msra.mxu0 0.0
      %4435 = vmatprep.subr.mxu0 0.0
      %4436 = vmatpush1.msra.mxu0 0.0
      %4437 = vmatprep.subr.mxu0 0.0
      %4438 = vmatpush1.msra.mxu0 0.0
      %4439 = vmatprep.subr.mxu0 0.0
      %4440 = vmatpush1.msra.mxu0 0.0
      %4441 = vmatprep.subr.mxu0 0.0
      %4442 = vmatpush1.msra.mxu0 0.0
      %4443 = vmatprep.subr.mxu0 0.0
      %4444 = vmatpush1.msra.mxu0 0.0
      %4445 = vmatprep.subr.mxu0 0.0
      %4446 = vmatpush1.msra.mxu0 0.0
      %4447 = vmatprep.subr.mxu0 0.0
      %4448 = vmatpush1.msra.mxu0 0.0
      %4449 = vmatprep.subr.mxu0 0.0
      %4450 = vmatpush1.msra.mxu0 0.0
      %4451 = vmatprep.subr.mxu0 0.0
      %4452 = vmatpush1.msra.mxu0 0.0
      %4453 = vmatprep.subr.mxu0 0.0
      %4454 = vmatpush1.msra.mxu0 0.0
      %4455 = vmatprep.subr.mxu0 0.0
      %4456 = vmatpush1.msra.mxu0 0.0
      %4457 = vmatprep.mubr.f32.mxu0 0.0
      %v4458 = vand.u32 %v4074, 4294901760
      %v4459 = vsub.f32 %v4074, %v4458
      %v4460 = vand.u32 %v4459, 4294901760
      %4461 = vmatmul.mubr.f32.gmra.mrb[0].mxu0 %v4460
      %v4462 = vpop.f32.mrb[0].mxu0
      %v4463 = vadd.f32 %v4379, %v4462
      %v4464 = vpop.f32.mrb[0].mxu0
      %v4465 = vadd.f32 %v4381, %v4464
      %4466 = vdwg.mxu0
      %v4467 = vand.u32 %v4057, 4294901760
      %v4468 = vsub.f32 %v4057, %v4467
      %v4469 = vand.u32 %v4468, 4294901760
      %4470 = vmatprep.subr.mxu0 %v4469
      %v4471 = vand.u32 %v4056, 4294901760
      %v4472 = vsub.f32 %v4056, %v4471
      %v4473 = vand.u32 %v4472, 4294901760
      %4474 = vmatpush1.msra.mxu0 %v4473
      %v4475 = vand.u32 %v4059, 4294901760
      %v4476 = vsub.f32 %v4059, %v4475
      %v4477 = vand.u32 %v4476, 4294901760
      %4478 = vmatprep.subr.mxu0 %v4477
      %v4479 = vand.u32 %v4058, 4294901760
      %v4480 = vsub.f32 %v4058, %v4479
      %v4481 = vand.u32 %v4480, 4294901760
      %4482 = vmatpush1.msra.mxu0 %v4481
      %v4483 = vand.u32 %v4061, 4294901760
      %v4484 = vsub.f32 %v4061, %v4483
      %v4485 = vand.u32 %v4484, 4294901760
      %4486 = vmatprep.subr.mxu0 %v4485
      %v4487 = vand.u32 %v4060, 4294901760
      %v4488 = vsub.f32 %v4060, %v4487
      %v4489 = vand.u32 %v4488, 4294901760
      %4490 = vmatpush1.msra.mxu0 %v4489
      %v4491 = vand.u32 %v4063, 4294901760
      %v4492 = vsub.f32 %v4063, %v4491
      %v4493 = vand.u32 %v4492, 4294901760
      %4494 = vmatprep.subr.mxu0 %v4493
      %v4495 = vand.u32 %v4062, 4294901760
      %v4496 = vsub.f32 %v4062, %v4495
      %v4497 = vand.u32 %v4496, 4294901760
      %4498 = vmatpush1.msra.mxu0 %v4497
      %v4499 = vand.u32 %v4080, 4294901760
      %v4500 = vsub.f32 %v4080, %v4499
      %v4501 = vand.u32 %v4500, 4294901760
      %4502 = vmatprep.subr.mxu0 %v4501
      %v4503 = vand.u32 %v4077, 4294901760
      %v4504 = vsub.f32 %v4077, %v4503
      %v4505 = vand.u32 %v4504, 4294901760
      %4506 = vmatpush1.msra.mxu0 %v4505
      %4507 = vmatprep.subr.mxu0 0.0
      %4508 = vmatpush1.msra.mxu0 0.0
      %4509 = vmatprep.subr.mxu0 0.0
      %4510 = vmatpush1.msra.mxu0 0.0
      %4511 = vmatprep.subr.mxu0 0.0
      %4512 = vmatpush1.msra.mxu0 0.0
      %4513 = vmatprep.subr.mxu0 0.0
      %4514 = vmatpush1.msra.mxu0 0.0
      %4515 = vmatprep.subr.mxu0 0.0
      %4516 = vmatpush1.msra.mxu0 0.0
      %4517 = vmatprep.subr.mxu0 0.0
      %4518 = vmatpush1.msra.mxu0 0.0
      %4519 = vmatprep.subr.mxu0 0.0
      %4520 = vmatpush1.msra.mxu0 0.0
      %4521 = vmatprep.subr.mxu0 0.0
      %4522 = vmatpush1.msra.mxu0 0.0
      %4523 = vmatprep.subr.mxu0 0.0
      %4524 = vmatpush1.msra.mxu0 0.0
      %4525 = vmatprep.subr.mxu0 0.0
      %4526 = vmatpush1.msra.mxu0 0.0
      %4527 = vmatprep.subr.mxu0 0.0
      %4528 = vmatpush1.msra.mxu0 0.0
      %4529 = vmatprep.subr.mxu0 0.0
      %4530 = vmatpush1.msra.mxu0 0.0
      %4531 = vmatprep.subr.mxu0 0.0
      %4532 = vmatpush1.msra.mxu0 0.0
      %4533 = vmatprep.subr.mxu0 0.0
      %4534 = vmatpush1.msra.mxu0 0.0
      %4535 = vmatprep.subr.mxu0 0.0
      %4536 = vmatpush1.msra.mxu0 0.0
      %4537 = vmatprep.subr.mxu0 0.0
      %4538 = vmatpush1.msra.mxu0 0.0
      %4539 = vmatprep.subr.mxu0 0.0
      %4540 = vmatpush1.msra.mxu0 0.0
      %4541 = vmatprep.subr.mxu0 0.0
      %4542 = vmatpush1.msra.mxu0 0.0
      %4543 = vmatprep.subr.mxu0 0.0
      %4544 = vmatpush1.msra.mxu0 0.0
      %4545 = vmatprep.subr.mxu0 0.0
      %4546 = vmatpush1.msra.mxu0 0.0
      %4547 = vmatprep.subr.mxu0 0.0
      %4548 = vmatpush1.msra.mxu0 0.0
      %4549 = vmatprep.subr.mxu0 0.0
      %4550 = vmatpush1.msra.mxu0 0.0
      %4551 = vmatprep.subr.mxu0 0.0
      %4552 = vmatpush1.msra.mxu0 0.0
      %4553 = vmatprep.subr.mxu0 0.0
      %4554 = vmatpush1.msra.mxu0 0.0
      %4555 = vmatprep.subr.mxu0 0.0
      %4556 = vmatpush1.msra.mxu0 0.0
      %4557 = vmatprep.subr.mxu0 0.0
      %4558 = vmatpush1.msra.mxu0 0.0
      %4559 = vmatprep.subr.mxu0 0.0
      %4560 = vmatpush1.msra.mxu0 0.0
      %4561 = vmatprep.mubr.f32.mxu0 0.0
      %v4562 = vand.u32 %v4074, 4294901760
      %4563 = vmatmul.mubr.f32.gmra.mrb[0].mxu0 %v4562
      %v4564 = vpop.f32.mrb[0].mxu0
      %v4565 = vadd.f32 %v4463, %v4564
      %v4566 = vpop.f32.mrb[0].mxu0
      %v4567 = vadd.f32 %v4465, %v4566
      %4568 = vdwg.mxu0
      %v4569 = vand.u32 %v4057, 4294901760
      %4570 = vmatprep.subr.mxu0 %v4569
      %v4571 = vand.u32 %v4056, 4294901760
      %4572 = vmatpush1.msra.mxu0 %v4571
      %v4573 = vand.u32 %v4059, 4294901760
      %4574 = vmatprep.subr.mxu0 %v4573
      %v4575 = vand.u32 %v4058, 4294901760
      %4576 = vmatpush1.msra.mxu0 %v4575
      %v4577 = vand.u32 %v4061, 4294901760
      %4578 = vmatprep.subr.mxu0 %v4577
      %v4579 = vand.u32 %v4060, 4294901760
      %4580 = vmatpush1.msra.mxu0 %v4579
      %v4581 = vand.u32 %v4063, 4294901760
      %4582 = vmatprep.subr.mxu0 %v4581
      %v4583 = vand.u32 %v4062, 4294901760
      %4584 = vmatpush1.msra.mxu0 %v4583
      %v4585 = vand.u32 %v4080, 4294901760
      %4586 = vmatprep.subr.mxu0 %v4585
      %v4587 = vand.u32 %v4077, 4294901760
      %4588 = vmatpush1.msra.mxu0 %v4587
      %4589 = vmatprep.subr.mxu0 0.0
      %4590 = vmatpush1.msra.mxu0 0.0
      %4591 = vmatprep.subr.mxu0 0.0
      %4592 = vmatpush1.msra.mxu0 0.0
      %4593 = vmatprep.subr.mxu0 0.0
      %4594 = vmatpush1.msra.mxu0 0.0
      %4595 = vmatprep.subr.mxu0 0.0
      %4596 = vmatpush1.msra.mxu0 0.0
      %4597 = vmatprep.subr.mxu0 0.0
      %4598 = vmatpush1.msra.mxu0 0.0
      %4599 = vmatprep.subr.mxu0 0.0
      %4600 = vmatpush1.msra.mxu0 0.0
      %4601 = vmatprep.subr.mxu0 0.0
      %4602 = vmatpush1.msra.mxu0 0.0
      %4603 = vmatprep.subr.mxu0 0.0
      %4604 = vmatpush1.msra.mxu0 0.0
      %4605 = vmatprep.subr.mxu0 0.0
      %4606 = vmatpush1.msra.mxu0 0.0
      %4607 = vmatprep.subr.mxu0 0.0
      %4608 = vmatpush1.msra.mxu0 0.0
      %4609 = vmatprep.subr.mxu0 0.0
      %4610 = vmatpush1.msra.mxu0 0.0
      %4611 = vmatprep.subr.mxu0 0.0
      %4612 = vmatpush1.msra.mxu0 0.0
      %4613 = vmatprep.subr.mxu0 0.0
      %4614 = vmatpush1.msra.mxu0 0.0
      %4615 = vmatprep.subr.mxu0 0.0
      %4616 = vmatpush1.msra.mxu0 0.0
      %4617 = vmatprep.subr.mxu0 0.0
      %4618 = vmatpush1.msra.mxu0 0.0
      %4619 = vmatprep.subr.mxu0 0.0
      %4620 = vmatpush1.msra.mxu0 0.0
      %4621 = vmatprep.subr.mxu0 0.0
      %4622 = vmatpush1.msra.mxu0 0.0
      %4623 = vmatprep.subr.mxu0 0.0
      %4624 = vmatpush1.msra.mxu0 0.0
      %4625 = vmatprep.subr.mxu0 0.0
      %4626 = vmatpush1.msra.mxu0 0.0
      %4627 = vmatprep.subr.mxu0 0.0
      %4628 = vmatpush1.msra.mxu0 0.0
      %4629 = vmatprep.subr.mxu0 0.0
      %4630 = vmatpush1.msra.mxu0 0.0
      %4631 = vmatprep.subr.mxu0 0.0
      %4632 = vmatpush1.msra.mxu0 0.0
      %4633 = vmatprep.subr.mxu0 0.0
      %4634 = vmatpush1.msra.mxu0 0.0
      %4635 = vmatprep.subr.mxu0 0.0
      %4636 = vmatpush1.msra.mxu0 0.0
      %4637 = vmatprep.subr.mxu0 0.0
      %4638 = vmatpush1.msra.mxu0 0.0
      %4639 = vmatprep.subr.mxu0 0.0
      %4640 = vmatpush1.msra.mxu0 0.0
      %4641 = vmatprep.subr.mxu0 0.0
      %4642 = vmatpush1.msra.mxu0 0.0
      %4643 = vmatprep.mubr.f32.mxu0 0.0
      %v4644 = vand.u32 %v4074, 4294901760
      %4645 = vmatmul.mubr.f32.gmra.mrb[0].mxu0 %v4644
      %v4646 = vpop.f32.mrb[0].mxu0
      %v4647 = vadd.f32 %v4565, %v4646
      %v4648 = vpop.f32.mrb[0].mxu0
      %v4649 = vadd.f32 %v4567, %v4648
      %4650 = vdwg.mxu0
      %v4651 = vxor.u32 %v4647, 2147483648
      %v4652 = vxor.u32 %v4649, 2147483648
      %v4653 = vmul.f32 %v4651, 1.442695
      %v4654 = vpow.pop %v4653
      %v4655 = vmul.f32 %v4652, 1.442695
      %v4656 = vpow.pop %v4655
      %v4657 = vadd.f32 %v4654, 1.0
      %v4658 = vadd.f32 %v4656, 1.0
      %v4659 = vrcp.pop %v4657
      %v4660 = vmul.f32 1.0, %v4659
      %v4661 = vrcp.pop %v4658
      %v4662 = vmul.f32 1.0, %v4661
      %v4663 = vmul.f32 %v4647, %v4660
      %v4664 = vmul.f32 %v4649, %v4662
      %4665 = vst [vmem:[%s379] sm:$0xff] %v4663
      %4666 = vst [vmem:[%s379 + $0x8] sm:$0xff] %v4664
      %p4667 = scmp.lt.s32.totalorder %s21, 1
      %s4668 = scalar_select %p4667, %s21, 1
      %s4669 = smul.addr %s4668, 2
      %s4670 = smul.addr %s4669, 8
      %s4671 = scalar_lea.vmem %s10, %s4670
      // Predicated region
      $region61: #{rfcbam_forward.1} parent=59 // pred_check
        %p4672 = pneg %p259
      $region62: #{rfcbam_forward.1} parent=59 // pred_check_branch
        %4674 = sbr.rel (%p4672) target = $region64
      $region63: #{rfcbam_forward.1} parent=59 // pred_region
        _
      $region64: #{rfcbam_forward.1} parent=59 // pred_fallthru
        _
    $region60: #{rfcbam_forward.1} parent=5 // pred_fallthru
      _
    %p4675 = scmp.le.s32.totalorder 2, %s16
    // Predicated region
    $region65: #{rfcbam_forward.1} parent=5 // pred_check
      %p4676 = pneg %p4675
    $region66: #{rfcbam_forward.1} parent=5 // pred_check_branch
      %4678 = sbr.rel (%p4676) target = $region68
    $region67: #{rfcbam_forward.1} parent=5 // pred_region
      %s4679 = ssub.s32 %s16, 2
      // Predicated region
      $region69: #{rfcbam_forward.1} parent=67 // pred_check
        %p4680 = pneg %p265
      $region70: #{rfcbam_forward.1} parent=67 // pred_check_branch
        %4682 = sbr.rel (%p4680) target = $region72
      $region71: #{rfcbam_forward.1} parent=67 // pred_region
        %p4683 = scmp.lt.s32.totalorder %s22, 1
        %s4684 = scalar_select %p4683, %s22, 1
        %s4685 = smul.addr %s4684, 2
        %s4686 = smul.addr %s4685, 8
        %s4687 = scalar_lea.vmem %s10, %s4686
      $region72: #{rfcbam_forward.1} parent=67 // pred_fallthru
        _
    $region68: #{rfcbam_forward.1} parent=5 // pred_fallthru
      _
  $region6: #{rfcbam_forward.1} parent=0 // loop_footer
    %s20 = sadd.s32 1, %s16
  $region7: #{rfcbam_forward.1} parent=0 // loop_footer_branch
    %15 = sbr.rel target = $region3
  $region8: #{rfcbam_forward.1} parent=0 // loop_exit
    _

</llo_original>
